<compile_context>
chip_gen: v7x
topology: tpu7x:2x2x1
jax: 0.10.0
libtpu: 0.0.40
codegen_flags: <defaults>
</compile_context>

<pallas_src>
import math
import functools

import jax
import jax.numpy as jnp
import numpy as np
from jax import lax
from jax.experimental import pallas as pl
from jax.experimental.pallas import tpu as pltpu

# ---------------- small config consistent with the module ----------------
EMBED_DIM = 32
NUM_HEADS = 4
NUM_LEVELS = 2
NUM_POINTS = 4
HEAD_DIM = EMBED_DIM // NUM_HEADS
SPATIAL_SHAPES = ((8, 8), (4, 4))          # (H, W) per level
NUM_VALUE = sum(h * w for h, w in SPATIAL_SHAPES)
NUM_VALUE_PAD = 128                         # zero-padded to a full lane width
BATCH = 2
NUM_QUERY = 8


# ---------------- host-side constant matrices (built once, passed as tiny inputs) ----------------
def _host_constants(spatial_shapes, nh, L, P, Nq, D, hd):
    LP = L * P
    HLP = nh * LP
    C4 = 4 * HLP
    # per-(h,l,p) column constants: W, H, level start
    Wlp = np.array([float(w) for (_, w) in spatial_shapes for _ in range(P)], np.float32)
    Hlp = np.array([float(h) for (h, _) in spatial_shapes for _ in range(P)], np.float32)
    starts = np.cumsum([0] + [h * w for (h, w) in spatial_shapes]).astype(np.float32)[:-1]
    Slp = np.array([starts[l] for l in range(L) for _ in range(P)], np.float32)
    lvlconst = np.stack([np.tile(Wlp, nh), np.tile(Hlp, nh), np.tile(Slp, nh)], axis=0)  # (3, HLP)
    # per-head softmax group-sum matrix (block-diagonal ones)
    gmat = np.kron(np.eye(nh, dtype=np.float32), np.ones((LP, LP), np.float32))          # (HLP, HLP)
    # corner/level/point reduction matrix: rows ordered (h, q), columns (q, corner, h, l, p)
    smat = np.zeros((nh * Nq, Nq * C4), np.float32)
    for h in range(nh):
        for q in range(Nq):
            for c in range(4):
                col0 = q * C4 + c * HLP + h * LP
                smat[h * Nq + q, col0:col0 + LP] = 1.0
    # head channel-selection mask, rows ordered (h, q)
    hmask = np.zeros((nh * Nq, D), np.float32)
    for h in range(nh):
        hmask[h * Nq:(h + 1) * Nq, h * hd:(h + 1) * hd] = 1.0
    return lvlconst, gmat, smat, hmask


# ---------------- fused Pallas kernel (single grid step covers both batch elements) ----------------
def _msda_fused_kernel(q_ref, v_ref, ref_ref, lvl_ref, gmat_ref, smat_ref, hmask_ref,
                       vpw_ref, vpb_ref, qpw_ref, qpb_ref, ow_ref, ob_ref, o_ref, *,
                       batch, num_heads, num_levels, num_points, nvp):
    nh, L, P = num_heads, num_levels, num_points
    LP = L * P
    HLP = nh * LP                 # 32 columns, ordered (h, l, p)
    C4 = 4 * HLP                  # 128 columns, ordered (corner, h, l, p)

    q2d = q_ref[...]              # (bs*Nq, D), rows ordered (b, q); also the residual identity
    BQ, D = q2d.shape
    Nq = BQ // batch

    # ---- merged query projection: [x-offsets | y-offsets | attention logits] (MXU) ----
    qp = jnp.dot(q2d, qpw_ref[...], preferred_element_type=jnp.float32) + qpb_ref[...]   # (BQ, 3*HLP)
    offx = qp[:, 0:HLP]
    offy = qp[:, HLP:2 * HLP]
    logits = qp[:, 2 * HLP:3 * HLP]

    refx = ref_ref[:, 0:HLP]      # reference points pre-scaled to pixel space: ref*size - 0.5
    refy = ref_ref[:, HLP:2 * HLP]

    # ---- per-head softmax over the L*P points, vectorized over heads ----
    # Subtracting the per-row global max is a valid shift for every head group; the per-group
    # denominator comes from one block-diagonal-ones matmul (MXU) -> no lane regrouping needed.
    m = jnp.max(logits, axis=-1, keepdims=True)
    e = jnp.exp(logits - m)
    z = jnp.dot(e, gmat_ref[...], preferred_element_type=jnp.float32)   # group sums, per-lane broadcast
    attn = e / z

    # ---- sampling locations in pixel space, bilinear corner indices & weights ----
    Wv = lvl_ref[0:1, :]          # (1, HLP)
    Hv = lvl_ref[1:2, :]
    Sv = lvl_ref[2:3, :]
    Wi = Wv.astype(jnp.int32)
    Si = Sv.astype(jnp.int32)

    px = refx + offx              # grid_sample align_corners=False: loc*size - 0.5 + raw_offset
    py = refy + offy
    x0 = jnp.floor(px)
    y0 = jnp.floor(py)
    fx = px - x0
    fy = py - y0

    idx_parts, wgt_parts = [], []
    corners = ((0.0, 0.0, (1.0 - fx) * (1.0 - fy)),
               (1.0, 0.0, fx * (1.0 - fy)),
               (0.0, 1.0, (1.0 - fx) * fy),
               (1.0, 1.0, fx * fy))
    for dx, dy, w in corners:
        cx = x0 + dx
        cy = y0 + dy
        inb = (cx >= 0.0) & (cx <= Wv - 1.0) & (cy >= 0.0) & (cy <= Hv - 1.0)
        cxi = jnp.clip(cx, 0.0, Wv - 1.0).astype(jnp.int32)   # clip BEFORE the int cast
        cyi = jnp.clip(cy, 0.0, Hv - 1.0).astype(jnp.int32)
        idx_parts.append(Si + cyi * Wi + cxi)                 # int32 flat value index, always < Nv
        wgt_parts.append(jnp.where(inb, w * attn, 0.0))       # zero-padding grid_sample semantics
    idx_cat = jnp.concatenate(idx_parts, axis=-1)             # (BQ, C4)
    wgt_cat = jnp.concatenate(wgt_parts, axis=-1)             # (BQ, C4)

    # shared iota along the (padded) value axis, hoisted once and reused for both batches
    iota_v = lax.broadcasted_iota(jnp.int32, (Nq, C4, nvp), 2)

    outs = []
    for b in range(batch):                                    # unrolled, batch == 2
        sl = slice(b * Nq, (b + 1) * Nq)
        # value projection on the zero-padded slab (MXU); padded rows are never indexed
        vproj = jnp.dot(v_ref[b], vpw_ref[...], preferred_element_type=jnp.float32) + vpb_ref[...]
        # weighted one-hot sampling tensor (weights folded into the select)
        onehot = jnp.where(iota_v == idx_cat[sl][:, :, None],
                           wgt_cat[sl][:, :, None], 0.0)      # (Nq, C4, nvp)
        onehot2d = onehot.reshape(Nq * C4, nvp)               # layout-free collapse of outer dims
        # corner/level/point reduction AND value gather both on the MXU
        A = jnp.dot(smat_ref[...], onehot2d, preferred_element_type=jnp.float32)   # (nh*Nq, nvp)
        res = jnp.dot(A, vproj, preferred_element_type=jnp.float32)                # (nh*Nq, D)
        # head-channel selection: mask + sum over the head axis (no lane-slice concat shuffles)
        resm = res * hmask_ref[...]
        outs.append(jnp.sum(resm.reshape(nh, Nq, D), axis=0))                      # (Nq, D)
    out_heads = jnp.concatenate(outs, axis=0)                                      # (BQ, D)

    # ---- output projection + residual (dropout is identity in eval mode) ----
    o_ref[...] = (jnp.dot(out_heads, ow_ref[...], preferred_element_type=jnp.float32)
                  + ob_ref[...] + q2d)


# ---------------- fused forward wrapper (batch_first=False, no padding mask) ----------------
def ms_deformable_attention_forward(query, value, reference_points, params, spatial_shapes):
    """Fully-fused Pallas forward. query/value: (N, bs, D); returns (Nq, bs, D)."""
    Nq, bs, D = query.shape
    Nv = value.shape[0]
    nh, hd, L, P = NUM_HEADS, HEAD_DIM, NUM_LEVELS, NUM_POINTS
    LP = L * P
    HLP = nh * LP
    C4 = 4 * HLP
    NVP = NUM_VALUE_PAD
    BQ = bs * Nq

    q2d = jnp.transpose(query, (1, 0, 2)).reshape(BQ, D)         # rows (b, q)
    v = jnp.transpose(value, (1, 0, 2))                          # (bs, Nv, D)
    vpad = jnp.pad(v, ((0, 0), (0, NVP - Nv), (0, 0)))           # (bs, 128, D)

    # Merge + permute offset/attention projections: columns [ x(h,l,p) | y(h,l,p) | attn(h,l,p) ].
    off_w_r = params["off_w"].reshape(D, HLP, 2)
    off_b_r = params["off_b"].reshape(HLP, 2)
    qproj_w = jnp.concatenate([off_w_r[..., 0], off_w_r[..., 1], params["attn_w"]], axis=1)  # (D, 3*HLP)
    qproj_b = jnp.concatenate([off_b_r[:, 0], off_b_r[:, 1], params["attn_b"]], axis=0)      # (3*HLP,)

    # Reference points pre-scaled to pixel space (loc*size - 0.5), columns ordered (h, l, p).
    Wn = jnp.array([float(w) for (_, w) in spatial_shapes], jnp.float32)
    Hn = jnp.array([float(h) for (h, _) in spatial_shapes], jnp.float32)
    refx = jnp.tile(jnp.repeat(reference_points[..., 0] * Wn - 0.5, P, axis=-1), (1, 1, nh))
    refy = jnp.tile(jnp.repeat(reference_points[..., 1] * Hn - 0.5, P, axis=-1), (1, 1, nh))
    refpack = jnp.concatenate([refx, refy], axis=-1).reshape(BQ, 2 * HLP)

    lvlconst, gmat, smat, hmask = _host_constants(spatial_shapes, nh, L, P, Nq, D, hd)

    kernel = functools.partial(_msda_fused_kernel, batch=bs, num_heads=nh,
                               num_levels=L, num_points=P, nvp=NVP)

    flops = (2 * BQ * D * 3 * HLP + 2 * BQ * HLP * HLP
             + bs * (2 * NVP * D * D + 2 * nh * Nq * (Nq * C4) * NVP + 2 * nh * Nq * NVP * D)
             + 2 * BQ * D * D + 2 * bs * Nq * C4 * NVP)
    bytes_accessed = 4 * (q2d.size + vpad.size + refpack.size + lvlconst.size + gmat.size
                          + smat.size + hmask.size + qproj_w.size + qproj_b.size
                          + params["value_proj_w"].size + params["value_proj_b"].size
                          + params["out_w"].size + params["out_b"].size + BQ * D)

    out2d = pl.pallas_call(
        kernel,
        out_shape=jax.ShapeDtypeStruct((BQ, D), jnp.float32),
        # Single step: both batch elements fused -> no per-step pipeline overhead (v5e/v6e are
        # single-TC). On v7x, grid=(2,) + dimension_semantics=("parallel",) is the measured
        # alternative for using the second TensorCore.
        grid=(1,),
        in_specs=[
            pl.BlockSpec((BQ, D), lambda i: (0, 0)),                 # query (residual identity)
            pl.BlockSpec((bs, NVP, D), lambda i: (0, 0, 0)),         # value, zero-padded to 128
            pl.BlockSpec((BQ, 2 * HLP), lambda i: (0, 0)),           # packed pixel-space ref points
            pl.BlockSpec((3, HLP), lambda i: (0, 0)),                # per-column W / H / level start
            pl.BlockSpec((HLP, HLP), lambda i: (0, 0)),              # softmax group-sum matrix
            pl.BlockSpec((nh * Nq, Nq * C4), lambda i: (0, 0)),      # corner/point reduction matrix
            pl.BlockSpec((nh * Nq, D), lambda i: (0, 0)),            # head channel mask
            pl.BlockSpec((D, D), lambda i: (0, 0)),                  # value_proj_w
            pl.BlockSpec((1, D), lambda i: (0, 0)),                  # value_proj_b
            pl.BlockSpec((D, 3 * HLP), lambda i: (0, 0)),            # merged qproj_w
            pl.BlockSpec((1, 3 * HLP), lambda i: (0, 0)),            # merged qproj_b
            pl.BlockSpec((D, D), lambda i: (0, 0)),                  # out_w
            pl.BlockSpec((1, D), lambda i: (0, 0)),                  # out_b
        ],
        out_specs=pl.BlockSpec((BQ, D), lambda i: (0, 0)),
        compiler_params=pltpu.CompilerParams(dimension_semantics=("arbitrary",)),
        cost_estimate=pl.CostEstimate(flops=int(flops), transcendentals=int(BQ * HLP),
                                      bytes_accessed=int(bytes_accessed)),
    )(q2d, vpad, refpack,
      jnp.asarray(lvlconst), jnp.asarray(gmat), jnp.asarray(smat), jnp.asarray(hmask),
      params["value_proj_w"], params["value_proj_b"].reshape(1, D),
      qproj_w, qproj_b.reshape(1, 3 * HLP),
      params["out_w"], params["out_b"].reshape(1, D))

    # TODO(synk): nn.Dropout(0.1) is stochastic; forward reproduced in eval mode (identity).
    return jnp.transpose(out2d.reshape(bs, Nq, D), (1, 0, 2))     # (Nq, bs, D)


# ---------------- pure-JAX reference (mirrors the PyTorch module) ----------------
def msda_ref(value_bh, locx, locy, attn, spatial_shapes):
    BH, _, hd = value_bh.shape
    _, L, Nq, P = locx.shape
    out = jnp.zeros((BH, Nq, hd), jnp.float32)
    start = 0
    for lvl, (H, W) in enumerate(spatial_shapes):
        HW = H * W
        v = value_bh[:, start:start + HW, :]
        x = locx[:, lvl] * float(W) - 0.5
        y = locy[:, lvl] * float(H) - 0.5
        x0 = jnp.floor(x)
        y0 = jnp.floor(y)
        for dx, dy in ((0, 0), (1, 0), (0, 1), (1, 1)):
            cx = x0 + dx
            cy = y0 + dy
            w = (1.0 - jnp.abs(x - cx)) * (1.0 - jnp.abs(y - cy))
            inb = (cx >= 0) & (cx <= W - 1) & (cy >= 0) & (cy <= H - 1)
            idx = (jnp.clip(cy.astype(jnp.int32), 0, H - 1) * W
                   + jnp.clip(cx.astype(jnp.int32), 0, W - 1))
            gathered = jnp.take_along_axis(
                v, idx.reshape(BH, Nq * P, 1), axis=1).reshape(BH, Nq, P, hd)
            w_eff = jnp.where(inb, w, 0.0) * attn[:, lvl]
            out = out + jnp.sum(gathered * w_eff[..., None], axis=2)
        start += HW
    return out


def ms_deformable_attention_forward_ref(query, value, reference_points, params, spatial_shapes):
    Nq, bs, D = query.shape
    Nv = value.shape[0]
    nh, hd, L, P = NUM_HEADS, HEAD_DIM, NUM_LEVELS, NUM_POINTS
    identity = query
    q = jnp.transpose(query, (1, 0, 2))
    v = jnp.transpose(value, (1, 0, 2))
    v_proj = (v.reshape(bs * Nv, D) @ params["value_proj_w"]
              + params["value_proj_b"]).reshape(bs, Nv, nh, hd)
    offsets = (q.reshape(bs * Nq, D) @ params["off_w"]
               + params["off_b"]).reshape(bs, Nq, nh, L, P, 2)
    aw = (q.reshape(bs * Nq, D) @ params["attn_w"]
          + params["attn_b"]).reshape(bs, Nq, nh, L * P)
    aw = jax.nn.softmax(aw, axis=-1).reshape(bs, Nq, nh, L, P)
    offset_normalizer = jnp.array([[w, h] for (h, w) in spatial_shapes], jnp.float32)
    sampling_locations = (reference_points[:, :, None, :, None, :]
                          + offsets / offset_normalizer[None, None, None, :, None, :])
    value_bh = jnp.transpose(v_proj, (0, 2, 1, 3)).reshape(bs * nh, Nv, hd)
    loc = jnp.transpose(sampling_locations, (0, 2, 3, 1, 4, 5)).reshape(bs * nh, L, Nq, P, 2)
    locx, locy = loc[..., 0], loc[..., 1]
    attn_bh = jnp.transpose(aw, (0, 2, 3, 1, 4)).reshape(bs * nh, L, Nq, P)
    out = msda_ref(value_bh, locx, locy, attn_bh, spatial_shapes)
    out = jnp.transpose(out.reshape(bs, nh, Nq, hd), (0, 2, 1, 3)).reshape(bs, Nq, D)
    out = (out.reshape(bs * Nq, D) @ params["out_w"] + params["out_b"]).reshape(bs, Nq, D)
    return jnp.transpose(out, (1, 0, 2)) + identity


# ---------------- deterministic parameter init (mirrors module.init_weights) ----------------
def init_params(key):
    D, nh, L, P = EMBED_DIM, NUM_HEADS, NUM_LEVELS, NUM_POINTS
    k1, k2 = jax.random.split(key)
    thetas = jnp.arange(nh, dtype=jnp.float32) * (2.0 * math.pi / nh)
    grid_init = jnp.stack([jnp.cos(thetas), jnp.sin(thetas)], -1)
    grid_init = grid_init / jnp.max(jnp.abs(grid_init), axis=-1, keepdims=True)
    grid_init = jnp.tile(grid_init[:, None, None, :], (1, L, P, 1))
    grid_init = grid_init * jnp.arange(1, P + 1, dtype=jnp.float32)[None, None, :, None]
    xav = math.sqrt(6.0 / (D + D))
    return {
        "off_w": jnp.zeros((D, nh * L * P * 2), jnp.float32),        # weights stored (in, out)
        "off_b": grid_init.reshape(-1),
        "attn_w": jnp.zeros((D, nh * L * P), jnp.float32),
        "attn_b": jnp.zeros((nh * L * P,), jnp.float32),
        "value_proj_w": jax.random.uniform(k1, (D, D), jnp.float32, -xav, xav),
        "value_proj_b": jnp.zeros((D,), jnp.float32),
        "out_w": jax.random.uniform(k2, (D, D), jnp.float32, -xav, xav),
        "out_b": jnp.zeros((D,), jnp.float32),
    }


if __name__ == "__main__":
    key = jax.random.PRNGKey(0)
    kq, kv, kr, kp = jax.random.split(key, 4)
    params = init_params(kp)

    query = jax.random.normal(kq, (NUM_QUERY, BATCH, EMBED_DIM), jnp.float32)
    value = jax.random.normal(kv, (NUM_VALUE, BATCH, EMBED_DIM), jnp.float32)
    reference_points = jax.random.uniform(kr, (BATCH, NUM_QUERY, NUM_LEVELS, 2), jnp.float32)

    out = ms_deformable_attention_forward(query, value, reference_points, params, SPATIAL_SHAPES)
    out = jax.block_until_ready(out)

    ref = ms_deformable_attention_forward_ref(query, value, reference_points, params, SPATIAL_SHAPES)
    ref = jax.block_until_ready(ref)

    assert out.shape == (NUM_QUERY, BATCH, EMBED_DIM)
    np.testing.assert_allclose(np.asarray(out), np.asarray(ref), rtol=1e-4, atol=1e-4)
    print("KERNEL_OK")
</pallas_src>

<mosaic_0001>
module attributes {stable_mosaic.version = 11 : i64} {
  func.func @_msda_fused_kernel(%arg0: i32, %arg1: memref<16x32xf32, #tpu.memory_space<vmem>>, %arg2: memref<2x128x32xf32, #tpu.memory_space<vmem>>, %arg3: memref<16x64xf32, #tpu.memory_space<vmem>>, %arg4: memref<3x32xf32, #tpu.memory_space<vmem>>, %arg5: memref<32x32xf32, #tpu.memory_space<vmem>>, %arg6: memref<32x1024xf32, #tpu.memory_space<vmem>>, %arg7: memref<32x32xf32, #tpu.memory_space<vmem>>, %arg8: memref<32x32xf32, #tpu.memory_space<vmem>>, %arg9: memref<1x32xf32, #tpu.memory_space<vmem>>, %arg10: memref<32x96xf32, #tpu.memory_space<vmem>>, %arg11: memref<1x96xf32, #tpu.memory_space<vmem>>, %arg12: memref<32x32xf32, #tpu.memory_space<vmem>>, %arg13: memref<1x32xf32, #tpu.memory_space<vmem>>, %arg14: memref<16x32xf32, #tpu.memory_space<vmem>>) attributes {dimension_semantics = [#tpu.dimension_semantics<arbitrary>], iteration_bounds = array<i64: 1>, scalar_prefetch = 0 : i64, scratch_operands = 0 : i64, tpu.core_type = #tpu.core_type<tc>, window_params = [{pipeline_mode = #tpu.pipeline_mode<synchronous>, transform_indices = @transform_0, window_bounds = array<i64: 16, 32>}, {pipeline_mode = #tpu.pipeline_mode<synchronous>, transform_indices = @transform_1, window_bounds = array<i64: 2, 128, 32>}, {pipeline_mode = #tpu.pipeline_mode<synchronous>, transform_indices = @transform_2, window_bounds = array<i64: 16, 64>}, {pipeline_mode = #tpu.pipeline_mode<synchronous>, transform_indices = @transform_3, window_bounds = array<i64: 3, 32>}, {pipeline_mode = #tpu.pipeline_mode<synchronous>, transform_indices = @transform_4, window_bounds = array<i64: 32, 32>}, {pipeline_mode = #tpu.pipeline_mode<synchronous>, transform_indices = @transform_5, window_bounds = array<i64: 32, 1024>}, {pipeline_mode = #tpu.pipeline_mode<synchronous>, transform_indices = @transform_6, window_bounds = array<i64: 32, 32>}, {pipeline_mode = #tpu.pipeline_mode<synchronous>, transform_indices = @transform_7, window_bounds = array<i64: 32, 32>}, {pipeline_mode = #tpu.pipeline_mode<synchronous>, transform_indices = @transform_8, window_bounds = array<i64: 1, 32>}, {pipeline_mode = #tpu.pipeline_mode<synchronous>, transform_indices = @transform_9, window_bounds = array<i64: 32, 96>}, {pipeline_mode = #tpu.pipeline_mode<synchronous>, transform_indices = @transform_10, window_bounds = array<i64: 1, 96>}, {pipeline_mode = #tpu.pipeline_mode<synchronous>, transform_indices = @transform_11, window_bounds = array<i64: 32, 32>}, {pipeline_mode = #tpu.pipeline_mode<synchronous>, transform_indices = @transform_12, window_bounds = array<i64: 1, 32>}, {pipeline_mode = #tpu.pipeline_mode<synchronous>, transform_indices = @transform_13, window_bounds = array<i64: 16, 32>}]} {
    %c0 = arith.constant 0 : index
    %c0_0 = arith.constant 0 : index
    %0 = vector.load %arg1[%c0, %c0_0] : memref<16x32xf32, #tpu.memory_space<vmem>>, vector<16x32xf32>
    %c0_1 = arith.constant 0 : index
    %c0_2 = arith.constant 0 : index
    %1 = vector.load %arg10[%c0_1, %c0_2] : memref<32x96xf32, #tpu.memory_space<vmem>>, vector<32x96xf32>
    %cst = arith.constant dense<0.000000e+00> : vector<16x96xf32>
    %2 = tpu.matmul %0, %1, %cst {dimension_numbers = #tpu.dot_dimension_numbers<[1], [0], [0], [1], [0, 0, 1, 1], [], []>} : vector<16x32xf32>, vector<32x96xf32>, vector<16x96xf32> -> vector<16x96xf32>
    %c0_3 = arith.constant 0 : index
    %c0_4 = arith.constant 0 : index
    %3 = vector.load %arg11[%c0_3, %c0_4] : memref<1x96xf32, #tpu.memory_space<vmem>>, vector<1x96xf32>
    %4 = vector.broadcast %3 : vector<1x96xf32> to vector<16x96xf32>
    %5 = arith.addf %2, %4 : vector<16x96xf32>
    %6 = vector.extract_strided_slice %5 {offsets = [0, 0], sizes = [16, 32], strides = [1, 1]} : vector<16x96xf32> to vector<16x32xf32>
    %7 = vector.extract_strided_slice %5 {offsets = [0, 32], sizes = [16, 32], strides = [1, 1]} : vector<16x96xf32> to vector<16x32xf32>
    %8 = vector.extract_strided_slice %5 {offsets = [0, 64], sizes = [16, 32], strides = [1, 1]} : vector<16x96xf32> to vector<16x32xf32>
    %c0_5 = arith.constant 0 : index
    %c0_6 = arith.constant 0 : index
    %9 = vector.load %arg3[%c0_5, %c0_6] : memref<16x64xf32, #tpu.memory_space<vmem>>, vector<16x32xf32>
    %c0_7 = arith.constant 0 : index
    %c32 = arith.constant 32 : index
    %10 = vector.load %arg3[%c0_7, %c32] : memref<16x64xf32, #tpu.memory_space<vmem>>, vector<16x32xf32>
    %cst_8 = arith.constant dense<0xFF800000> : vector<16xf32>
    %11 = vector.multi_reduction <maximumf>, %8, %cst_8 [1] : vector<16x32xf32> to vector<16xf32>
    %12 = vector.shape_cast %11 : vector<16xf32> to vector<16x1xf32>
    %13 = vector.broadcast %12 : vector<16x1xf32> to vector<16x32xf32>
    %14 = arith.subf %8, %13 : vector<16x32xf32>
    %15 = math.exp %14 : vector<16x32xf32>
    %c0_9 = arith.constant 0 : index
    %c0_10 = arith.constant 0 : index
    %16 = vector.load %arg5[%c0_9, %c0_10] : memref<32x32xf32, #tpu.memory_space<vmem>>, vector<32x32xf32>
    %cst_11 = arith.constant dense<0.000000e+00> : vector<16x32xf32>
    %17 = tpu.matmul %15, %16, %cst_11 {dimension_numbers = #tpu.dot_dimension_numbers<[1], [0], [0], [1], [0, 0, 1, 1], [], []>} : vector<16x32xf32>, vector<32x32xf32>, vector<16x32xf32> -> vector<16x32xf32>
    %18 = arith.divf %15, %17 : vector<16x32xf32>
    %c0_12 = arith.constant 0 : index
    %c0_13 = arith.constant 0 : index
    %19 = vector.load %arg4[%c0_12, %c0_13] : memref<3x32xf32, #tpu.memory_space<vmem>>, vector<1x32xf32>
    %c1 = arith.constant 1 : index
    %c0_14 = arith.constant 0 : index
    %20 = vector.load %arg4[%c1, %c0_14] : memref<3x32xf32, #tpu.memory_space<vmem>>, vector<1x32xf32>
    %c2 = arith.constant 2 : index
    %c0_15 = arith.constant 0 : index
    %21 = vector.load %arg4[%c2, %c0_15] : memref<3x32xf32, #tpu.memory_space<vmem>>, vector<1x32xf32>
    %22 = arith.fptosi %19 : vector<1x32xf32> to vector<1x32xi32>
    %23 = arith.fptosi %21 : vector<1x32xf32> to vector<1x32xi32>
    %24 = arith.addf %9, %6 : vector<16x32xf32>
    %25 = arith.addf %10, %7 : vector<16x32xf32>
    %26 = math.floor %24 : vector<16x32xf32>
    %27 = math.floor %25 : vector<16x32xf32>
    %28 = arith.subf %24, %26 : vector<16x32xf32>
    %29 = arith.subf %25, %27 : vector<16x32xf32>
    %cst_16 = arith.constant 1.000000e+00 : f32
    %30 = vector.broadcast %cst_16 : f32 to vector<16x32xf32>
    %31 = arith.subf %30, %28 : vector<16x32xf32>
    %cst_17 = arith.constant 1.000000e+00 : f32
    %32 = vector.broadcast %cst_17 : f32 to vector<16x32xf32>
    %33 = arith.subf %32, %29 : vector<16x32xf32>
    %34 = arith.mulf %31, %33 : vector<16x32xf32>
    %cst_18 = arith.constant 1.000000e+00 : f32
    %35 = vector.broadcast %cst_18 : f32 to vector<16x32xf32>
    %36 = arith.subf %35, %29 : vector<16x32xf32>
    %37 = arith.mulf %28, %36 : vector<16x32xf32>
    %cst_19 = arith.constant 1.000000e+00 : f32
    %38 = vector.broadcast %cst_19 : f32 to vector<16x32xf32>
    %39 = arith.subf %38, %28 : vector<16x32xf32>
    %40 = arith.mulf %39, %29 : vector<16x32xf32>
    %41 = arith.mulf %28, %29 : vector<16x32xf32>
    %cst_20 = arith.constant 0.000000e+00 : f32
    %42 = vector.broadcast %cst_20 : f32 to vector<16x32xf32>
    %43 = arith.addf %26, %42 : vector<16x32xf32>
    %cst_21 = arith.constant 0.000000e+00 : f32
    %44 = vector.broadcast %cst_21 : f32 to vector<16x32xf32>
    %45 = arith.addf %27, %44 : vector<16x32xf32>
    %cst_22 = arith.constant 0.000000e+00 : f32
    %46 = vector.broadcast %cst_22 : f32 to vector<16x32xf32>
    %47 = arith.cmpf oge, %43, %46 : vector<16x32xf32>
    %cst_23 = arith.constant 1.000000e+00 : f32
    %48 = vector.broadcast %cst_23 : f32 to vector<1x32xf32>
    %49 = arith.subf %19, %48 : vector<1x32xf32>
    %50 = vector.broadcast %49 : vector<1x32xf32> to vector<16x32xf32>
    %51 = arith.cmpf ole, %43, %50 : vector<16x32xf32>
    %52 = arith.andi %47, %51 : vector<16x32xi1>
    %cst_24 = arith.constant 0.000000e+00 : f32
    %53 = vector.broadcast %cst_24 : f32 to vector<16x32xf32>
    %54 = arith.cmpf oge, %45, %53 : vector<16x32xf32>
    %55 = arith.andi %52, %54 : vector<16x32xi1>
    %cst_25 = arith.constant 1.000000e+00 : f32
    %56 = vector.broadcast %cst_25 : f32 to vector<1x32xf32>
    %57 = arith.subf %20, %56 : vector<1x32xf32>
    %58 = vector.broadcast %57 : vector<1x32xf32> to vector<16x32xf32>
    %59 = arith.cmpf ole, %45, %58 : vector<16x32xf32>
    %60 = arith.andi %55, %59 : vector<16x32xi1>
    %cst_26 = arith.constant 1.000000e+00 : f32
    %61 = vector.broadcast %cst_26 : f32 to vector<1x32xf32>
    %62 = arith.subf %19, %61 : vector<1x32xf32>
    %cst_27 = arith.constant 0.000000e+00 : f32
    %63 = vector.broadcast %cst_27 : f32 to vector<16x32xf32>
    %64 = arith.maximumf %63, %43 : vector<16x32xf32>
    %65 = vector.broadcast %62 : vector<1x32xf32> to vector<16x32xf32>
    %66 = arith.minimumf %65, %64 : vector<16x32xf32>
    %67 = arith.fptosi %66 : vector<16x32xf32> to vector<16x32xi32>
    %cst_28 = arith.constant 1.000000e+00 : f32
    %68 = vector.broadcast %cst_28 : f32 to vector<1x32xf32>
    %69 = arith.subf %20, %68 : vector<1x32xf32>
    %cst_29 = arith.constant 0.000000e+00 : f32
    %70 = vector.broadcast %cst_29 : f32 to vector<16x32xf32>
    %71 = arith.maximumf %70, %45 : vector<16x32xf32>
    %72 = vector.broadcast %69 : vector<1x32xf32> to vector<16x32xf32>
    %73 = arith.minimumf %72, %71 : vector<16x32xf32>
    %74 = arith.fptosi %73 : vector<16x32xf32> to vector<16x32xi32>
    %75 = vector.broadcast %22 : vector<1x32xi32> to vector<16x32xi32>
    %76 = arith.muli %74, %75 : vector<16x32xi32>
    %77 = vector.broadcast %23 : vector<1x32xi32> to vector<16x32xi32>
    %78 = arith.addi %77, %76 : vector<16x32xi32>
    %79 = arith.addi %78, %67 : vector<16x32xi32>
    %80 = arith.mulf %34, %18 : vector<16x32xf32>
    %cst_30 = arith.constant 0.000000e+00 : f32
    %81 = vector.broadcast %cst_30 : f32 to vector<16x32xf32>
    %82 = arith.select %60, %80, %81 : vector<16x32xi1>, vector<16x32xf32>
    %cst_31 = arith.constant 1.000000e+00 : f32
    %83 = vector.broadcast %cst_31 : f32 to vector<16x32xf32>
    %84 = arith.addf %26, %83 : vector<16x32xf32>
    %cst_32 = arith.constant 0.000000e+00 : f32
    %85 = vector.broadcast %cst_32 : f32 to vector<16x32xf32>
    %86 = arith.addf %27, %85 : vector<16x32xf32>
    %cst_33 = arith.constant 0.000000e+00 : f32
    %87 = vector.broadcast %cst_33 : f32 to vector<16x32xf32>
    %88 = arith.cmpf oge, %84, %87 : vector<16x32xf32>
    %cst_34 = arith.constant 1.000000e+00 : f32
    %89 = vector.broadcast %cst_34 : f32 to vector<1x32xf32>
    %90 = arith.subf %19, %89 : vector<1x32xf32>
    %91 = vector.broadcast %90 : vector<1x32xf32> to vector<16x32xf32>
    %92 = arith.cmpf ole, %84, %91 : vector<16x32xf32>
    %93 = arith.andi %88, %92 : vector<16x32xi1>
    %cst_35 = arith.constant 0.000000e+00 : f32
    %94 = vector.broadcast %cst_35 : f32 to vector<16x32xf32>
    %95 = arith.cmpf oge, %86, %94 : vector<16x32xf32>
    %96 = arith.andi %93, %95 : vector<16x32xi1>
    %cst_36 = arith.constant 1.000000e+00 : f32
    %97 = vector.broadcast %cst_36 : f32 to vector<1x32xf32>
    %98 = arith.subf %20, %97 : vector<1x32xf32>
    %99 = vector.broadcast %98 : vector<1x32xf32> to vector<16x32xf32>
    %100 = arith.cmpf ole, %86, %99 : vector<16x32xf32>
    %101 = arith.andi %96, %100 : vector<16x32xi1>
    %cst_37 = arith.constant 1.000000e+00 : f32
    %102 = vector.broadcast %cst_37 : f32 to vector<1x32xf32>
    %103 = arith.subf %19, %102 : vector<1x32xf32>
    %cst_38 = arith.constant 0.000000e+00 : f32
    %104 = vector.broadcast %cst_38 : f32 to vector<16x32xf32>
    %105 = arith.maximumf %104, %84 : vector<16x32xf32>
    %106 = vector.broadcast %103 : vector<1x32xf32> to vector<16x32xf32>
    %107 = arith.minimumf %106, %105 : vector<16x32xf32>
    %108 = arith.fptosi %107 : vector<16x32xf32> to vector<16x32xi32>
    %cst_39 = arith.constant 1.000000e+00 : f32
    %109 = vector.broadcast %cst_39 : f32 to vector<1x32xf32>
    %110 = arith.subf %20, %109 : vector<1x32xf32>
    %cst_40 = arith.constant 0.000000e+00 : f32
    %111 = vector.broadcast %cst_40 : f32 to vector<16x32xf32>
    %112 = arith.maximumf %111, %86 : vector<16x32xf32>
    %113 = vector.broadcast %110 : vector<1x32xf32> to vector<16x32xf32>
    %114 = arith.minimumf %113, %112 : vector<16x32xf32>
    %115 = arith.fptosi %114 : vector<16x32xf32> to vector<16x32xi32>
    %116 = vector.broadcast %22 : vector<1x32xi32> to vector<16x32xi32>
    %117 = arith.muli %115, %116 : vector<16x32xi32>
    %118 = vector.broadcast %23 : vector<1x32xi32> to vector<16x32xi32>
    %119 = arith.addi %118, %117 : vector<16x32xi32>
    %120 = arith.addi %119, %108 : vector<16x32xi32>
    %121 = arith.mulf %37, %18 : vector<16x32xf32>
    %cst_41 = arith.constant 0.000000e+00 : f32
    %122 = vector.broadcast %cst_41 : f32 to vector<16x32xf32>
    %123 = arith.select %101, %121, %122 : vector<16x32xi1>, vector<16x32xf32>
    %cst_42 = arith.constant 0.000000e+00 : f32
    %124 = vector.broadcast %cst_42 : f32 to vector<16x32xf32>
    %125 = arith.addf %26, %124 : vector<16x32xf32>
    %cst_43 = arith.constant 1.000000e+00 : f32
    %126 = vector.broadcast %cst_43 : f32 to vector<16x32xf32>
    %127 = arith.addf %27, %126 : vector<16x32xf32>
    %cst_44 = arith.constant 0.000000e+00 : f32
    %128 = vector.broadcast %cst_44 : f32 to vector<16x32xf32>
    %129 = arith.cmpf oge, %125, %128 : vector<16x32xf32>
    %cst_45 = arith.constant 1.000000e+00 : f32
    %130 = vector.broadcast %cst_45 : f32 to vector<1x32xf32>
    %131 = arith.subf %19, %130 : vector<1x32xf32>
    %132 = vector.broadcast %131 : vector<1x32xf32> to vector<16x32xf32>
    %133 = arith.cmpf ole, %125, %132 : vector<16x32xf32>
    %134 = arith.andi %129, %133 : vector<16x32xi1>
    %cst_46 = arith.constant 0.000000e+00 : f32
    %135 = vector.broadcast %cst_46 : f32 to vector<16x32xf32>
    %136 = arith.cmpf oge, %127, %135 : vector<16x32xf32>
    %137 = arith.andi %134, %136 : vector<16x32xi1>
    %cst_47 = arith.constant 1.000000e+00 : f32
    %138 = vector.broadcast %cst_47 : f32 to vector<1x32xf32>
    %139 = arith.subf %20, %138 : vector<1x32xf32>
    %140 = vector.broadcast %139 : vector<1x32xf32> to vector<16x32xf32>
    %141 = arith.cmpf ole, %127, %140 : vector<16x32xf32>
    %142 = arith.andi %137, %141 : vector<16x32xi1>
    %cst_48 = arith.constant 1.000000e+00 : f32
    %143 = vector.broadcast %cst_48 : f32 to vector<1x32xf32>
    %144 = arith.subf %19, %143 : vector<1x32xf32>
    %cst_49 = arith.constant 0.000000e+00 : f32
    %145 = vector.broadcast %cst_49 : f32 to vector<16x32xf32>
    %146 = arith.maximumf %145, %125 : vector<16x32xf32>
    %147 = vector.broadcast %144 : vector<1x32xf32> to vector<16x32xf32>
    %148 = arith.minimumf %147, %146 : vector<16x32xf32>
    %149 = arith.fptosi %148 : vector<16x32xf32> to vector<16x32xi32>
    %cst_50 = arith.constant 1.000000e+00 : f32
    %150 = vector.broadcast %cst_50 : f32 to vector<1x32xf32>
    %151 = arith.subf %20, %150 : vector<1x32xf32>
    %cst_51 = arith.constant 0.000000e+00 : f32
    %152 = vector.broadcast %cst_51 : f32 to vector<16x32xf32>
    %153 = arith.maximumf %152, %127 : vector<16x32xf32>
    %154 = vector.broadcast %151 : vector<1x32xf32> to vector<16x32xf32>
    %155 = arith.minimumf %154, %153 : vector<16x32xf32>
    %156 = arith.fptosi %155 : vector<16x32xf32> to vector<16x32xi32>
    %157 = vector.broadcast %22 : vector<1x32xi32> to vector<16x32xi32>
    %158 = arith.muli %156, %157 : vector<16x32xi32>
    %159 = vector.broadcast %23 : vector<1x32xi32> to vector<16x32xi32>
    %160 = arith.addi %159, %158 : vector<16x32xi32>
    %161 = arith.addi %160, %149 : vector<16x32xi32>
    %162 = arith.mulf %40, %18 : vector<16x32xf32>
    %cst_52 = arith.constant 0.000000e+00 : f32
    %163 = vector.broadcast %cst_52 : f32 to vector<16x32xf32>
    %164 = arith.select %142, %162, %163 : vector<16x32xi1>, vector<16x32xf32>
    %cst_53 = arith.constant 1.000000e+00 : f32
    %165 = vector.broadcast %cst_53 : f32 to vector<16x32xf32>
    %166 = arith.addf %26, %165 : vector<16x32xf32>
    %cst_54 = arith.constant 1.000000e+00 : f32
    %167 = vector.broadcast %cst_54 : f32 to vector<16x32xf32>
    %168 = arith.addf %27, %167 : vector<16x32xf32>
    %cst_55 = arith.constant 0.000000e+00 : f32
    %169 = vector.broadcast %cst_55 : f32 to vector<16x32xf32>
    %170 = arith.cmpf oge, %166, %169 : vector<16x32xf32>
    %cst_56 = arith.constant 1.000000e+00 : f32
    %171 = vector.broadcast %cst_56 : f32 to vector<1x32xf32>
    %172 = arith.subf %19, %171 : vector<1x32xf32>
    %173 = vector.broadcast %172 : vector<1x32xf32> to vector<16x32xf32>
    %174 = arith.cmpf ole, %166, %173 : vector<16x32xf32>
    %175 = arith.andi %170, %174 : vector<16x32xi1>
    %cst_57 = arith.constant 0.000000e+00 : f32
    %176 = vector.broadcast %cst_57 : f32 to vector<16x32xf32>
    %177 = arith.cmpf oge, %168, %176 : vector<16x32xf32>
    %178 = arith.andi %175, %177 : vector<16x32xi1>
    %cst_58 = arith.constant 1.000000e+00 : f32
    %179 = vector.broadcast %cst_58 : f32 to vector<1x32xf32>
    %180 = arith.subf %20, %179 : vector<1x32xf32>
    %181 = vector.broadcast %180 : vector<1x32xf32> to vector<16x32xf32>
    %182 = arith.cmpf ole, %168, %181 : vector<16x32xf32>
    %183 = arith.andi %178, %182 : vector<16x32xi1>
    %cst_59 = arith.constant 1.000000e+00 : f32
    %184 = vector.broadcast %cst_59 : f32 to vector<1x32xf32>
    %185 = arith.subf %19, %184 : vector<1x32xf32>
    %cst_60 = arith.constant 0.000000e+00 : f32
    %186 = vector.broadcast %cst_60 : f32 to vector<16x32xf32>
    %187 = arith.maximumf %186, %166 : vector<16x32xf32>
    %188 = vector.broadcast %185 : vector<1x32xf32> to vector<16x32xf32>
    %189 = arith.minimumf %188, %187 : vector<16x32xf32>
    %190 = arith.fptosi %189 : vector<16x32xf32> to vector<16x32xi32>
    %cst_61 = arith.constant 1.000000e+00 : f32
    %191 = vector.broadcast %cst_61 : f32 to vector<1x32xf32>
    %192 = arith.subf %20, %191 : vector<1x32xf32>
    %cst_62 = arith.constant 0.000000e+00 : f32
    %193 = vector.broadcast %cst_62 : f32 to vector<16x32xf32>
    %194 = arith.maximumf %193, %168 : vector<16x32xf32>
    %195 = vector.broadcast %192 : vector<1x32xf32> to vector<16x32xf32>
    %196 = arith.minimumf %195, %194 : vector<16x32xf32>
    %197 = arith.fptosi %196 : vector<16x32xf32> to vector<16x32xi32>
    %198 = vector.broadcast %22 : vector<1x32xi32> to vector<16x32xi32>
    %199 = arith.muli %197, %198 : vector<16x32xi32>
    %200 = vector.broadcast %23 : vector<1x32xi32> to vector<16x32xi32>
    %201 = arith.addi %200, %199 : vector<16x32xi32>
    %202 = arith.addi %201, %190 : vector<16x32xi32>
    %203 = arith.mulf %41, %18 : vector<16x32xf32>
    %cst_63 = arith.constant 0.000000e+00 : f32
    %204 = vector.broadcast %cst_63 : f32 to vector<16x32xf32>
    %205 = arith.select %183, %203, %204 : vector<16x32xi1>, vector<16x32xf32>
    %206 = tpu.concatenate %79, %120, %161, %202 in 1 : vector<16x32xi32>, vector<16x32xi32>, vector<16x32xi32>, vector<16x32xi32> -> vector<16x128xi32>
    %207 = tpu.concatenate %82, %123, %164, %205 in 1 : vector<16x32xf32>, vector<16x32xf32>, vector<16x32xf32>, vector<16x32xf32> -> vector<16x128xf32>
    %208 = tpu.iota {dimensions = array<i32: 2>} : vector<8x128x128xi32>
    %c0_64 = arith.constant 0 : index
    %c0_65 = arith.constant 0 : index
    %c0_66 = arith.constant 0 : index
    %209 = vector.load %arg2[%c0_64, %c0_65, %c0_66] : memref<2x128x32xf32, #tpu.memory_space<vmem>>, vector<1x128x32xf32>
    %210 = vector.shape_cast %209 : vector<1x128x32xf32> to vector<128x32xf32>
    %c0_67 = arith.constant 0 : index
    %c0_68 = arith.constant 0 : index
    %211 = vector.load %arg8[%c0_67, %c0_68] : memref<32x32xf32, #tpu.memory_space<vmem>>, vector<32x32xf32>
    %cst_69 = arith.constant dense<0.000000e+00> : vector<128x32xf32>
    %212 = tpu.matmul %210, %211, %cst_69 {dimension_numbers = #tpu.dot_dimension_numbers<[1], [0], [0], [1], [0, 0, 1, 1], [], []>} : vector<128x32xf32>, vector<32x32xf32>, vector<128x32xf32> -> vector<128x32xf32>
    %c0_70 = arith.constant 0 : index
    %c0_71 = arith.constant 0 : index
    %213 = vector.load %arg9[%c0_70, %c0_71] : memref<1x32xf32, #tpu.memory_space<vmem>>, vector<1x32xf32>
    %214 = vector.broadcast %213 : vector<1x32xf32> to vector<128x32xf32>
    %215 = arith.addf %212, %214 : vector<128x32xf32>
    %216 = vector.extract_strided_slice %206 {offsets = [0, 0], sizes = [8, 128], strides = [1, 1]} : vector<16x128xi32> to vector<8x128xi32>
    %217 = vector.shape_cast %216 : vector<8x128xi32> to vector<8x128x1xi32>
    %218 = vector.broadcast %217 : vector<8x128x1xi32> to vector<8x128x128xi32>
    %219 = arith.cmpi eq, %208, %218 : vector<8x128x128xi32>
    %220 = vector.extract_strided_slice %207 {offsets = [0, 0], sizes = [8, 128], strides = [1, 1]} : vector<16x128xf32> to vector<8x128xf32>
    %221 = vector.shape_cast %220 : vector<8x128xf32> to vector<8x128x1xf32>
    %cst_72 = arith.constant 0.000000e+00 : f32
    %222 = vector.shape_cast %221 : vector<8x128x1xf32> to vector<8x128x1xf32>
    %223 = vector.broadcast %222 : vector<8x128x1xf32> to vector<8x128x128xf32>
    %224 = vector.broadcast %cst_72 : f32 to vector<8x128x128xf32>
    %225 = arith.select %219, %223, %224 : vector<8x128x128xi1>, vector<8x128x128xf32>
    %226 = vector.shape_cast %225 : vector<8x128x128xf32> to vector<1024x128xf32>
    %c0_73 = arith.constant 0 : index
    %c0_74 = arith.constant 0 : index
    %227 = vector.load %arg6[%c0_73, %c0_74] : memref<32x1024xf32, #tpu.memory_space<vmem>>, vector<32x1024xf32>
    %cst_75 = arith.constant dense<0.000000e+00> : vector<32x128xf32>
    %228 = tpu.matmul %227, %226, %cst_75 {dimension_numbers = #tpu.dot_dimension_numbers<[1], [0], [0], [1], [0, 0, 1, 1], [], []>} : vector<32x1024xf32>, vector<1024x128xf32>, vector<32x128xf32> -> vector<32x128xf32>
    %cst_76 = arith.constant dense<0.000000e+00> : vector<32x32xf32>
    %229 = tpu.matmul %228, %215, %cst_76 {dimension_numbers = #tpu.dot_dimension_numbers<[1], [0], [0], [1], [0, 0, 1, 1], [], []>} : vector<32x128xf32>, vector<128x32xf32>, vector<32x32xf32> -> vector<32x32xf32>
    %c0_77 = arith.constant 0 : index
    %c0_78 = arith.constant 0 : index
    %230 = vector.load %arg7[%c0_77, %c0_78] : memref<32x32xf32, #tpu.memory_space<vmem>>, vector<32x32xf32>
    %231 = arith.mulf %229, %230 : vector<32x32xf32>
    %232 = vector.shape_cast %231 : vector<32x32xf32> to vector<4x8x32xf32>
    %cst_79 = arith.constant dense<0.000000e+00> : vector<8x32xf32>
    %233 = vector.multi_reduction <add>, %232, %cst_79 [0] : vector<4x8x32xf32> to vector<8x32xf32>
    %c1_80 = arith.constant 1 : index
    %c0_81 = arith.constant 0 : index
    %c0_82 = arith.constant 0 : index
    %234 = vector.load %arg2[%c1_80, %c0_81, %c0_82] : memref<2x128x32xf32, #tpu.memory_space<vmem>>, vector<1x128x32xf32>
    %235 = vector.shape_cast %234 : vector<1x128x32xf32> to vector<128x32xf32>
    %c0_83 = arith.constant 0 : index
    %c0_84 = arith.constant 0 : index
    %236 = vector.load %arg8[%c0_83, %c0_84] : memref<32x32xf32, #tpu.memory_space<vmem>>, vector<32x32xf32>
    %cst_85 = arith.constant dense<0.000000e+00> : vector<128x32xf32>
    %237 = tpu.matmul %235, %236, %cst_85 {dimension_numbers = #tpu.dot_dimension_numbers<[1], [0], [0], [1], [0, 0, 1, 1], [], []>} : vector<128x32xf32>, vector<32x32xf32>, vector<128x32xf32> -> vector<128x32xf32>
    %c0_86 = arith.constant 0 : index
    %c0_87 = arith.constant 0 : index
    %238 = vector.load %arg9[%c0_86, %c0_87] : memref<1x32xf32, #tpu.memory_space<vmem>>, vector<1x32xf32>
    %239 = vector.broadcast %238 : vector<1x32xf32> to vector<128x32xf32>
    %240 = arith.addf %237, %239 : vector<128x32xf32>
    %241 = vector.extract_strided_slice %206 {offsets = [8, 0], sizes = [8, 128], strides = [1, 1]} : vector<16x128xi32> to vector<8x128xi32>
    %242 = vector.shape_cast %241 : vector<8x128xi32> to vector<8x128x1xi32>
    %243 = vector.broadcast %242 : vector<8x128x1xi32> to vector<8x128x128xi32>
    %244 = arith.cmpi eq, %208, %243 : vector<8x128x128xi32>
    %245 = vector.extract_strided_slice %207 {offsets = [8, 0], sizes = [8, 128], strides = [1, 1]} : vector<16x128xf32> to vector<8x128xf32>
    %246 = vector.shape_cast %245 : vector<8x128xf32> to vector<8x128x1xf32>
    %cst_88 = arith.constant 0.000000e+00 : f32
    %247 = vector.shape_cast %246 : vector<8x128x1xf32> to vector<8x128x1xf32>
    %248 = vector.broadcast %247 : vector<8x128x1xf32> to vector<8x128x128xf32>
    %249 = vector.broadcast %cst_88 : f32 to vector<8x128x128xf32>
    %250 = arith.select %244, %248, %249 : vector<8x128x128xi1>, vector<8x128x128xf32>
    %251 = vector.shape_cast %250 : vector<8x128x128xf32> to vector<1024x128xf32>
    %c0_89 = arith.constant 0 : index
    %c0_90 = arith.constant 0 : index
    %252 = vector.load %arg6[%c0_89, %c0_90] : memref<32x1024xf32, #tpu.memory_space<vmem>>, vector<32x1024xf32>
    %cst_91 = arith.constant dense<0.000000e+00> : vector<32x128xf32>
    %253 = tpu.matmul %252, %251, %cst_91 {dimension_numbers = #tpu.dot_dimension_numbers<[1], [0], [0], [1], [0, 0, 1, 1], [], []>} : vector<32x1024xf32>, vector<1024x128xf32>, vector<32x128xf32> -> vector<32x128xf32>
    %cst_92 = arith.constant dense<0.000000e+00> : vector<32x32xf32>
    %254 = tpu.matmul %253, %240, %cst_92 {dimension_numbers = #tpu.dot_dimension_numbers<[1], [0], [0], [1], [0, 0, 1, 1], [], []>} : vector<32x128xf32>, vector<128x32xf32>, vector<32x32xf32> -> vector<32x32xf32>
    %c0_93 = arith.constant 0 : index
    %c0_94 = arith.constant 0 : index
    %255 = vector.load %arg7[%c0_93, %c0_94] : memref<32x32xf32, #tpu.memory_space<vmem>>, vector<32x32xf32>
    %256 = arith.mulf %254, %255 : vector<32x32xf32>
    %257 = vector.shape_cast %256 : vector<32x32xf32> to vector<4x8x32xf32>
    %cst_95 = arith.constant dense<0.000000e+00> : vector<8x32xf32>
    %258 = vector.multi_reduction <add>, %257, %cst_95 [0] : vector<4x8x32xf32> to vector<8x32xf32>
    %259 = tpu.concatenate %233, %258 in 0 : vector<8x32xf32>, vector<8x32xf32> -> vector<16x32xf32>
    %c0_96 = arith.constant 0 : index
    %c0_97 = arith.constant 0 : index
    %260 = vector.load %arg12[%c0_96, %c0_97] : memref<32x32xf32, #tpu.memory_space<vmem>>, vector<32x32xf32>
    %cst_98 = arith.constant dense<0.000000e+00> : vector<16x32xf32>
    %261 = tpu.matmul %259, %260, %cst_98 {dimension_numbers = #tpu.dot_dimension_numbers<[1], [0], [0], [1], [0, 0, 1, 1], [], []>} : vector<16x32xf32>, vector<32x32xf32>, vector<16x32xf32> -> vector<16x32xf32>
    %c0_99 = arith.constant 0 : index
    %c0_100 = arith.constant 0 : index
    %262 = vector.load %arg13[%c0_99, %c0_100] : memref<1x32xf32, #tpu.memory_space<vmem>>, vector<1x32xf32>
    %263 = vector.broadcast %262 : vector<1x32xf32> to vector<16x32xf32>
    %264 = arith.addf %261, %263 : vector<16x32xf32>
    %265 = arith.addf %264, %0 : vector<16x32xf32>
    %c0_101 = arith.constant 0 : index
    %c0_102 = arith.constant 0 : index
    %266 = vector.load %arg14[%c0_101, %c0_102] : memref<16x32xf32, #tpu.memory_space<vmem>>, vector<16x32xf32>
    tpu.vector_store %arg14[%c0_101, %c0_102], %265 {strides = array<i32>} : memref<16x32xf32, #tpu.memory_space<vmem>>, vector<16x32xf32>,
    return
  }
  func.func @transform_0(%arg0: i32) -> (i32, i32) {
    %c0_i32 = arith.constant 0 : i32
    %c0_i32_0 = arith.constant 0 : i32
    %c0_i32_1 = arith.constant 0 : i32
    return %c0_i32, %c0_i32_0 : i32, i32
  }
  func.func @transform_1(%arg0: i32) -> (i32, i32, i32) {
    %c0_i32 = arith.constant 0 : i32
    %c0_i32_0 = arith.constant 0 : i32
    %c0_i32_1 = arith.constant 0 : i32
    %c0_i32_2 = arith.constant 0 : i32
    return %c0_i32, %c0_i32_0, %c0_i32_1 : i32, i32, i32
  }
  func.func @transform_2(%arg0: i32) -> (i32, i32) {
    %c0_i32 = arith.constant 0 : i32
    %c0_i32_0 = arith.constant 0 : i32
    %c0_i32_1 = arith.constant 0 : i32
    return %c0_i32, %c0_i32_0 : i32, i32
  }
  func.func @transform_3(%arg0: i32) -> (i32, i32) {
    %c0_i32 = arith.constant 0 : i32
    %c0_i32_0 = arith.constant 0 : i32
    %c0_i32_1 = arith.constant 0 : i32
    return %c0_i32, %c0_i32_0 : i32, i32
  }
  func.func @transform_4(%arg0: i32) -> (i32, i32) {
    %c0_i32 = arith.constant 0 : i32
    %c0_i32_0 = arith.constant 0 : i32
    %c0_i32_1 = arith.constant 0 : i32
    return %c0_i32, %c0_i32_0 : i32, i32
  }
  func.func @transform_5(%arg0: i32) -> (i32, i32) {
    %c0_i32 = arith.constant 0 : i32
    %c0_i32_0 = arith.constant 0 : i32
    %c0_i32_1 = arith.constant 0 : i32
    return %c0_i32, %c0_i32_0 : i32, i32
  }
  func.func @transform_6(%arg0: i32) -> (i32, i32) {
    %c0_i32 = arith.constant 0 : i32
    %c0_i32_0 = arith.constant 0 : i32
    %c0_i32_1 = arith.constant 0 : i32
    return %c0_i32, %c0_i32_0 : i32, i32
  }
  func.func @transform_7(%arg0: i32) -> (i32, i32) {
    %c0_i32 = arith.constant 0 : i32
    %c0_i32_0 = arith.constant 0 : i32
    %c0_i32_1 = arith.constant 0 : i32
    return %c0_i32, %c0_i32_0 : i32, i32
  }
  func.func @transform_8(%arg0: i32) -> (i32, i32) {
    %c0_i32 = arith.constant 0 : i32
    %c0_i32_0 = arith.constant 0 : i32
    %c0_i32_1 = arith.constant 0 : i32
    return %c0_i32, %c0_i32_0 : i32, i32
  }
  func.func @transform_9(%arg0: i32) -> (i32, i32) {
    %c0_i32 = arith.constant 0 : i32
    %c0_i32_0 = arith.constant 0 : i32
    %c0_i32_1 = arith.constant 0 : i32
    return %c0_i32, %c0_i32_0 : i32, i32
  }
  func.func @transform_10(%arg0: i32) -> (i32, i32) {
    %c0_i32 = arith.constant 0 : i32
    %c0_i32_0 = arith.constant 0 : i32
    %c0_i32_1 = arith.constant 0 : i32
    return %c0_i32, %c0_i32_0 : i32, i32
  }
  func.func @transform_11(%arg0: i32) -> (i32, i32) {
    %c0_i32 = arith.constant 0 : i32
    %c0_i32_0 = arith.constant 0 : i32
    %c0_i32_1 = arith.constant 0 : i32
    return %c0_i32, %c0_i32_0 : i32, i32
  }
  func.func @transform_12(%arg0: i32) -> (i32, i32) {
    %c0_i32 = arith.constant 0 : i32
    %c0_i32_0 = arith.constant 0 : i32
    %c0_i32_1 = arith.constant 0 : i32
    return %c0_i32, %c0_i32_0 : i32, i32
  }
  func.func @transform_13(%arg0: i32) -> (i32, i32) {
    %c0_i32 = arith.constant 0 : i32
    %c0_i32_0 = arith.constant 0 : i32
    %c0_i32_1 = arith.constant 0 : i32
    return %c0_i32, %c0_i32_0 : i32, i32
  }
}

</mosaic_0001>

<llo_original>
// kernel: tpu_custom_call.1
$region0: #{tpu_custom_call.1}
  #allocation0 [shape = 'u32[]', space=smem, size = 0x4, offset = 0x4, fixed_abs, tag = 'smem constant byte address 0x4 - core index']
  #allocation1 [shape = 'u32[144,128]{1,0:T(1,128)}', space=vmem, size = 0x12000, scoped, tag = 'internal scratch']
  %s0 = inlined_call_operand.hbm [shape: f32[16,32], index: 0, kind: input, shape index: {}]
  %s1 = inlined_call_operand.vmem [shape: f32[2,128,32], index: 1, kind: input, shape index: {}]
  %s2 = inlined_call_operand.hbm [shape: f32[16,64], index: 2, kind: input, shape index: {}]
  %s3 = inlined_call_operand.hbm [shape: f32[3,32], index: 3, kind: input, shape index: {}]
  %s4 = inlined_call_operand.vmem [shape: f32[32,32], index: 4, kind: input, shape index: {}]
  %s5 = inlined_call_operand.vmem [shape: f32[32,1024], index: 5, kind: input, shape index: {}]
  %s6 = inlined_call_operand.vmem [shape: f32[32,32], index: 6, kind: input, shape index: {}]
  %s7 = inlined_call_operand.hbm [shape: f32[32,32], index: 7, kind: input, shape index: {}]
  %s8 = inlined_call_operand.vmem [shape: f32[1,32], index: 8, kind: input, shape index: {}]
  %s9 = inlined_call_operand.vmem [shape: f32[32,96], index: 9, kind: input, shape index: {}]
  %s10 = inlined_call_operand.vmem [shape: f32[1,96], index: 10, kind: input, shape index: {}]
  %s11 = inlined_call_operand.hbm [shape: f32[32,32], index: 11, kind: input, shape index: {}]
  %s12 = inlined_call_operand.vmem [shape: f32[1,32], index: 12, kind: input, shape index: {}]
  %s13 = inlined_call_operand.hbm [shape: f32[16,32], index: 13, kind: output, shape index: {}]
  %s14 = sld [smem:[#allocation0]]
  $region82: #{tpu_custom_call.1} parent=0
    _
  %s16 = ssub.s32 1, %s14
  %s17 = scalar_select 0, %s16, %s14
  $region1: #{tpu_custom_call.1} parent=0
    #allocation2 [shape = 'u8[8192]{0}', space=vmem, size = 0x2000, scoped, tag = 'input window, operand 0, single buffered']
    #allocation3 [shape = 's32[1]{0}', space=sflag, size = 0x4, scoped, tag = 'scoped memory for tpu_custom_call.1']
    #allocation4 [shape = 's32[1]{0}', space=sflag, size = 0x4, scoped, tag = 'scoped memory for tpu_custom_call.1']
    #allocation5 [shape = 'u8[8192]{0}', space=vmem, size = 0x2000, scoped, tag = 'input window, operand 2, single buffered']
    #allocation6 [shape = 's32[1]{0}', space=sflag, size = 0x4, scoped, tag = 'scoped memory for tpu_custom_call.1']
    #allocation7 [shape = 'u8[2048]{0}', space=vmem, size = 0x800, scoped, tag = 'input window, operand 3, single buffered']
    #allocation8 [shape = 'u8[16384]{0}', space=vmem, size = 0x4000, scoped, tag = 'input window, operand 7, single buffered']
    #allocation9 [shape = 's32[1]{0}', space=sflag, size = 0x4, scoped, tag = 'scoped memory for tpu_custom_call.1']
    #allocation10 [shape = 'u8[16384]{0}', space=vmem, size = 0x4000, scoped, tag = 'input window, operand 11, single buffered']
    #allocation11 [shape = 'u8[8192]{0}', space=vmem, size = 0x2000, scoped, tag = 'output window, operand 0, single buffered']
    %18 = vsyncpa [#allocation3], 0
    %19 = vsyncpa [#allocation6], 0
    %20 = vsyncpa [#allocation9], 0
    %21 = vsyncpa [#allocation4], 0
    // Predicated region
    $region2: #{tpu_custom_call.1} parent=1 // pred_check
      _
    $region3: #{tpu_custom_call.1} parent=1 // pred_check_branch
      %23 = sbr.rel (0) target = $region5
    $region4: #{tpu_custom_call.1} parent=1 // pred_region
      %s25 = ssub.s32 256, 256
      %26 = vsyncadd [#allocation3], %s25
      %s27 = sshll.u32 [#allocation2], 4
      %s28 = int_to_ptr.vmem [resolvable:$true] %s27
      %33 = dma.hbm_to_vmem [thread:$0]  %s0, 256, %s28, [#allocation3], 128, 128, 8
    $region5: #{tpu_custom_call.1} parent=1 // pred_fallthru
      _
    // Predicated region
    $region6: #{tpu_custom_call.1} parent=1 // pred_check
      _
    $region7: #{tpu_custom_call.1} parent=1 // pred_check_branch
      %35 = sbr.rel (0) target = $region9
    $region8: #{tpu_custom_call.1} parent=1 // pred_region
      _
    $region9: #{tpu_custom_call.1} parent=1 // pred_fallthru
      _
    // Predicated region
    $region10: #{tpu_custom_call.1} parent=1 // pred_check
      _
    $region11: #{tpu_custom_call.1} parent=1 // pred_check_branch
      %37 = sbr.rel (0) target = $region13
    $region12: #{tpu_custom_call.1} parent=1 // pred_region
      %s39 = ssub.s32 256, 256
      %40 = vsyncadd [#allocation6], %s39
      %s41 = sshll.u32 [#allocation5], 4
      %s42 = int_to_ptr.vmem [resolvable:$true] %s41
      %47 = dma.hbm_to_vmem [thread:$0]  %s2, 256, %s42, [#allocation6], 128, 128, 8
    $region13: #{tpu_custom_call.1} parent=1 // pred_fallthru
      _
    // Predicated region
    $region14: #{tpu_custom_call.1} parent=1 // pred_check
      _
    $region15: #{tpu_custom_call.1} parent=1 // pred_check_branch
      %49 = sbr.rel (0) target = $region17
    $region16: #{tpu_custom_call.1} parent=1 // pred_region
      %s51 = ssub.s32 64, 64
      %52 = vsyncadd [#allocation6], %s51
      %s54 = sshll.u32 [#allocation7], 4
      %s55 = int_to_ptr.vmem [resolvable:$true] %s54
      %57 = dma.hbm_to_vmem [thread:$0]  %s3, 64, %s55, [#allocation6]
    $region17: #{tpu_custom_call.1} parent=1 // pred_fallthru
      _
    // Predicated region
    $region18: #{tpu_custom_call.1} parent=1 // pred_check
      _
    $region19: #{tpu_custom_call.1} parent=1 // pred_check_branch
      %59 = sbr.rel (0) target = $region21
    $region20: #{tpu_custom_call.1} parent=1 // pred_region
      _
    $region21: #{tpu_custom_call.1} parent=1 // pred_fallthru
      _
    // Predicated region
    $region22: #{tpu_custom_call.1} parent=1 // pred_check
      _
    $region23: #{tpu_custom_call.1} parent=1 // pred_check_branch
      %61 = sbr.rel (0) target = $region25
    $region24: #{tpu_custom_call.1} parent=1 // pred_region
      _
    $region25: #{tpu_custom_call.1} parent=1 // pred_fallthru
      _
    // Predicated region
    $region26: #{tpu_custom_call.1} parent=1 // pred_check
      _
    $region27: #{tpu_custom_call.1} parent=1 // pred_check_branch
      %63 = sbr.rel (0) target = $region29
    $region28: #{tpu_custom_call.1} parent=1 // pred_region
      _
    $region29: #{tpu_custom_call.1} parent=1 // pred_fallthru
      _
    // Predicated region
    $region30: #{tpu_custom_call.1} parent=1 // pred_check
      _
    $region31: #{tpu_custom_call.1} parent=1 // pred_check_branch
      %65 = sbr.rel (0) target = $region33
    $region32: #{tpu_custom_call.1} parent=1 // pred_region
      %s67 = ssub.s32 512, 512
      %68 = vsyncadd [#allocation9], %s67
      %s69 = sshll.u32 [#allocation8], 4
      %s70 = int_to_ptr.vmem [resolvable:$true] %s69
      %75 = dma.hbm_to_vmem [thread:$0]  %s7, 512, %s70, [#allocation9], 128, 128, 8
    $region33: #{tpu_custom_call.1} parent=1 // pred_fallthru
      _
    // Predicated region
    $region34: #{tpu_custom_call.1} parent=1 // pred_check
      _
    $region35: #{tpu_custom_call.1} parent=1 // pred_check_branch
      %77 = sbr.rel (0) target = $region37
    $region36: #{tpu_custom_call.1} parent=1 // pred_region
      _
    $region37: #{tpu_custom_call.1} parent=1 // pred_fallthru
      _
    // Predicated region
    $region38: #{tpu_custom_call.1} parent=1 // pred_check
      _
    $region39: #{tpu_custom_call.1} parent=1 // pred_check_branch
      %79 = sbr.rel (0) target = $region41
    $region40: #{tpu_custom_call.1} parent=1 // pred_region
      _
    $region41: #{tpu_custom_call.1} parent=1 // pred_fallthru
      _
    // Predicated region
    $region42: #{tpu_custom_call.1} parent=1 // pred_check
      _
    $region43: #{tpu_custom_call.1} parent=1 // pred_check_branch
      %81 = sbr.rel (0) target = $region45
    $region44: #{tpu_custom_call.1} parent=1 // pred_region
      _
    $region45: #{tpu_custom_call.1} parent=1 // pred_fallthru
      _
    // Predicated region
    $region46: #{tpu_custom_call.1} parent=1 // pred_check
      _
    $region47: #{tpu_custom_call.1} parent=1 // pred_check_branch
      %83 = sbr.rel (0) target = $region49
    $region48: #{tpu_custom_call.1} parent=1 // pred_region
      %s85 = ssub.s32 512, 512
      %86 = vsyncadd [#allocation9], %s85
      %s87 = sshll.u32 [#allocation10], 4
      %s88 = int_to_ptr.vmem [resolvable:$true] %s87
      %93 = dma.hbm_to_vmem [thread:$0]  %s11, 512, %s88, [#allocation9], 128, 128, 8
    $region49: #{tpu_custom_call.1} parent=1 // pred_fallthru
      _
    // Predicated region
    $region50: #{tpu_custom_call.1} parent=1 // pred_check
      _
    $region51: #{tpu_custom_call.1} parent=1 // pred_check_branch
      %95 = sbr.rel (0) target = $region53
    $region52: #{tpu_custom_call.1} parent=1 // pred_region
      _
    $region53: #{tpu_custom_call.1} parent=1 // pred_fallthru
      _
    // Predicated region
    $region54: #{tpu_custom_call.1} parent=1 // pred_check
      _
    $region55: #{tpu_custom_call.1} parent=1 // pred_check_branch
      %97 = sbr.rel (0) target = $region57
    $region56: #{tpu_custom_call.1} parent=1 // pred_region
      %98 = dma.done [#allocation3], 256
    $region57: #{tpu_custom_call.1} parent=1 // pred_fallthru
      _
    // Predicated region
    $region58: #{tpu_custom_call.1} parent=1 // pred_check
      _
    $region59: #{tpu_custom_call.1} parent=1 // pred_check_branch
      %100 = sbr.rel (0) target = $region61
    $region60: #{tpu_custom_call.1} parent=1 // pred_region
      %101 = dma.done [#allocation6], 256
    $region61: #{tpu_custom_call.1} parent=1 // pred_fallthru
      _
    // Predicated region
    $region62: #{tpu_custom_call.1} parent=1 // pred_check
      _
    $region63: #{tpu_custom_call.1} parent=1 // pred_check_branch
      %103 = sbr.rel (0) target = $region65
    $region64: #{tpu_custom_call.1} parent=1 // pred_region
      %104 = dma.done [#allocation6], 64
    $region65: #{tpu_custom_call.1} parent=1 // pred_fallthru
      _
    // Predicated region
    $region66: #{tpu_custom_call.1} parent=1 // pred_check
      _
    $region67: #{tpu_custom_call.1} parent=1 // pred_check_branch
      %106 = sbr.rel (0) target = $region69
    $region68: #{tpu_custom_call.1} parent=1 // pred_region
      %107 = dma.done [#allocation9], 512
    $region69: #{tpu_custom_call.1} parent=1 // pred_fallthru
      _
    // Predicated region
    $region70: #{tpu_custom_call.1} parent=1 // pred_check
      _
    $region71: #{tpu_custom_call.1} parent=1 // pred_check_branch
      %109 = sbr.rel (0) target = $region73
    $region72: #{tpu_custom_call.1} parent=1 // pred_region
      %110 = dma.done [#allocation9], 512
    $region73: #{tpu_custom_call.1} parent=1 // pred_fallthru
      _
    %v111 = vld [vmem:[#allocation2] sm:$0xff]
    %v112 = vld [vmem:[#allocation2 + $0x8] sm:$0xff]
    %v113 = vld [vmem:[%s9] sm:$0xff]
    %v114 = vld [vmem:[%s9 + $0x8] sm:$0xff]
    %v115 = vld [vmem:[%s9 + $0x10] sm:$0xff]
    %v116 = vld [vmem:[%s9 + $0x18] sm:$0xff]
    %v117 = vld [vmem:[%s10] sm:$0x1]
    %v119 = vlaneseq
    %v120 = vshrl.u32 %v119, 7
    %v121 = vsub.s32 0, %v120
    %v122 = vrot.slane %v117, %v121
    %vm124 = vcmask 261120
    %v126 = vsel %vm124, %v111, 0
    %v129 = vsel %vm124, %v112, 0
    %131 = vmatprep.subr.mxu0 0.0
    %132 = vmatpush1.msra.mxu0 %v113
    %133 = vmatprep.subr.mxu0 0.0
    %134 = vmatpush1.msra.mxu0 %v114
    %135 = vmatprep.subr.mxu0 0.0
    %136 = vmatpush1.msra.mxu0 %v115
    %137 = vmatprep.subr.mxu0 0.0
    %138 = vmatpush1.msra.mxu0 %v116
    %139 = vmatprep.subr.mxu0 0.0
    %140 = vmatpush1.msra.mxu0 0.0
    %141 = vmatprep.subr.mxu0 0.0
    %142 = vmatpush1.msra.mxu0 0.0
    %143 = vmatprep.subr.mxu0 0.0
    %144 = vmatpush1.msra.mxu0 0.0
    %145 = vmatprep.subr.mxu0 0.0
    %146 = vmatpush1.msra.mxu0 0.0
    %147 = vmatprep.subr.mxu0 0.0
    %148 = vmatpush1.msra.mxu0 0.0
    %149 = vmatprep.subr.mxu0 0.0
    %150 = vmatpush1.msra.mxu0 0.0
    %151 = vmatprep.subr.mxu0 0.0
    %152 = vmatpush1.msra.mxu0 0.0
    %153 = vmatprep.subr.mxu0 0.0
    %154 = vmatpush1.msra.mxu0 0.0
    %155 = vmatprep.subr.mxu0 0.0
    %156 = vmatpush1.msra.mxu0 0.0
    %157 = vmatprep.subr.mxu0 0.0
    %158 = vmatpush1.msra.mxu0 0.0
    %159 = vmatprep.subr.mxu0 0.0
    %160 = vmatpush1.msra.mxu0 0.0
    %161 = vmatprep.subr.mxu0 0.0
    %162 = vmatpush1.msra.mxu0 0.0
    %163 = vmatprep.subr.mxu0 0.0
    %164 = vmatpush1.msra.mxu0 0.0
    %165 = vmatprep.subr.mxu0 0.0
    %166 = vmatpush1.msra.mxu0 0.0
    %167 = vmatprep.subr.mxu0 0.0
    %168 = vmatpush1.msra.mxu0 0.0
    %169 = vmatprep.subr.mxu0 0.0
    %170 = vmatpush1.msra.mxu0 0.0
    %171 = vmatprep.subr.mxu0 0.0
    %172 = vmatpush1.msra.mxu0 0.0
    %173 = vmatprep.subr.mxu0 0.0
    %174 = vmatpush1.msra.mxu0 0.0
    %175 = vmatprep.subr.mxu0 0.0
    %176 = vmatpush1.msra.mxu0 0.0
    %177 = vmatprep.subr.mxu0 0.0
    %178 = vmatpush1.msra.mxu0 0.0
    %179 = vmatprep.subr.mxu0 0.0
    %180 = vmatpush1.msra.mxu0 0.0
    %181 = vmatprep.subr.mxu0 0.0
    %182 = vmatpush1.msra.mxu0 0.0
    %183 = vmatprep.subr.mxu0 0.0
    %184 = vmatpush1.msra.mxu0 0.0
    %185 = vmatprep.subr.mxu0 0.0
    %186 = vmatpush1.msra.mxu0 0.0
    %187 = vmatprep.subr.mxu0 0.0
    %188 = vmatpush1.msra.mxu0 0.0
    %189 = vmatprep.subr.mxu0 0.0
    %190 = vmatpush1.msra.mxu0 0.0
    %191 = vmatprep.subr.mxu0 0.0
    %192 = vmatpush1.msra.mxu0 0.0
    %193 = vmatprep.subr.mxu0 0.0
    %194 = vmatpush1.msra.mxu0 0.0
    %195 = vmatprep.mubr.f32.mxu0 0.0
    %196 = vmatmul.mubr.f32.gmra.mrb[0].mxu0 %v126
    %v197 = vpop.f32.mrb[0].mxu0
    %v198 = vadd.f32 %v122, %v197
    %v199 = vpop.f32.mrb[0].mxu0
    %200 = vmatprep.mubr.f32.mxu0 0.0
    %201 = vmatmul.mubr.f32.gmra.mrb[0].mxu0 %v129
    %v202 = vpop.f32.mrb[0].mxu0
    %v203 = vadd.f32 %v122, %v202
    %v204 = vpop.f32.mrb[0].mxu0
    %205 = vdwg.mxu0
    %v206 = vld [vmem:[#allocation5] sm:$0xff]
    %v207 = vld [vmem:[#allocation5 + $0x8] sm:$0xff]
    %vm208 = vcmask 785920
    %v209 = vsel %vm208, %v198, -inf
    %210 = vmax.xlane.f32.xlu0 %v209
    %v211 = vpop.xlane.xlu0 %210
    %v212 = vsel %vm208, %v203, -inf
    %213 = vmax.xlane.f32.xlu0 %v212
    %v214 = vpop.xlane.xlu0 %213
    %v215 = vsub.f32 %v198, %v211
    %v216 = vsub.f32 %v203, %v214
    %v217 = vmul.f32 %v215, 1.442695
    %v218 = vpow.pop %v217
    %v219 = vmul.f32 %v216, 1.442695
    %v220 = vpow.pop %v219
    %v221 = vld [vmem:[%s4] sm:$0xff]
    %v222 = vld [vmem:[%s4 + $0x8] sm:$0xff]
    %v223 = vld [vmem:[%s4 + $0x10] sm:$0xff]
    %v224 = vld [vmem:[%s4 + $0x18] sm:$0xff]
    %227 = vrot.lane.b32.xlu0 %v218, 64
    %v228 = vpop.permute.xlu0 %227
    %229 = vrot.lane.b32.xlu0 %v220, 64
    %v230 = vpop.permute.xlu0 %229
    %v231 = vsel %vm124, %v228, 0
    %v233 = vsel %vm124, %v230, 0
    %235 = vmatprep.subr.mxu0 0.0
    %236 = vmatpush1.msra.mxu0 %v221
    %237 = vmatprep.subr.mxu0 0.0
    %238 = vmatpush1.msra.mxu0 %v222
    %239 = vmatprep.subr.mxu0 0.0
    %240 = vmatpush1.msra.mxu0 %v223
    %241 = vmatprep.subr.mxu0 0.0
    %242 = vmatpush1.msra.mxu0 %v224
    %243 = vmatprep.subr.mxu0 0.0
    %244 = vmatpush1.msra.mxu0 0.0
    %245 = vmatprep.subr.mxu0 0.0
    %246 = vmatpush1.msra.mxu0 0.0
    %247 = vmatprep.subr.mxu0 0.0
    %248 = vmatpush1.msra.mxu0 0.0
    %249 = vmatprep.subr.mxu0 0.0
    %250 = vmatpush1.msra.mxu0 0.0
    %251 = vmatprep.subr.mxu0 0.0
    %252 = vmatpush1.msra.mxu0 0.0
    %253 = vmatprep.subr.mxu0 0.0
    %254 = vmatpush1.msra.mxu0 0.0
    %255 = vmatprep.subr.mxu0 0.0
    %256 = vmatpush1.msra.mxu0 0.0
    %257 = vmatprep.subr.mxu0 0.0
    %258 = vmatpush1.msra.mxu0 0.0
    %259 = vmatprep.subr.mxu0 0.0
    %260 = vmatpush1.msra.mxu0 0.0
    %261 = vmatprep.subr.mxu0 0.0
    %262 = vmatpush1.msra.mxu0 0.0
    %263 = vmatprep.subr.mxu0 0.0
    %264 = vmatpush1.msra.mxu0 0.0
    %265 = vmatprep.subr.mxu0 0.0
    %266 = vmatpush1.msra.mxu0 0.0
    %267 = vmatprep.subr.mxu0 0.0
    %268 = vmatpush1.msra.mxu0 0.0
    %269 = vmatprep.subr.mxu0 0.0
    %270 = vmatpush1.msra.mxu0 0.0
    %271 = vmatprep.subr.mxu0 0.0
    %272 = vmatpush1.msra.mxu0 0.0
    %273 = vmatprep.subr.mxu0 0.0
    %274 = vmatpush1.msra.mxu0 0.0
    %275 = vmatprep.subr.mxu0 0.0
    %276 = vmatpush1.msra.mxu0 0.0
    %277 = vmatprep.subr.mxu0 0.0
    %278 = vmatpush1.msra.mxu0 0.0
    %279 = vmatprep.subr.mxu0 0.0
    %280 = vmatpush1.msra.mxu0 0.0
    %281 = vmatprep.subr.mxu0 0.0
    %282 = vmatpush1.msra.mxu0 0.0
    %283 = vmatprep.subr.mxu0 0.0
    %284 = vmatpush1.msra.mxu0 0.0
    %285 = vmatprep.subr.mxu0 0.0
    %286 = vmatpush1.msra.mxu0 0.0
    %287 = vmatprep.subr.mxu0 0.0
    %288 = vmatpush1.msra.mxu0 0.0
    %289 = vmatprep.subr.mxu0 0.0
    %290 = vmatpush1.msra.mxu0 0.0
    %291 = vmatprep.subr.mxu0 0.0
    %292 = vmatpush1.msra.mxu0 0.0
    %293 = vmatprep.subr.mxu0 0.0
    %294 = vmatpush1.msra.mxu0 0.0
    %295 = vmatprep.subr.mxu0 0.0
    %296 = vmatpush1.msra.mxu0 0.0
    %297 = vmatprep.subr.mxu0 0.0
    %298 = vmatpush1.msra.mxu0 0.0
    %299 = vmatprep.mubr.f32.mxu0 0.0
    %300 = vmatmul.mubr.f32.gmra.mrb[0].mxu0 %v231
    %v301 = vpop.f32.mrb[0].mxu0
    %v302 = vadd.f32 0.0, %v301
    %v303 = vpop.f32.mrb[0].mxu0
    %304 = vmatprep.mubr.f32.mxu0 0.0
    %305 = vmatmul.mubr.f32.gmra.mrb[0].mxu0 %v233
    %v306 = vpop.f32.mrb[0].mxu0
    %v307 = vadd.f32 0.0, %v306
    %v308 = vpop.f32.mrb[0].mxu0
    %309 = vdwg.mxu0
    %312 = vrot.lane.b32.xlu0 %v302, 64
    %v313 = vpop.permute.xlu0 %312
    %314 = vrot.lane.b32.xlu0 %v307, 64
    %v315 = vpop.permute.xlu0 %314
    %v318 = vrcp.pop %v313
    %v319 = vmul.f32 %v218, %v318
    %v320 = vrcp.pop %v315
    %v321 = vmul.f32 %v220, %v320
    %v322 = vld [vmem:[#allocation7] sm:$0x1]
    %v323 = vld [vmem:[#allocation7 + $0x1] sm:$0x1]
    %v324 = vld [vmem:[#allocation7 + $0x2] sm:$0x1]
    %v325 = vcvt.f32.s32.to.zero.pseudo %v322
    %v326 = vcvt.f32.s32.to.zero.pseudo %v324
    %v327 = vadd.f32 %v206, %v198
    %v328 = vadd.f32 %v207, %v203
    %v329 = vfloor.f32 %v327
    %v330 = vfloor.f32 %v328
    %v331 = vsub.f32 %v327, %v329
    %v332 = vsub.f32 %v328, %v330
    %v333 = vsub.f32 1.0, %v331
    %v334 = vsub.f32 1.0, %v332
    %337 = vrot.lane.b32.xlu0 %v333, 96
    %v338 = vpop.permute.xlu0 %337
    %339 = vrot.lane.b32.xlu0 %v334, 96
    %v340 = vpop.permute.xlu0 %339
    %v343 = vmul.f32 %v333, %v338
    %v344 = vmul.f32 %v334, %v340
    %v345 = vmul.f32 %v331, %v338
    %v346 = vmul.f32 %v332, %v340
    %349 = vrot.lane.b32.xlu0 %v331, 96
    %v350 = vpop.permute.xlu0 %349
    %351 = vrot.lane.b32.xlu0 %v332, 96
    %v352 = vpop.permute.xlu0 %351
    %v355 = vmul.f32 %v333, %v350
    %v356 = vmul.f32 %v334, %v352
    %v357 = vmul.f32 %v331, %v350
    %v358 = vmul.f32 %v332, %v352
    %v359 = vadd.f32 %v329, 0.0
    %v360 = vadd.f32 %v330, 0.0
    %vm361 = vcmp.ge.f32.partialorder %v359, 0.0
    %vm362 = vcmp.ge.f32.partialorder %v360, 0.0
    %v363 = vsub.f32 %v322, 1.0
    %v364 = vlaneseq
    %v365 = vshrl.u32 %v364, 7
    %v366 = vsub.s32 0, %v365
    %v367 = vrot.slane %v363, %v366
    %vm368 = vcmp.le.f32.partialorder %v359, %v367
    %vm369 = vcmp.le.f32.partialorder %v360, %v367
    %vm370 = vmand %vm361, %vm368
    %vm371 = vmand %vm362, %vm369
    %v372 = vsel %vm361, 1, 0
    %v373 = vsel %vm362, 1, 0
    %374 = vrot.lane.b32.xlu0 %v372, 96
    %v375 = vpop.permute.xlu0 %374
    %376 = vrot.lane.b32.xlu0 %v373, 96
    %v377 = vpop.permute.xlu0 %376
    %vm378 = vcmp.ne.s32.totalorder %v375, 0
    %vm379 = vcmp.ne.s32.totalorder %v377, 0
    %vm380 = vmand %vm370, %vm378
    %vm381 = vmand %vm371, %vm379
    %v382 = vsub.f32 %v323, 1.0
    %v383 = vlaneseq
    %v384 = vshrl.u32 %v383, 7
    %v385 = vsub.s32 0, %v384
    %v386 = vrot.slane %v382, %v385
    %388 = vrot.lane.b32.xlu0 %v386, 32
    %v389 = vpop.permute.xlu0 %388
    %vm391 = vcmp.le.f32.partialorder %v359, %v389
    %vm392 = vcmp.le.f32.partialorder %v360, %v389
    %v393 = vsel %vm391, 1, 0
    %v394 = vsel %vm392, 1, 0
    %395 = vrot.lane.b32.xlu0 %v393, 96
    %v396 = vpop.permute.xlu0 %395
    %397 = vrot.lane.b32.xlu0 %v394, 96
    %v398 = vpop.permute.xlu0 %397
    %vm399 = vcmp.ne.s32.totalorder %v396, 0
    %vm400 = vcmp.ne.s32.totalorder %v398, 0
    %vm401 = vmand %vm380, %vm399
    %vm402 = vmand %vm381, %vm400
    %v403 = vmax.f32 %v359, 0.0
    %v404 = vmax.f32 %v360, 0.0
    %v405 = vmin.f32 %v367, %v403
    %v406 = vmin.f32 %v367, %v404
    %v407 = vcvt.f32.s32.to.zero.pseudo %v405
    %v408 = vcvt.f32.s32.to.zero.pseudo %v406
    %411 = vrot.lane.b32.xlu0 %v403, 96
    %v412 = vpop.permute.xlu0 %411
    %413 = vrot.lane.b32.xlu0 %v404, 96
    %v414 = vpop.permute.xlu0 %413
    %v417 = vmin.f32 %v386, %v412
    %v418 = vmin.f32 %v386, %v414
    %v419 = vcvt.f32.s32.to.zero.pseudo %v417
    %v420 = vcvt.f32.s32.to.zero.pseudo %v418
    %v421 = vlaneseq
    %v422 = vshrl.u32 %v421, 7
    %v423 = vsub.s32 0, %v422
    %v424 = vrot.slane %v325, %v423
    %v425 = vmul.u32 %v419, %v424
    %v426 = vmul.u32 %v420, %v424
    %v427 = vlaneseq
    %v428 = vshrl.u32 %v427, 7
    %v429 = vsub.s32 0, %v428
    %v430 = vrot.slane %v326, %v429
    %v431 = vadd.s32 %v430, %v425
    %v432 = vadd.s32 %v430, %v426
    %v433 = vadd.s32 %v431, %v407
    %v434 = vadd.s32 %v432, %v408
    %437 = vrot.lane.b32.xlu0 %v319, 64
    %v438 = vpop.permute.xlu0 %437
    %439 = vrot.lane.b32.xlu0 %v321, 64
    %v440 = vpop.permute.xlu0 %439
    %v443 = vmul.f32 %v343, %v438
    %v444 = vmul.f32 %v344, %v440
    %v445 = vsel %vm401, %v443, 0.0
    %v446 = vsel %vm402, %v444, 0.0
    %v447 = vadd.f32 %v329, 1.0
    %v448 = vadd.f32 %v330, 1.0
    %vm449 = vcmp.ge.f32.partialorder %v447, 0.0
    %vm450 = vcmp.ge.f32.partialorder %v448, 0.0
    %vm451 = vcmp.le.f32.partialorder %v447, %v367
    %vm452 = vcmp.le.f32.partialorder %v448, %v367
    %vm453 = vmand %vm449, %vm451
    %vm454 = vmand %vm450, %vm452
    %vm455 = vmand %vm453, %vm378
    %vm456 = vmand %vm454, %vm379
    %vm457 = vmand %vm455, %vm399
    %vm458 = vmand %vm456, %vm400
    %v459 = vmax.f32 %v447, 0.0
    %v460 = vmax.f32 %v448, 0.0
    %v461 = vmin.f32 %v367, %v459
    %v462 = vmin.f32 %v367, %v460
    %v463 = vcvt.f32.s32.to.zero.pseudo %v461
    %v464 = vcvt.f32.s32.to.zero.pseudo %v462
    %v465 = vadd.s32 %v431, %v463
    %v466 = vadd.s32 %v432, %v464
    %v467 = vmul.f32 %v345, %v438
    %v468 = vmul.f32 %v346, %v440
    %v469 = vsel %vm457, %v467, 0.0
    %v470 = vsel %vm458, %v468, 0.0
    %v471 = vsel %vm449, 1, 0
    %v472 = vsel %vm450, 1, 0
    %473 = vrot.lane.b32.xlu0 %v471, 96
    %v474 = vpop.permute.xlu0 %473
    %475 = vrot.lane.b32.xlu0 %v472, 96
    %v476 = vpop.permute.xlu0 %475
    %vm477 = vcmp.ne.s32.totalorder %v474, 0
    %vm478 = vcmp.ne.s32.totalorder %v476, 0
    %vm479 = vmand %vm370, %vm477
    %vm480 = vmand %vm371, %vm478
    %vm481 = vcmp.le.f32.partialorder %v447, %v389
    %vm482 = vcmp.le.f32.partialorder %v448, %v389
    %v483 = vsel %vm481, 1, 0
    %v484 = vsel %vm482, 1, 0
    %485 = vrot.lane.b32.xlu0 %v483, 96
    %v486 = vpop.permute.xlu0 %485
    %487 = vrot.lane.b32.xlu0 %v484, 96
    %v488 = vpop.permute.xlu0 %487
    %vm489 = vcmp.ne.s32.totalorder %v486, 0
    %vm490 = vcmp.ne.s32.totalorder %v488, 0
    %vm491 = vmand %vm479, %vm489
    %vm492 = vmand %vm480, %vm490
    %495 = vrot.lane.b32.xlu0 %v459, 96
    %v496 = vpop.permute.xlu0 %495
    %497 = vrot.lane.b32.xlu0 %v460, 96
    %v498 = vpop.permute.xlu0 %497
    %v501 = vmin.f32 %v386, %v496
    %v502 = vmin.f32 %v386, %v498
    %v503 = vcvt.f32.s32.to.zero.pseudo %v501
    %v504 = vcvt.f32.s32.to.zero.pseudo %v502
    %v505 = vmul.u32 %v503, %v424
    %v506 = vmul.u32 %v504, %v424
    %v507 = vadd.s32 %v430, %v505
    %v508 = vadd.s32 %v430, %v506
    %v509 = vadd.s32 %v507, %v407
    %v510 = vadd.s32 %v508, %v408
    %v511 = vmul.f32 %v355, %v438
    %v512 = vmul.f32 %v356, %v440
    %v513 = vsel %vm491, %v511, 0.0
    %v514 = vsel %vm492, %v512, 0.0
    %vm515 = vmand %vm453, %vm477
    %vm516 = vmand %vm454, %vm478
    %vm517 = vmand %vm515, %vm489
    %vm518 = vmand %vm516, %vm490
    %v519 = vadd.s32 %v507, %v463
    %v520 = vadd.s32 %v508, %v464
    %v521 = vmul.f32 %v357, %v438
    %v522 = vmul.f32 %v358, %v440
    %v523 = vsel %vm517, %v521, 0.0
    %v524 = vsel %vm518, %v522, 0.0
    %525 = vrot.lane.b32.xlu0 %v465, 32
    %v526 = vpop.permute.xlu0 %525
    %527 = vrot.lane.b32.xlu0 %v466, 32
    %v528 = vpop.permute.xlu0 %527
    %529 = vrot.lane.b32.xlu0 %v509, 64
    %v530 = vpop.permute.xlu0 %529
    %531 = vrot.lane.b32.xlu0 %v510, 64
    %v532 = vpop.permute.xlu0 %531
    %533 = vrot.lane.b32.xlu0 %v519, 96
    %v534 = vpop.permute.xlu0 %533
    %535 = vrot.lane.b32.xlu0 %v520, 96
    %v536 = vpop.permute.xlu0 %535
    %v537 = vsel %vm124, %v433, %v526
    %v538 = vsel %vm124, %v434, %v528
    %vm539 = vcmask 523264
    %v540 = vsel %vm539, %v537, %v530
    %v541 = vsel %vm539, %v538, %v532
    %vm542 = vcmask 785408
    %v543 = vsel %vm542, %v540, %v534
    %v544 = vsel %vm542, %v541, %v536
    %547 = vrot.lane.b32.xlu0 %v469, 32
    %v548 = vpop.permute.xlu0 %547
    %549 = vrot.lane.b32.xlu0 %v470, 32
    %v550 = vpop.permute.xlu0 %549
    %555 = vrot.lane.b32.xlu0 %v513, 64
    %v556 = vpop.permute.xlu0 %555
    %557 = vrot.lane.b32.xlu0 %v514, 64
    %v558 = vpop.permute.xlu0 %557
    %563 = vrot.lane.b32.xlu0 %v523, 96
    %v564 = vpop.permute.xlu0 %563
    %565 = vrot.lane.b32.xlu0 %v524, 96
    %v566 = vpop.permute.xlu0 %565
    %v569 = vsel %vm124, %v445, %v548
    %v570 = vsel %vm124, %v446, %v550
    %v571 = vsel %vm539, %v569, %v556
    %v572 = vsel %vm539, %v570, %v558
    %v573 = vsel %vm542, %v571, %v564
    %v574 = vsel %vm542, %v572, %v566
    %v575 = vlaneseq
    %v576 = vand.u32 %v575, 127
    %v577 = vld [vmem:[%s1] sm:$0xff]
    %v578 = vld [vmem:[%s1 + $0x8] sm:$0xff]
    %v579 = vld [vmem:[%s1 + $0x10] sm:$0xff]
    %v580 = vld [vmem:[%s1 + $0x18] sm:$0xff]
    %v581 = vld [vmem:[%s1 + $0x20] sm:$0xff]
    %v582 = vld [vmem:[%s1 + $0x28] sm:$0xff]
    %v583 = vld [vmem:[%s1 + $0x30] sm:$0xff]
    %v584 = vld [vmem:[%s1 + $0x38] sm:$0xff]
    %v585 = vld [vmem:[%s1 + $0x40] sm:$0xff]
    %v586 = vld [vmem:[%s1 + $0x48] sm:$0xff]
    %v587 = vld [vmem:[%s1 + $0x50] sm:$0xff]
    %v588 = vld [vmem:[%s1 + $0x58] sm:$0xff]
    %v589 = vld [vmem:[%s1 + $0x60] sm:$0xff]
    %v590 = vld [vmem:[%s1 + $0x68] sm:$0xff]
    %v591 = vld [vmem:[%s1 + $0x70] sm:$0xff]
    %v592 = vld [vmem:[%s1 + $0x78] sm:$0xff]
    %v593 = vld [vmem:[#allocation8] sm:$0xff]
    %v594 = vld [vmem:[#allocation8 + $0x8] sm:$0xff]
    %v595 = vld [vmem:[#allocation8 + $0x10] sm:$0xff]
    %v596 = vld [vmem:[#allocation8 + $0x18] sm:$0xff]
    %v597 = vld [vmem:[%s8] sm:$0x1]
    %v599 = vlaneseq
    %v600 = vshrl.u32 %v599, 7
    %v601 = vsub.s32 0, %v600
    %v602 = vrot.slane %v597, %v601
    %v605 = vsel %vm124, %v577, 0
    %v608 = vsel %vm124, %v578, 0
    %v611 = vsel %vm124, %v579, 0
    %v614 = vsel %vm124, %v580, 0
    %v617 = vsel %vm124, %v581, 0
    %v620 = vsel %vm124, %v582, 0
    %v623 = vsel %vm124, %v583, 0
    %v626 = vsel %vm124, %v584, 0
    %v629 = vsel %vm124, %v585, 0
    %v632 = vsel %vm124, %v586, 0
    %v635 = vsel %vm124, %v587, 0
    %v638 = vsel %vm124, %v588, 0
    %v641 = vsel %vm124, %v589, 0
    %v644 = vsel %vm124, %v590, 0
    %v647 = vsel %vm124, %v591, 0
    %v650 = vsel %vm124, %v592, 0
    %652 = vmatprep.subr.mxu0 0.0
    %653 = vmatpush1.msra.mxu0 %v593
    %654 = vmatprep.subr.mxu0 0.0
    %655 = vmatpush1.msra.mxu0 %v594
    %656 = vmatprep.subr.mxu0 0.0
    %657 = vmatpush1.msra.mxu0 %v595
    %658 = vmatprep.subr.mxu0 0.0
    %659 = vmatpush1.msra.mxu0 %v596
    %660 = vmatprep.subr.mxu0 0.0
    %661 = vmatpush1.msra.mxu0 0.0
    %662 = vmatprep.subr.mxu0 0.0
    %663 = vmatpush1.msra.mxu0 0.0
    %664 = vmatprep.subr.mxu0 0.0
    %665 = vmatpush1.msra.mxu0 0.0
    %666 = vmatprep.subr.mxu0 0.0
    %667 = vmatpush1.msra.mxu0 0.0
    %668 = vmatprep.subr.mxu0 0.0
    %669 = vmatpush1.msra.mxu0 0.0
    %670 = vmatprep.subr.mxu0 0.0
    %671 = vmatpush1.msra.mxu0 0.0
    %672 = vmatprep.subr.mxu0 0.0
    %673 = vmatpush1.msra.mxu0 0.0
    %674 = vmatprep.subr.mxu0 0.0
    %675 = vmatpush1.msra.mxu0 0.0
    %676 = vmatprep.subr.mxu0 0.0
    %677 = vmatpush1.msra.mxu0 0.0
    %678 = vmatprep.subr.mxu0 0.0
    %679 = vmatpush1.msra.mxu0 0.0
    %680 = vmatprep.subr.mxu0 0.0
    %681 = vmatpush1.msra.mxu0 0.0
    %682 = vmatprep.subr.mxu0 0.0
    %683 = vmatpush1.msra.mxu0 0.0
    %684 = vmatprep.subr.mxu0 0.0
    %685 = vmatpush1.msra.mxu0 0.0
    %686 = vmatprep.subr.mxu0 0.0
    %687 = vmatpush1.msra.mxu0 0.0
    %688 = vmatprep.subr.mxu0 0.0
    %689 = vmatpush1.msra.mxu0 0.0
    %690 = vmatprep.subr.mxu0 0.0
    %691 = vmatpush1.msra.mxu0 0.0
    %692 = vmatprep.subr.mxu0 0.0
    %693 = vmatpush1.msra.mxu0 0.0
    %694 = vmatprep.subr.mxu0 0.0
    %695 = vmatpush1.msra.mxu0 0.0
    %696 = vmatprep.subr.mxu0 0.0
    %697 = vmatpush1.msra.mxu0 0.0
    %698 = vmatprep.subr.mxu0 0.0
    %699 = vmatpush1.msra.mxu0 0.0
    %700 = vmatprep.subr.mxu0 0.0
    %701 = vmatpush1.msra.mxu0 0.0
    %702 = vmatprep.subr.mxu0 0.0
    %703 = vmatpush1.msra.mxu0 0.0
    %704 = vmatprep.subr.mxu0 0.0
    %705 = vmatpush1.msra.mxu0 0.0
    %706 = vmatprep.subr.mxu0 0.0
    %707 = vmatpush1.msra.mxu0 0.0
    %708 = vmatprep.subr.mxu0 0.0
    %709 = vmatpush1.msra.mxu0 0.0
    %710 = vmatprep.subr.mxu0 0.0
    %711 = vmatpush1.msra.mxu0 0.0
    %712 = vmatprep.subr.mxu0 0.0
    %713 = vmatpush1.msra.mxu0 0.0
    %714 = vmatprep.subr.mxu0 0.0
    %715 = vmatpush1.msra.mxu0 0.0
    %716 = vmatprep.mubr.f32.mxu0 0.0
    %717 = vmatmul.mubr.f32.gmra.mrb[0].mxu0 %v605
    %v718 = vpop.f32.mrb[0].mxu0
    %v719 = vadd.f32 %v602, %v718
    %v720 = vpop.f32.mrb[0].mxu0
    %721 = vmatprep.mubr.f32.mxu0 0.0
    %722 = vmatmul.mubr.f32.gmra.mrb[0].mxu0 %v608
    %v723 = vpop.f32.mrb[0].mxu0
    %v724 = vadd.f32 %v602, %v723
    %v725 = vpop.f32.mrb[0].mxu0
    %726 = vmatprep.mubr.f32.mxu0 0.0
    %727 = vmatmul.mubr.f32.gmra.mrb[0].mxu0 %v611
    %v728 = vpop.f32.mrb[0].mxu0
    %v729 = vadd.f32 %v602, %v728
    %v730 = vpop.f32.mrb[0].mxu0
    %731 = vmatprep.mubr.f32.mxu0 0.0
    %732 = vmatmul.mubr.f32.gmra.mrb[0].mxu0 %v614
    %v733 = vpop.f32.mrb[0].mxu0
    %v734 = vadd.f32 %v602, %v733
    %v735 = vpop.f32.mrb[0].mxu0
    %736 = vmatprep.mubr.f32.mxu0 0.0
    %737 = vmatmul.mubr.f32.gmra.mrb[0].mxu0 %v617
    %v738 = vpop.f32.mrb[0].mxu0
    %v739 = vadd.f32 %v602, %v738
    %v740 = vpop.f32.mrb[0].mxu0
    %741 = vmatprep.mubr.f32.mxu0 0.0
    %742 = vmatmul.mubr.f32.gmra.mrb[0].mxu0 %v620
    %v743 = vpop.f32.mrb[0].mxu0
    %v744 = vadd.f32 %v602, %v743
    %v745 = vpop.f32.mrb[0].mxu0
    %746 = vmatprep.mubr.f32.mxu0 0.0
    %747 = vmatmul.mubr.f32.gmra.mrb[0].mxu0 %v623
    %v748 = vpop.f32.mrb[0].mxu0
    %v749 = vadd.f32 %v602, %v748
    %v750 = vpop.f32.mrb[0].mxu0
    %751 = vmatprep.mubr.f32.mxu0 0.0
    %752 = vmatmul.mubr.f32.gmra.mrb[0].mxu0 %v626
    %v753 = vpop.f32.mrb[0].mxu0
    %v754 = vadd.f32 %v602, %v753
    %v755 = vpop.f32.mrb[0].mxu0
    %756 = vmatprep.mubr.f32.mxu0 0.0
    %757 = vmatmul.mubr.f32.gmra.mrb[0].mxu0 %v629
    %v758 = vpop.f32.mrb[0].mxu0
    %v759 = vadd.f32 %v602, %v758
    %v760 = vpop.f32.mrb[0].mxu0
    %761 = vmatprep.mubr.f32.mxu0 0.0
    %762 = vmatmul.mubr.f32.gmra.mrb[0].mxu0 %v632
    %v763 = vpop.f32.mrb[0].mxu0
    %v764 = vadd.f32 %v602, %v763
    %v765 = vpop.f32.mrb[0].mxu0
    %766 = vmatprep.mubr.f32.mxu0 0.0
    %767 = vmatmul.mubr.f32.gmra.mrb[0].mxu0 %v635
    %v768 = vpop.f32.mrb[0].mxu0
    %v769 = vadd.f32 %v602, %v768
    %v770 = vpop.f32.mrb[0].mxu0
    %771 = vmatprep.mubr.f32.mxu0 0.0
    %772 = vmatmul.mubr.f32.gmra.mrb[0].mxu0 %v638
    %v773 = vpop.f32.mrb[0].mxu0
    %v774 = vadd.f32 %v602, %v773
    %v775 = vpop.f32.mrb[0].mxu0
    %776 = vmatprep.mubr.f32.mxu0 0.0
    %777 = vmatmul.mubr.f32.gmra.mrb[0].mxu0 %v641
    %v778 = vpop.f32.mrb[0].mxu0
    %v779 = vadd.f32 %v602, %v778
    %v780 = vpop.f32.mrb[0].mxu0
    %781 = vmatprep.mubr.f32.mxu0 0.0
    %782 = vmatmul.mubr.f32.gmra.mrb[0].mxu0 %v644
    %v783 = vpop.f32.mrb[0].mxu0
    %v784 = vadd.f32 %v602, %v783
    %v785 = vpop.f32.mrb[0].mxu0
    %786 = vmatprep.mubr.f32.mxu0 0.0
    %787 = vmatmul.mubr.f32.gmra.mrb[0].mxu0 %v647
    %v788 = vpop.f32.mrb[0].mxu0
    %v789 = vadd.f32 %v602, %v788
    %v790 = vpop.f32.mrb[0].mxu0
    %791 = vmatprep.mubr.f32.mxu0 0.0
    %792 = vmatmul.mubr.f32.gmra.mrb[0].mxu0 %v650
    %v793 = vpop.f32.mrb[0].mxu0
    %v794 = vadd.f32 %v602, %v793
    %v795 = vpop.f32.mrb[0].mxu0
    %796 = vdwg.mxu0
    %v797 = vlaneseq
    %v798 = vshrl.u32 %v797, 7
    %v799 = vsub.s32 0, %v798
    %v800 = vrot.slane %v543, %v799
    %802 = vbcast.lane.b32.xlu0 %v800, 256
    %v803 = vpop.permute.xlu0 %802
    %s805 = sor.u32 256, 8
    %806 = vbcast.lane.b32.xlu0 %v800, %s805
    %v807 = vpop.permute.xlu0 %806
    %s809 = sor.u32 256, 16
    %810 = vbcast.lane.b32.xlu0 %v800, %s809
    %v811 = vpop.permute.xlu0 %810
    %s813 = sor.u32 256, 24
    %814 = vbcast.lane.b32.xlu0 %v800, %s813
    %v815 = vpop.permute.xlu0 %814
    %s817 = sor.u32 256, 32
    %818 = vbcast.lane.b32.xlu0 %v800, %s817
    %v819 = vpop.permute.xlu0 %818
    %s821 = sor.u32 256, 40
    %822 = vbcast.lane.b32.xlu0 %v800, %s821
    %v823 = vpop.permute.xlu0 %822
    %s825 = sor.u32 256, 48
    %826 = vbcast.lane.b32.xlu0 %v800, %s825
    %v827 = vpop.permute.xlu0 %826
    %s829 = sor.u32 256, 56
    %830 = vbcast.lane.b32.xlu0 %v800, %s829
    %v831 = vpop.permute.xlu0 %830
    %s833 = sor.u32 256, 64
    %834 = vbcast.lane.b32.xlu0 %v800, %s833
    %v835 = vpop.permute.xlu0 %834
    %s837 = sor.u32 256, 72
    %838 = vbcast.lane.b32.xlu0 %v800, %s837
    %v839 = vpop.permute.xlu0 %838
    %s841 = sor.u32 256, 80
    %842 = vbcast.lane.b32.xlu0 %v800, %s841
    %v843 = vpop.permute.xlu0 %842
    %s845 = sor.u32 256, 88
    %846 = vbcast.lane.b32.xlu0 %v800, %s845
    %v847 = vpop.permute.xlu0 %846
    %s849 = sor.u32 256, 96
    %850 = vbcast.lane.b32.xlu0 %v800, %s849
    %v851 = vpop.permute.xlu0 %850
    %s853 = sor.u32 256, 104
    %854 = vbcast.lane.b32.xlu0 %v800, %s853
    %v855 = vpop.permute.xlu0 %854
    %s857 = sor.u32 256, 112
    %858 = vbcast.lane.b32.xlu0 %v800, %s857
    %v859 = vpop.permute.xlu0 %858
    %s861 = sor.u32 256, 120
    %862 = vbcast.lane.b32.xlu0 %v800, %s861
    %v863 = vpop.permute.xlu0 %862
    %v864 = vlaneseq
    %v865 = vshrl.u32 %v864, 7
    %v866 = vsub.s32 1, %v865
    %v867 = vrot.slane %v543, %v866
    %869 = vbcast.lane.b32.xlu0 %v867, 256
    %v870 = vpop.permute.xlu0 %869
    %s872 = sor.u32 256, 8
    %873 = vbcast.lane.b32.xlu0 %v867, %s872
    %v874 = vpop.permute.xlu0 %873
    %s876 = sor.u32 256, 16
    %877 = vbcast.lane.b32.xlu0 %v867, %s876
    %v878 = vpop.permute.xlu0 %877
    %s880 = sor.u32 256, 24
    %881 = vbcast.lane.b32.xlu0 %v867, %s880
    %v882 = vpop.permute.xlu0 %881
    %s884 = sor.u32 256, 32
    %885 = vbcast.lane.b32.xlu0 %v867, %s884
    %v886 = vpop.permute.xlu0 %885
    %s888 = sor.u32 256, 40
    %889 = vbcast.lane.b32.xlu0 %v867, %s888
    %v890 = vpop.permute.xlu0 %889
    %s892 = sor.u32 256, 48
    %893 = vbcast.lane.b32.xlu0 %v867, %s892
    %v894 = vpop.permute.xlu0 %893
    %s896 = sor.u32 256, 56
    %897 = vbcast.lane.b32.xlu0 %v867, %s896
    %v898 = vpop.permute.xlu0 %897
    %s900 = sor.u32 256, 64
    %901 = vbcast.lane.b32.xlu0 %v867, %s900
    %v902 = vpop.permute.xlu0 %901
    %s904 = sor.u32 256, 72
    %905 = vbcast.lane.b32.xlu0 %v867, %s904
    %v906 = vpop.permute.xlu0 %905
    %s908 = sor.u32 256, 80
    %909 = vbcast.lane.b32.xlu0 %v867, %s908
    %v910 = vpop.permute.xlu0 %909
    %s912 = sor.u32 256, 88
    %913 = vbcast.lane.b32.xlu0 %v867, %s912
    %v914 = vpop.permute.xlu0 %913
    %s916 = sor.u32 256, 96
    %917 = vbcast.lane.b32.xlu0 %v867, %s916
    %v918 = vpop.permute.xlu0 %917
    %s920 = sor.u32 256, 104
    %921 = vbcast.lane.b32.xlu0 %v867, %s920
    %v922 = vpop.permute.xlu0 %921
    %s924 = sor.u32 256, 112
    %925 = vbcast.lane.b32.xlu0 %v867, %s924
    %v926 = vpop.permute.xlu0 %925
    %s928 = sor.u32 256, 120
    %929 = vbcast.lane.b32.xlu0 %v867, %s928
    %v930 = vpop.permute.xlu0 %929
    %v931 = vlaneseq
    %v932 = vshrl.u32 %v931, 7
    %v933 = vsub.s32 2, %v932
    %v934 = vrot.slane %v543, %v933
    %936 = vbcast.lane.b32.xlu0 %v934, 256
    %v937 = vpop.permute.xlu0 %936
    %s939 = sor.u32 256, 8
    %940 = vbcast.lane.b32.xlu0 %v934, %s939
    %v941 = vpop.permute.xlu0 %940
    %s943 = sor.u32 256, 16
    %944 = vbcast.lane.b32.xlu0 %v934, %s943
    %v945 = vpop.permute.xlu0 %944
    %s947 = sor.u32 256, 24
    %948 = vbcast.lane.b32.xlu0 %v934, %s947
    %v949 = vpop.permute.xlu0 %948
    %s951 = sor.u32 256, 32
    %952 = vbcast.lane.b32.xlu0 %v934, %s951
    %v953 = vpop.permute.xlu0 %952
    %s955 = sor.u32 256, 40
    %956 = vbcast.lane.b32.xlu0 %v934, %s955
    %v957 = vpop.permute.xlu0 %956
    %s959 = sor.u32 256, 48
    %960 = vbcast.lane.b32.xlu0 %v934, %s959
    %v961 = vpop.permute.xlu0 %960
    %s963 = sor.u32 256, 56
    %964 = vbcast.lane.b32.xlu0 %v934, %s963
    %v965 = vpop.permute.xlu0 %964
    %s967 = sor.u32 256, 64
    %968 = vbcast.lane.b32.xlu0 %v934, %s967
    %v969 = vpop.permute.xlu0 %968
    %s971 = sor.u32 256, 72
    %972 = vbcast.lane.b32.xlu0 %v934, %s971
    %v973 = vpop.permute.xlu0 %972
    %s975 = sor.u32 256, 80
    %976 = vbcast.lane.b32.xlu0 %v934, %s975
    %v977 = vpop.permute.xlu0 %976
    %s979 = sor.u32 256, 88
    %980 = vbcast.lane.b32.xlu0 %v934, %s979
    %v981 = vpop.permute.xlu0 %980
    %s983 = sor.u32 256, 96
    %984 = vbcast.lane.b32.xlu0 %v934, %s983
    %v985 = vpop.permute.xlu0 %984
    %s987 = sor.u32 256, 104
    %988 = vbcast.lane.b32.xlu0 %v934, %s987
    %v989 = vpop.permute.xlu0 %988
    %s991 = sor.u32 256, 112
    %992 = vbcast.lane.b32.xlu0 %v934, %s991
    %v993 = vpop.permute.xlu0 %992
    %s995 = sor.u32 256, 120
    %996 = vbcast.lane.b32.xlu0 %v934, %s995
    %v997 = vpop.permute.xlu0 %996
    %v998 = vlaneseq
    %v999 = vshrl.u32 %v998, 7
    %v1000 = vsub.s32 3, %v999
    %v1001 = vrot.slane %v543, %v1000
    %1003 = vbcast.lane.b32.xlu0 %v1001, 256
    %v1004 = vpop.permute.xlu0 %1003
    %s1006 = sor.u32 256, 8
    %1007 = vbcast.lane.b32.xlu0 %v1001, %s1006
    %v1008 = vpop.permute.xlu0 %1007
    %s1010 = sor.u32 256, 16
    %1011 = vbcast.lane.b32.xlu0 %v1001, %s1010
    %v1012 = vpop.permute.xlu0 %1011
    %s1014 = sor.u32 256, 24
    %1015 = vbcast.lane.b32.xlu0 %v1001, %s1014
    %v1016 = vpop.permute.xlu0 %1015
    %s1018 = sor.u32 256, 32
    %1019 = vbcast.lane.b32.xlu0 %v1001, %s1018
    %v1020 = vpop.permute.xlu0 %1019
    %s1022 = sor.u32 256, 40
    %1023 = vbcast.lane.b32.xlu0 %v1001, %s1022
    %v1024 = vpop.permute.xlu0 %1023
    %s1026 = sor.u32 256, 48
    %1027 = vbcast.lane.b32.xlu0 %v1001, %s1026
    %v1028 = vpop.permute.xlu0 %1027
    %s1030 = sor.u32 256, 56
    %1031 = vbcast.lane.b32.xlu0 %v1001, %s1030
    %v1032 = vpop.permute.xlu0 %1031
    %s1034 = sor.u32 256, 64
    %1035 = vbcast.lane.b32.xlu0 %v1001, %s1034
    %v1036 = vpop.permute.xlu0 %1035
    %s1038 = sor.u32 256, 72
    %1039 = vbcast.lane.b32.xlu0 %v1001, %s1038
    %v1040 = vpop.permute.xlu0 %1039
    %s1042 = sor.u32 256, 80
    %1043 = vbcast.lane.b32.xlu0 %v1001, %s1042
    %v1044 = vpop.permute.xlu0 %1043
    %s1046 = sor.u32 256, 88
    %1047 = vbcast.lane.b32.xlu0 %v1001, %s1046
    %v1048 = vpop.permute.xlu0 %1047
    %s1050 = sor.u32 256, 96
    %1051 = vbcast.lane.b32.xlu0 %v1001, %s1050
    %v1052 = vpop.permute.xlu0 %1051
    %s1054 = sor.u32 256, 104
    %1055 = vbcast.lane.b32.xlu0 %v1001, %s1054
    %v1056 = vpop.permute.xlu0 %1055
    %s1058 = sor.u32 256, 112
    %1059 = vbcast.lane.b32.xlu0 %v1001, %s1058
    %v1060 = vpop.permute.xlu0 %1059
    %s1062 = sor.u32 256, 120
    %1063 = vbcast.lane.b32.xlu0 %v1001, %s1062
    %v1064 = vpop.permute.xlu0 %1063
    %v1065 = vlaneseq
    %v1066 = vshrl.u32 %v1065, 7
    %v1067 = vsub.s32 4, %v1066
    %v1068 = vrot.slane %v543, %v1067
    %1070 = vbcast.lane.b32.xlu0 %v1068, 256
    %v1071 = vpop.permute.xlu0 %1070
    %s1073 = sor.u32 256, 8
    %1074 = vbcast.lane.b32.xlu0 %v1068, %s1073
    %v1075 = vpop.permute.xlu0 %1074
    %s1077 = sor.u32 256, 16
    %1078 = vbcast.lane.b32.xlu0 %v1068, %s1077
    %v1079 = vpop.permute.xlu0 %1078
    %s1081 = sor.u32 256, 24
    %1082 = vbcast.lane.b32.xlu0 %v1068, %s1081
    %v1083 = vpop.permute.xlu0 %1082
    %s1085 = sor.u32 256, 32
    %1086 = vbcast.lane.b32.xlu0 %v1068, %s1085
    %v1087 = vpop.permute.xlu0 %1086
    %s1089 = sor.u32 256, 40
    %1090 = vbcast.lane.b32.xlu0 %v1068, %s1089
    %v1091 = vpop.permute.xlu0 %1090
    %s1093 = sor.u32 256, 48
    %1094 = vbcast.lane.b32.xlu0 %v1068, %s1093
    %v1095 = vpop.permute.xlu0 %1094
    %s1097 = sor.u32 256, 56
    %1098 = vbcast.lane.b32.xlu0 %v1068, %s1097
    %v1099 = vpop.permute.xlu0 %1098
    %s1101 = sor.u32 256, 64
    %1102 = vbcast.lane.b32.xlu0 %v1068, %s1101
    %v1103 = vpop.permute.xlu0 %1102
    %s1105 = sor.u32 256, 72
    %1106 = vbcast.lane.b32.xlu0 %v1068, %s1105
    %v1107 = vpop.permute.xlu0 %1106
    %s1109 = sor.u32 256, 80
    %1110 = vbcast.lane.b32.xlu0 %v1068, %s1109
    %v1111 = vpop.permute.xlu0 %1110
    %s1113 = sor.u32 256, 88
    %1114 = vbcast.lane.b32.xlu0 %v1068, %s1113
    %v1115 = vpop.permute.xlu0 %1114
    %s1117 = sor.u32 256, 96
    %1118 = vbcast.lane.b32.xlu0 %v1068, %s1117
    %v1119 = vpop.permute.xlu0 %1118
    %s1121 = sor.u32 256, 104
    %1122 = vbcast.lane.b32.xlu0 %v1068, %s1121
    %v1123 = vpop.permute.xlu0 %1122
    %s1125 = sor.u32 256, 112
    %1126 = vbcast.lane.b32.xlu0 %v1068, %s1125
    %v1127 = vpop.permute.xlu0 %1126
    %s1129 = sor.u32 256, 120
    %1130 = vbcast.lane.b32.xlu0 %v1068, %s1129
    %v1131 = vpop.permute.xlu0 %1130
    %v1132 = vlaneseq
    %v1133 = vshrl.u32 %v1132, 7
    %v1134 = vsub.s32 5, %v1133
    %v1135 = vrot.slane %v543, %v1134
    %1137 = vbcast.lane.b32.xlu0 %v1135, 256
    %v1138 = vpop.permute.xlu0 %1137
    %s1140 = sor.u32 256, 8
    %1141 = vbcast.lane.b32.xlu0 %v1135, %s1140
    %v1142 = vpop.permute.xlu0 %1141
    %s1144 = sor.u32 256, 16
    %1145 = vbcast.lane.b32.xlu0 %v1135, %s1144
    %v1146 = vpop.permute.xlu0 %1145
    %s1148 = sor.u32 256, 24
    %1149 = vbcast.lane.b32.xlu0 %v1135, %s1148
    %v1150 = vpop.permute.xlu0 %1149
    %s1152 = sor.u32 256, 32
    %1153 = vbcast.lane.b32.xlu0 %v1135, %s1152
    %v1154 = vpop.permute.xlu0 %1153
    %s1156 = sor.u32 256, 40
    %1157 = vbcast.lane.b32.xlu0 %v1135, %s1156
    %v1158 = vpop.permute.xlu0 %1157
    %s1160 = sor.u32 256, 48
    %1161 = vbcast.lane.b32.xlu0 %v1135, %s1160
    %v1162 = vpop.permute.xlu0 %1161
    %s1164 = sor.u32 256, 56
    %1165 = vbcast.lane.b32.xlu0 %v1135, %s1164
    %v1166 = vpop.permute.xlu0 %1165
    %s1168 = sor.u32 256, 64
    %1169 = vbcast.lane.b32.xlu0 %v1135, %s1168
    %v1170 = vpop.permute.xlu0 %1169
    %s1172 = sor.u32 256, 72
    %1173 = vbcast.lane.b32.xlu0 %v1135, %s1172
    %v1174 = vpop.permute.xlu0 %1173
    %s1176 = sor.u32 256, 80
    %1177 = vbcast.lane.b32.xlu0 %v1135, %s1176
    %v1178 = vpop.permute.xlu0 %1177
    %s1180 = sor.u32 256, 88
    %1181 = vbcast.lane.b32.xlu0 %v1135, %s1180
    %v1182 = vpop.permute.xlu0 %1181
    %s1184 = sor.u32 256, 96
    %1185 = vbcast.lane.b32.xlu0 %v1135, %s1184
    %v1186 = vpop.permute.xlu0 %1185
    %s1188 = sor.u32 256, 104
    %1189 = vbcast.lane.b32.xlu0 %v1135, %s1188
    %v1190 = vpop.permute.xlu0 %1189
    %s1192 = sor.u32 256, 112
    %1193 = vbcast.lane.b32.xlu0 %v1135, %s1192
    %v1194 = vpop.permute.xlu0 %1193
    %s1196 = sor.u32 256, 120
    %1197 = vbcast.lane.b32.xlu0 %v1135, %s1196
    %v1198 = vpop.permute.xlu0 %1197
    %v1199 = vlaneseq
    %v1200 = vshrl.u32 %v1199, 7
    %v1201 = vsub.s32 6, %v1200
    %v1202 = vrot.slane %v543, %v1201
    %1204 = vbcast.lane.b32.xlu0 %v1202, 256
    %v1205 = vpop.permute.xlu0 %1204
    %s1207 = sor.u32 256, 8
    %1208 = vbcast.lane.b32.xlu0 %v1202, %s1207
    %v1209 = vpop.permute.xlu0 %1208
    %s1211 = sor.u32 256, 16
    %1212 = vbcast.lane.b32.xlu0 %v1202, %s1211
    %v1213 = vpop.permute.xlu0 %1212
    %s1215 = sor.u32 256, 24
    %1216 = vbcast.lane.b32.xlu0 %v1202, %s1215
    %v1217 = vpop.permute.xlu0 %1216
    %s1219 = sor.u32 256, 32
    %1220 = vbcast.lane.b32.xlu0 %v1202, %s1219
    %v1221 = vpop.permute.xlu0 %1220
    %s1223 = sor.u32 256, 40
    %1224 = vbcast.lane.b32.xlu0 %v1202, %s1223
    %v1225 = vpop.permute.xlu0 %1224
    %s1227 = sor.u32 256, 48
    %1228 = vbcast.lane.b32.xlu0 %v1202, %s1227
    %v1229 = vpop.permute.xlu0 %1228
    %s1231 = sor.u32 256, 56
    %1232 = vbcast.lane.b32.xlu0 %v1202, %s1231
    %v1233 = vpop.permute.xlu0 %1232
    %s1235 = sor.u32 256, 64
    %1236 = vbcast.lane.b32.xlu0 %v1202, %s1235
    %v1237 = vpop.permute.xlu0 %1236
    %s1239 = sor.u32 256, 72
    %1240 = vbcast.lane.b32.xlu0 %v1202, %s1239
    %v1241 = vpop.permute.xlu0 %1240
    %s1243 = sor.u32 256, 80
    %1244 = vbcast.lane.b32.xlu0 %v1202, %s1243
    %v1245 = vpop.permute.xlu0 %1244
    %s1247 = sor.u32 256, 88
    %1248 = vbcast.lane.b32.xlu0 %v1202, %s1247
    %v1249 = vpop.permute.xlu0 %1248
    %s1251 = sor.u32 256, 96
    %1252 = vbcast.lane.b32.xlu0 %v1202, %s1251
    %v1253 = vpop.permute.xlu0 %1252
    %s1255 = sor.u32 256, 104
    %1256 = vbcast.lane.b32.xlu0 %v1202, %s1255
    %v1257 = vpop.permute.xlu0 %1256
    %s1259 = sor.u32 256, 112
    %1260 = vbcast.lane.b32.xlu0 %v1202, %s1259
    %v1261 = vpop.permute.xlu0 %1260
    %s1263 = sor.u32 256, 120
    %1264 = vbcast.lane.b32.xlu0 %v1202, %s1263
    %v1265 = vpop.permute.xlu0 %1264
    %v1266 = vlaneseq
    %v1267 = vshrl.u32 %v1266, 7
    %v1268 = vsub.s32 7, %v1267
    %v1269 = vrot.slane %v543, %v1268
    %1271 = vbcast.lane.b32.xlu0 %v1269, 256
    %v1272 = vpop.permute.xlu0 %1271
    %s1274 = sor.u32 256, 8
    %1275 = vbcast.lane.b32.xlu0 %v1269, %s1274
    %v1276 = vpop.permute.xlu0 %1275
    %s1278 = sor.u32 256, 16
    %1279 = vbcast.lane.b32.xlu0 %v1269, %s1278
    %v1280 = vpop.permute.xlu0 %1279
    %s1282 = sor.u32 256, 24
    %1283 = vbcast.lane.b32.xlu0 %v1269, %s1282
    %v1284 = vpop.permute.xlu0 %1283
    %s1286 = sor.u32 256, 32
    %1287 = vbcast.lane.b32.xlu0 %v1269, %s1286
    %v1288 = vpop.permute.xlu0 %1287
    %s1290 = sor.u32 256, 40
    %1291 = vbcast.lane.b32.xlu0 %v1269, %s1290
    %v1292 = vpop.permute.xlu0 %1291
    %s1294 = sor.u32 256, 48
    %1295 = vbcast.lane.b32.xlu0 %v1269, %s1294
    %v1296 = vpop.permute.xlu0 %1295
    %s1298 = sor.u32 256, 56
    %1299 = vbcast.lane.b32.xlu0 %v1269, %s1298
    %v1300 = vpop.permute.xlu0 %1299
    %s1302 = sor.u32 256, 64
    %1303 = vbcast.lane.b32.xlu0 %v1269, %s1302
    %v1304 = vpop.permute.xlu0 %1303
    %s1306 = sor.u32 256, 72
    %1307 = vbcast.lane.b32.xlu0 %v1269, %s1306
    %v1308 = vpop.permute.xlu0 %1307
    %s1310 = sor.u32 256, 80
    %1311 = vbcast.lane.b32.xlu0 %v1269, %s1310
    %v1312 = vpop.permute.xlu0 %1311
    %s1314 = sor.u32 256, 88
    %1315 = vbcast.lane.b32.xlu0 %v1269, %s1314
    %v1316 = vpop.permute.xlu0 %1315
    %s1318 = sor.u32 256, 96
    %1319 = vbcast.lane.b32.xlu0 %v1269, %s1318
    %v1320 = vpop.permute.xlu0 %1319
    %s1322 = sor.u32 256, 104
    %1323 = vbcast.lane.b32.xlu0 %v1269, %s1322
    %v1324 = vpop.permute.xlu0 %1323
    %s1326 = sor.u32 256, 112
    %1327 = vbcast.lane.b32.xlu0 %v1269, %s1326
    %v1328 = vpop.permute.xlu0 %1327
    %s1330 = sor.u32 256, 120
    %1331 = vbcast.lane.b32.xlu0 %v1269, %s1330
    %v1332 = vpop.permute.xlu0 %1331
    %vm1333 = vcmp.eq.s32.totalorder %v576, %v803
    %vm1334 = vcmp.eq.s32.totalorder %v576, %v807
    %vm1335 = vcmp.eq.s32.totalorder %v576, %v811
    %vm1336 = vcmp.eq.s32.totalorder %v576, %v815
    %vm1337 = vcmp.eq.s32.totalorder %v576, %v819
    %vm1338 = vcmp.eq.s32.totalorder %v576, %v823
    %vm1339 = vcmp.eq.s32.totalorder %v576, %v827
    %vm1340 = vcmp.eq.s32.totalorder %v576, %v831
    %vm1341 = vcmp.eq.s32.totalorder %v576, %v835
    %vm1342 = vcmp.eq.s32.totalorder %v576, %v839
    %vm1343 = vcmp.eq.s32.totalorder %v576, %v843
    %vm1344 = vcmp.eq.s32.totalorder %v576, %v847
    %vm1345 = vcmp.eq.s32.totalorder %v576, %v851
    %vm1346 = vcmp.eq.s32.totalorder %v576, %v855
    %vm1347 = vcmp.eq.s32.totalorder %v576, %v859
    %vm1348 = vcmp.eq.s32.totalorder %v576, %v863
    %vm1349 = vcmp.eq.s32.totalorder %v576, %v870
    %vm1350 = vcmp.eq.s32.totalorder %v576, %v874
    %vm1351 = vcmp.eq.s32.totalorder %v576, %v878
    %vm1352 = vcmp.eq.s32.totalorder %v576, %v882
    %vm1353 = vcmp.eq.s32.totalorder %v576, %v886
    %vm1354 = vcmp.eq.s32.totalorder %v576, %v890
    %vm1355 = vcmp.eq.s32.totalorder %v576, %v894
    %vm1356 = vcmp.eq.s32.totalorder %v576, %v898
    %vm1357 = vcmp.eq.s32.totalorder %v576, %v902
    %vm1358 = vcmp.eq.s32.totalorder %v576, %v906
    %vm1359 = vcmp.eq.s32.totalorder %v576, %v910
    %vm1360 = vcmp.eq.s32.totalorder %v576, %v914
    %vm1361 = vcmp.eq.s32.totalorder %v576, %v918
    %vm1362 = vcmp.eq.s32.totalorder %v576, %v922
    %vm1363 = vcmp.eq.s32.totalorder %v576, %v926
    %vm1364 = vcmp.eq.s32.totalorder %v576, %v930
    %vm1365 = vcmp.eq.s32.totalorder %v576, %v937
    %vm1366 = vcmp.eq.s32.totalorder %v576, %v941
    %vm1367 = vcmp.eq.s32.totalorder %v576, %v945
    %vm1368 = vcmp.eq.s32.totalorder %v576, %v949
    %vm1369 = vcmp.eq.s32.totalorder %v576, %v953
    %vm1370 = vcmp.eq.s32.totalorder %v576, %v957
    %vm1371 = vcmp.eq.s32.totalorder %v576, %v961
    %vm1372 = vcmp.eq.s32.totalorder %v576, %v965
    %vm1373 = vcmp.eq.s32.totalorder %v576, %v969
    %vm1374 = vcmp.eq.s32.totalorder %v576, %v973
    %vm1375 = vcmp.eq.s32.totalorder %v576, %v977
    %vm1376 = vcmp.eq.s32.totalorder %v576, %v981
    %vm1377 = vcmp.eq.s32.totalorder %v576, %v985
    %vm1378 = vcmp.eq.s32.totalorder %v576, %v989
    %vm1379 = vcmp.eq.s32.totalorder %v576, %v993
    %vm1380 = vcmp.eq.s32.totalorder %v576, %v997
    %vm1381 = vcmp.eq.s32.totalorder %v576, %v1004
    %vm1382 = vcmp.eq.s32.totalorder %v576, %v1008
    %vm1383 = vcmp.eq.s32.totalorder %v576, %v1012
    %vm1384 = vcmp.eq.s32.totalorder %v576, %v1016
    %vm1385 = vcmp.eq.s32.totalorder %v576, %v1020
    %vm1386 = vcmp.eq.s32.totalorder %v576, %v1024
    %vm1387 = vcmp.eq.s32.totalorder %v576, %v1028
    %vm1388 = vcmp.eq.s32.totalorder %v576, %v1032
    %vm1389 = vcmp.eq.s32.totalorder %v576, %v1036
    %vm1390 = vcmp.eq.s32.totalorder %v576, %v1040
    %vm1391 = vcmp.eq.s32.totalorder %v576, %v1044
    %vm1392 = vcmp.eq.s32.totalorder %v576, %v1048
    %vm1393 = vcmp.eq.s32.totalorder %v576, %v1052
    %vm1394 = vcmp.eq.s32.totalorder %v576, %v1056
    %vm1395 = vcmp.eq.s32.totalorder %v576, %v1060
    %vm1396 = vcmp.eq.s32.totalorder %v576, %v1064
    %vm1397 = vcmp.eq.s32.totalorder %v576, %v1071
    %vm1398 = vcmp.eq.s32.totalorder %v576, %v1075
    %vm1399 = vcmp.eq.s32.totalorder %v576, %v1079
    %vm1400 = vcmp.eq.s32.totalorder %v576, %v1083
    %vm1401 = vcmp.eq.s32.totalorder %v576, %v1087
    %vm1402 = vcmp.eq.s32.totalorder %v576, %v1091
    %vm1403 = vcmp.eq.s32.totalorder %v576, %v1095
    %vm1404 = vcmp.eq.s32.totalorder %v576, %v1099
    %vm1405 = vcmp.eq.s32.totalorder %v576, %v1103
    %vm1406 = vcmp.eq.s32.totalorder %v576, %v1107
    %vm1407 = vcmp.eq.s32.totalorder %v576, %v1111
    %vm1408 = vcmp.eq.s32.totalorder %v576, %v1115
    %vm1409 = vcmp.eq.s32.totalorder %v576, %v1119
    %vm1410 = vcmp.eq.s32.totalorder %v576, %v1123
    %vm1411 = vcmp.eq.s32.totalorder %v576, %v1127
    %vm1412 = vcmp.eq.s32.totalorder %v576, %v1131
    %vm1413 = vcmp.eq.s32.totalorder %v576, %v1138
    %vm1414 = vcmp.eq.s32.totalorder %v576, %v1142
    %vm1415 = vcmp.eq.s32.totalorder %v576, %v1146
    %vm1416 = vcmp.eq.s32.totalorder %v576, %v1150
    %vm1417 = vcmp.eq.s32.totalorder %v576, %v1154
    %vm1418 = vcmp.eq.s32.totalorder %v576, %v1158
    %vm1419 = vcmp.eq.s32.totalorder %v576, %v1162
    %vm1420 = vcmp.eq.s32.totalorder %v576, %v1166
    %vm1421 = vcmp.eq.s32.totalorder %v576, %v1170
    %vm1422 = vcmp.eq.s32.totalorder %v576, %v1174
    %vm1423 = vcmp.eq.s32.totalorder %v576, %v1178
    %vm1424 = vcmp.eq.s32.totalorder %v576, %v1182
    %vm1425 = vcmp.eq.s32.totalorder %v576, %v1186
    %vm1426 = vcmp.eq.s32.totalorder %v576, %v1190
    %vm1427 = vcmp.eq.s32.totalorder %v576, %v1194
    %vm1428 = vcmp.eq.s32.totalorder %v576, %v1198
    %vm1429 = vcmp.eq.s32.totalorder %v576, %v1205
    %vm1430 = vcmp.eq.s32.totalorder %v576, %v1209
    %vm1431 = vcmp.eq.s32.totalorder %v576, %v1213
    %vm1432 = vcmp.eq.s32.totalorder %v576, %v1217
    %vm1433 = vcmp.eq.s32.totalorder %v576, %v1221
    %vm1434 = vcmp.eq.s32.totalorder %v576, %v1225
    %vm1435 = vcmp.eq.s32.totalorder %v576, %v1229
    %vm1436 = vcmp.eq.s32.totalorder %v576, %v1233
    %vm1437 = vcmp.eq.s32.totalorder %v576, %v1237
    %vm1438 = vcmp.eq.s32.totalorder %v576, %v1241
    %vm1439 = vcmp.eq.s32.totalorder %v576, %v1245
    %vm1440 = vcmp.eq.s32.totalorder %v576, %v1249
    %vm1441 = vcmp.eq.s32.totalorder %v576, %v1253
    %vm1442 = vcmp.eq.s32.totalorder %v576, %v1257
    %vm1443 = vcmp.eq.s32.totalorder %v576, %v1261
    %vm1444 = vcmp.eq.s32.totalorder %v576, %v1265
    %vm1445 = vcmp.eq.s32.totalorder %v576, %v1272
    %vm1446 = vcmp.eq.s32.totalorder %v576, %v1276
    %vm1447 = vcmp.eq.s32.totalorder %v576, %v1280
    %vm1448 = vcmp.eq.s32.totalorder %v576, %v1284
    %vm1449 = vcmp.eq.s32.totalorder %v576, %v1288
    %vm1450 = vcmp.eq.s32.totalorder %v576, %v1292
    %vm1451 = vcmp.eq.s32.totalorder %v576, %v1296
    %vm1452 = vcmp.eq.s32.totalorder %v576, %v1300
    %vm1453 = vcmp.eq.s32.totalorder %v576, %v1304
    %vm1454 = vcmp.eq.s32.totalorder %v576, %v1308
    %vm1455 = vcmp.eq.s32.totalorder %v576, %v1312
    %vm1456 = vcmp.eq.s32.totalorder %v576, %v1316
    %vm1457 = vcmp.eq.s32.totalorder %v576, %v1320
    %vm1458 = vcmp.eq.s32.totalorder %v576, %v1324
    %vm1459 = vcmp.eq.s32.totalorder %v576, %v1328
    %vm1460 = vcmp.eq.s32.totalorder %v576, %v1332
    %v1461 = vlaneseq
    %v1462 = vshrl.u32 %v1461, 7
    %v1463 = vsub.s32 0, %v1462
    %v1464 = vrot.slane %v573, %v1463
    %1466 = vbcast.lane.b32.xlu0 %v1464, 256
    %v1467 = vpop.permute.xlu0 %1466
    %s1469 = sor.u32 256, 8
    %1470 = vbcast.lane.b32.xlu0 %v1464, %s1469
    %v1471 = vpop.permute.xlu0 %1470
    %s1473 = sor.u32 256, 16
    %1474 = vbcast.lane.b32.xlu0 %v1464, %s1473
    %v1475 = vpop.permute.xlu0 %1474
    %s1477 = sor.u32 256, 24
    %1478 = vbcast.lane.b32.xlu0 %v1464, %s1477
    %v1479 = vpop.permute.xlu0 %1478
    %s1481 = sor.u32 256, 32
    %1482 = vbcast.lane.b32.xlu0 %v1464, %s1481
    %v1483 = vpop.permute.xlu0 %1482
    %s1485 = sor.u32 256, 40
    %1486 = vbcast.lane.b32.xlu0 %v1464, %s1485
    %v1487 = vpop.permute.xlu0 %1486
    %s1489 = sor.u32 256, 48
    %1490 = vbcast.lane.b32.xlu0 %v1464, %s1489
    %v1491 = vpop.permute.xlu0 %1490
    %s1493 = sor.u32 256, 56
    %1494 = vbcast.lane.b32.xlu0 %v1464, %s1493
    %v1495 = vpop.permute.xlu0 %1494
    %s1497 = sor.u32 256, 64
    %1498 = vbcast.lane.b32.xlu0 %v1464, %s1497
    %v1499 = vpop.permute.xlu0 %1498
    %s1501 = sor.u32 256, 72
    %1502 = vbcast.lane.b32.xlu0 %v1464, %s1501
    %v1503 = vpop.permute.xlu0 %1502
    %s1505 = sor.u32 256, 80
    %1506 = vbcast.lane.b32.xlu0 %v1464, %s1505
    %v1507 = vpop.permute.xlu0 %1506
    %s1509 = sor.u32 256, 88
    %1510 = vbcast.lane.b32.xlu0 %v1464, %s1509
    %v1511 = vpop.permute.xlu0 %1510
    %s1513 = sor.u32 256, 96
    %1514 = vbcast.lane.b32.xlu0 %v1464, %s1513
    %v1515 = vpop.permute.xlu0 %1514
    %s1517 = sor.u32 256, 104
    %1518 = vbcast.lane.b32.xlu0 %v1464, %s1517
    %v1519 = vpop.permute.xlu0 %1518
    %s1521 = sor.u32 256, 112
    %1522 = vbcast.lane.b32.xlu0 %v1464, %s1521
    %v1523 = vpop.permute.xlu0 %1522
    %s1525 = sor.u32 256, 120
    %1526 = vbcast.lane.b32.xlu0 %v1464, %s1525
    %v1527 = vpop.permute.xlu0 %1526
    %v1528 = vlaneseq
    %v1529 = vshrl.u32 %v1528, 7
    %v1530 = vsub.s32 1, %v1529
    %v1531 = vrot.slane %v573, %v1530
    %1533 = vbcast.lane.b32.xlu0 %v1531, 256
    %v1534 = vpop.permute.xlu0 %1533
    %s1536 = sor.u32 256, 8
    %1537 = vbcast.lane.b32.xlu0 %v1531, %s1536
    %v1538 = vpop.permute.xlu0 %1537
    %s1540 = sor.u32 256, 16
    %1541 = vbcast.lane.b32.xlu0 %v1531, %s1540
    %v1542 = vpop.permute.xlu0 %1541
    %s1544 = sor.u32 256, 24
    %1545 = vbcast.lane.b32.xlu0 %v1531, %s1544
    %v1546 = vpop.permute.xlu0 %1545
    %s1548 = sor.u32 256, 32
    %1549 = vbcast.lane.b32.xlu0 %v1531, %s1548
    %v1550 = vpop.permute.xlu0 %1549
    %s1552 = sor.u32 256, 40
    %1553 = vbcast.lane.b32.xlu0 %v1531, %s1552
    %v1554 = vpop.permute.xlu0 %1553
    %s1556 = sor.u32 256, 48
    %1557 = vbcast.lane.b32.xlu0 %v1531, %s1556
    %v1558 = vpop.permute.xlu0 %1557
    %s1560 = sor.u32 256, 56
    %1561 = vbcast.lane.b32.xlu0 %v1531, %s1560
    %v1562 = vpop.permute.xlu0 %1561
    %s1564 = sor.u32 256, 64
    %1565 = vbcast.lane.b32.xlu0 %v1531, %s1564
    %v1566 = vpop.permute.xlu0 %1565
    %s1568 = sor.u32 256, 72
    %1569 = vbcast.lane.b32.xlu0 %v1531, %s1568
    %v1570 = vpop.permute.xlu0 %1569
    %s1572 = sor.u32 256, 80
    %1573 = vbcast.lane.b32.xlu0 %v1531, %s1572
    %v1574 = vpop.permute.xlu0 %1573
    %s1576 = sor.u32 256, 88
    %1577 = vbcast.lane.b32.xlu0 %v1531, %s1576
    %v1578 = vpop.permute.xlu0 %1577
    %s1580 = sor.u32 256, 96
    %1581 = vbcast.lane.b32.xlu0 %v1531, %s1580
    %v1582 = vpop.permute.xlu0 %1581
    %s1584 = sor.u32 256, 104
    %1585 = vbcast.lane.b32.xlu0 %v1531, %s1584
    %v1586 = vpop.permute.xlu0 %1585
    %s1588 = sor.u32 256, 112
    %1589 = vbcast.lane.b32.xlu0 %v1531, %s1588
    %v1590 = vpop.permute.xlu0 %1589
    %s1592 = sor.u32 256, 120
    %1593 = vbcast.lane.b32.xlu0 %v1531, %s1592
    %v1594 = vpop.permute.xlu0 %1593
    %v1595 = vlaneseq
    %v1596 = vshrl.u32 %v1595, 7
    %v1597 = vsub.s32 2, %v1596
    %v1598 = vrot.slane %v573, %v1597
    %1600 = vbcast.lane.b32.xlu0 %v1598, 256
    %v1601 = vpop.permute.xlu0 %1600
    %s1603 = sor.u32 256, 8
    %1604 = vbcast.lane.b32.xlu0 %v1598, %s1603
    %v1605 = vpop.permute.xlu0 %1604
    %s1607 = sor.u32 256, 16
    %1608 = vbcast.lane.b32.xlu0 %v1598, %s1607
    %v1609 = vpop.permute.xlu0 %1608
    %s1611 = sor.u32 256, 24
    %1612 = vbcast.lane.b32.xlu0 %v1598, %s1611
    %v1613 = vpop.permute.xlu0 %1612
    %s1615 = sor.u32 256, 32
    %1616 = vbcast.lane.b32.xlu0 %v1598, %s1615
    %v1617 = vpop.permute.xlu0 %1616
    %s1619 = sor.u32 256, 40
    %1620 = vbcast.lane.b32.xlu0 %v1598, %s1619
    %v1621 = vpop.permute.xlu0 %1620
    %s1623 = sor.u32 256, 48
    %1624 = vbcast.lane.b32.xlu0 %v1598, %s1623
    %v1625 = vpop.permute.xlu0 %1624
    %s1627 = sor.u32 256, 56
    %1628 = vbcast.lane.b32.xlu0 %v1598, %s1627
    %v1629 = vpop.permute.xlu0 %1628
    %s1631 = sor.u32 256, 64
    %1632 = vbcast.lane.b32.xlu0 %v1598, %s1631
    %v1633 = vpop.permute.xlu0 %1632
    %s1635 = sor.u32 256, 72
    %1636 = vbcast.lane.b32.xlu0 %v1598, %s1635
    %v1637 = vpop.permute.xlu0 %1636
    %s1639 = sor.u32 256, 80
    %1640 = vbcast.lane.b32.xlu0 %v1598, %s1639
    %v1641 = vpop.permute.xlu0 %1640
    %s1643 = sor.u32 256, 88
    %1644 = vbcast.lane.b32.xlu0 %v1598, %s1643
    %v1645 = vpop.permute.xlu0 %1644
    %s1647 = sor.u32 256, 96
    %1648 = vbcast.lane.b32.xlu0 %v1598, %s1647
    %v1649 = vpop.permute.xlu0 %1648
    %s1651 = sor.u32 256, 104
    %1652 = vbcast.lane.b32.xlu0 %v1598, %s1651
    %v1653 = vpop.permute.xlu0 %1652
    %s1655 = sor.u32 256, 112
    %1656 = vbcast.lane.b32.xlu0 %v1598, %s1655
    %v1657 = vpop.permute.xlu0 %1656
    %s1659 = sor.u32 256, 120
    %1660 = vbcast.lane.b32.xlu0 %v1598, %s1659
    %v1661 = vpop.permute.xlu0 %1660
    %v1662 = vlaneseq
    %v1663 = vshrl.u32 %v1662, 7
    %v1664 = vsub.s32 3, %v1663
    %v1665 = vrot.slane %v573, %v1664
    %1667 = vbcast.lane.b32.xlu0 %v1665, 256
    %v1668 = vpop.permute.xlu0 %1667
    %s1670 = sor.u32 256, 8
    %1671 = vbcast.lane.b32.xlu0 %v1665, %s1670
    %v1672 = vpop.permute.xlu0 %1671
    %s1674 = sor.u32 256, 16
    %1675 = vbcast.lane.b32.xlu0 %v1665, %s1674
    %v1676 = vpop.permute.xlu0 %1675
    %s1678 = sor.u32 256, 24
    %1679 = vbcast.lane.b32.xlu0 %v1665, %s1678
    %v1680 = vpop.permute.xlu0 %1679
    %s1682 = sor.u32 256, 32
    %1683 = vbcast.lane.b32.xlu0 %v1665, %s1682
    %v1684 = vpop.permute.xlu0 %1683
    %s1686 = sor.u32 256, 40
    %1687 = vbcast.lane.b32.xlu0 %v1665, %s1686
    %v1688 = vpop.permute.xlu0 %1687
    %s1690 = sor.u32 256, 48
    %1691 = vbcast.lane.b32.xlu0 %v1665, %s1690
    %v1692 = vpop.permute.xlu0 %1691
    %s1694 = sor.u32 256, 56
    %1695 = vbcast.lane.b32.xlu0 %v1665, %s1694
    %v1696 = vpop.permute.xlu0 %1695
    %s1698 = sor.u32 256, 64
    %1699 = vbcast.lane.b32.xlu0 %v1665, %s1698
    %v1700 = vpop.permute.xlu0 %1699
    %s1702 = sor.u32 256, 72
    %1703 = vbcast.lane.b32.xlu0 %v1665, %s1702
    %v1704 = vpop.permute.xlu0 %1703
    %s1706 = sor.u32 256, 80
    %1707 = vbcast.lane.b32.xlu0 %v1665, %s1706
    %v1708 = vpop.permute.xlu0 %1707
    %s1710 = sor.u32 256, 88
    %1711 = vbcast.lane.b32.xlu0 %v1665, %s1710
    %v1712 = vpop.permute.xlu0 %1711
    %s1714 = sor.u32 256, 96
    %1715 = vbcast.lane.b32.xlu0 %v1665, %s1714
    %v1716 = vpop.permute.xlu0 %1715
    %s1718 = sor.u32 256, 104
    %1719 = vbcast.lane.b32.xlu0 %v1665, %s1718
    %v1720 = vpop.permute.xlu0 %1719
    %s1722 = sor.u32 256, 112
    %1723 = vbcast.lane.b32.xlu0 %v1665, %s1722
    %v1724 = vpop.permute.xlu0 %1723
    %s1726 = sor.u32 256, 120
    %1727 = vbcast.lane.b32.xlu0 %v1665, %s1726
    %v1728 = vpop.permute.xlu0 %1727
    %v1729 = vlaneseq
    %v1730 = vshrl.u32 %v1729, 7
    %v1731 = vsub.s32 4, %v1730
    %v1732 = vrot.slane %v573, %v1731
    %1734 = vbcast.lane.b32.xlu0 %v1732, 256
    %v1735 = vpop.permute.xlu0 %1734
    %s1737 = sor.u32 256, 8
    %1738 = vbcast.lane.b32.xlu0 %v1732, %s1737
    %v1739 = vpop.permute.xlu0 %1738
    %s1741 = sor.u32 256, 16
    %1742 = vbcast.lane.b32.xlu0 %v1732, %s1741
    %v1743 = vpop.permute.xlu0 %1742
    %s1745 = sor.u32 256, 24
    %1746 = vbcast.lane.b32.xlu0 %v1732, %s1745
    %v1747 = vpop.permute.xlu0 %1746
    %s1749 = sor.u32 256, 32
    %1750 = vbcast.lane.b32.xlu0 %v1732, %s1749
    %v1751 = vpop.permute.xlu0 %1750
    %s1753 = sor.u32 256, 40
    %1754 = vbcast.lane.b32.xlu0 %v1732, %s1753
    %v1755 = vpop.permute.xlu0 %1754
    %s1757 = sor.u32 256, 48
    %1758 = vbcast.lane.b32.xlu0 %v1732, %s1757
    %v1759 = vpop.permute.xlu0 %1758
    %s1761 = sor.u32 256, 56
    %1762 = vbcast.lane.b32.xlu0 %v1732, %s1761
    %v1763 = vpop.permute.xlu0 %1762
    %s1765 = sor.u32 256, 64
    %1766 = vbcast.lane.b32.xlu0 %v1732, %s1765
    %v1767 = vpop.permute.xlu0 %1766
    %s1769 = sor.u32 256, 72
    %1770 = vbcast.lane.b32.xlu0 %v1732, %s1769
    %v1771 = vpop.permute.xlu0 %1770
    %s1773 = sor.u32 256, 80
    %1774 = vbcast.lane.b32.xlu0 %v1732, %s1773
    %v1775 = vpop.permute.xlu0 %1774
    %s1777 = sor.u32 256, 88
    %1778 = vbcast.lane.b32.xlu0 %v1732, %s1777
    %v1779 = vpop.permute.xlu0 %1778
    %s1781 = sor.u32 256, 96
    %1782 = vbcast.lane.b32.xlu0 %v1732, %s1781
    %v1783 = vpop.permute.xlu0 %1782
    %s1785 = sor.u32 256, 104
    %1786 = vbcast.lane.b32.xlu0 %v1732, %s1785
    %v1787 = vpop.permute.xlu0 %1786
    %s1789 = sor.u32 256, 112
    %1790 = vbcast.lane.b32.xlu0 %v1732, %s1789
    %v1791 = vpop.permute.xlu0 %1790
    %s1793 = sor.u32 256, 120
    %1794 = vbcast.lane.b32.xlu0 %v1732, %s1793
    %v1795 = vpop.permute.xlu0 %1794
    %v1796 = vlaneseq
    %v1797 = vshrl.u32 %v1796, 7
    %v1798 = vsub.s32 5, %v1797
    %v1799 = vrot.slane %v573, %v1798
    %1801 = vbcast.lane.b32.xlu0 %v1799, 256
    %v1802 = vpop.permute.xlu0 %1801
    %s1804 = sor.u32 256, 8
    %1805 = vbcast.lane.b32.xlu0 %v1799, %s1804
    %v1806 = vpop.permute.xlu0 %1805
    %s1808 = sor.u32 256, 16
    %1809 = vbcast.lane.b32.xlu0 %v1799, %s1808
    %v1810 = vpop.permute.xlu0 %1809
    %s1812 = sor.u32 256, 24
    %1813 = vbcast.lane.b32.xlu0 %v1799, %s1812
    %v1814 = vpop.permute.xlu0 %1813
    %s1816 = sor.u32 256, 32
    %1817 = vbcast.lane.b32.xlu0 %v1799, %s1816
    %v1818 = vpop.permute.xlu0 %1817
    %s1820 = sor.u32 256, 40
    %1821 = vbcast.lane.b32.xlu0 %v1799, %s1820
    %v1822 = vpop.permute.xlu0 %1821
    %s1824 = sor.u32 256, 48
    %1825 = vbcast.lane.b32.xlu0 %v1799, %s1824
    %v1826 = vpop.permute.xlu0 %1825
    %s1828 = sor.u32 256, 56
    %1829 = vbcast.lane.b32.xlu0 %v1799, %s1828
    %v1830 = vpop.permute.xlu0 %1829
    %s1832 = sor.u32 256, 64
    %1833 = vbcast.lane.b32.xlu0 %v1799, %s1832
    %v1834 = vpop.permute.xlu0 %1833
    %s1836 = sor.u32 256, 72
    %1837 = vbcast.lane.b32.xlu0 %v1799, %s1836
    %v1838 = vpop.permute.xlu0 %1837
    %s1840 = sor.u32 256, 80
    %1841 = vbcast.lane.b32.xlu0 %v1799, %s1840
    %v1842 = vpop.permute.xlu0 %1841
    %s1844 = sor.u32 256, 88
    %1845 = vbcast.lane.b32.xlu0 %v1799, %s1844
    %v1846 = vpop.permute.xlu0 %1845
    %s1848 = sor.u32 256, 96
    %1849 = vbcast.lane.b32.xlu0 %v1799, %s1848
    %v1850 = vpop.permute.xlu0 %1849
    %s1852 = sor.u32 256, 104
    %1853 = vbcast.lane.b32.xlu0 %v1799, %s1852
    %v1854 = vpop.permute.xlu0 %1853
    %s1856 = sor.u32 256, 112
    %1857 = vbcast.lane.b32.xlu0 %v1799, %s1856
    %v1858 = vpop.permute.xlu0 %1857
    %s1860 = sor.u32 256, 120
    %1861 = vbcast.lane.b32.xlu0 %v1799, %s1860
    %v1862 = vpop.permute.xlu0 %1861
    %v1863 = vlaneseq
    %v1864 = vshrl.u32 %v1863, 7
    %v1865 = vsub.s32 6, %v1864
    %v1866 = vrot.slane %v573, %v1865
    %1868 = vbcast.lane.b32.xlu0 %v1866, 256
    %v1869 = vpop.permute.xlu0 %1868
    %s1871 = sor.u32 256, 8
    %1872 = vbcast.lane.b32.xlu0 %v1866, %s1871
    %v1873 = vpop.permute.xlu0 %1872
    %s1875 = sor.u32 256, 16
    %1876 = vbcast.lane.b32.xlu0 %v1866, %s1875
    %v1877 = vpop.permute.xlu0 %1876
    %s1879 = sor.u32 256, 24
    %1880 = vbcast.lane.b32.xlu0 %v1866, %s1879
    %v1881 = vpop.permute.xlu0 %1880
    %s1883 = sor.u32 256, 32
    %1884 = vbcast.lane.b32.xlu0 %v1866, %s1883
    %v1885 = vpop.permute.xlu0 %1884
    %s1887 = sor.u32 256, 40
    %1888 = vbcast.lane.b32.xlu0 %v1866, %s1887
    %v1889 = vpop.permute.xlu0 %1888
    %s1891 = sor.u32 256, 48
    %1892 = vbcast.lane.b32.xlu0 %v1866, %s1891
    %v1893 = vpop.permute.xlu0 %1892
    %s1895 = sor.u32 256, 56
    %1896 = vbcast.lane.b32.xlu0 %v1866, %s1895
    %v1897 = vpop.permute.xlu0 %1896
    %s1899 = sor.u32 256, 64
    %1900 = vbcast.lane.b32.xlu0 %v1866, %s1899
    %v1901 = vpop.permute.xlu0 %1900
    %s1903 = sor.u32 256, 72
    %1904 = vbcast.lane.b32.xlu0 %v1866, %s1903
    %v1905 = vpop.permute.xlu0 %1904
    %s1907 = sor.u32 256, 80
    %1908 = vbcast.lane.b32.xlu0 %v1866, %s1907
    %v1909 = vpop.permute.xlu0 %1908
    %s1911 = sor.u32 256, 88
    %1912 = vbcast.lane.b32.xlu0 %v1866, %s1911
    %v1913 = vpop.permute.xlu0 %1912
    %s1915 = sor.u32 256, 96
    %1916 = vbcast.lane.b32.xlu0 %v1866, %s1915
    %v1917 = vpop.permute.xlu0 %1916
    %s1919 = sor.u32 256, 104
    %1920 = vbcast.lane.b32.xlu0 %v1866, %s1919
    %v1921 = vpop.permute.xlu0 %1920
    %s1923 = sor.u32 256, 112
    %1924 = vbcast.lane.b32.xlu0 %v1866, %s1923
    %v1925 = vpop.permute.xlu0 %1924
    %s1927 = sor.u32 256, 120
    %1928 = vbcast.lane.b32.xlu0 %v1866, %s1927
    %v1929 = vpop.permute.xlu0 %1928
    %v1930 = vlaneseq
    %v1931 = vshrl.u32 %v1930, 7
    %v1932 = vsub.s32 7, %v1931
    %v1933 = vrot.slane %v573, %v1932
    %1935 = vbcast.lane.b32.xlu0 %v1933, 256
    %v1936 = vpop.permute.xlu0 %1935
    %s1938 = sor.u32 256, 8
    %1939 = vbcast.lane.b32.xlu0 %v1933, %s1938
    %v1940 = vpop.permute.xlu0 %1939
    %s1942 = sor.u32 256, 16
    %1943 = vbcast.lane.b32.xlu0 %v1933, %s1942
    %v1944 = vpop.permute.xlu0 %1943
    %s1946 = sor.u32 256, 24
    %1947 = vbcast.lane.b32.xlu0 %v1933, %s1946
    %v1948 = vpop.permute.xlu0 %1947
    %s1950 = sor.u32 256, 32
    %1951 = vbcast.lane.b32.xlu0 %v1933, %s1950
    %v1952 = vpop.permute.xlu0 %1951
    %s1954 = sor.u32 256, 40
    %1955 = vbcast.lane.b32.xlu0 %v1933, %s1954
    %v1956 = vpop.permute.xlu0 %1955
    %s1958 = sor.u32 256, 48
    %1959 = vbcast.lane.b32.xlu0 %v1933, %s1958
    %v1960 = vpop.permute.xlu0 %1959
    %s1962 = sor.u32 256, 56
    %1963 = vbcast.lane.b32.xlu0 %v1933, %s1962
    %v1964 = vpop.permute.xlu0 %1963
    %s1966 = sor.u32 256, 64
    %1967 = vbcast.lane.b32.xlu0 %v1933, %s1966
    %v1968 = vpop.permute.xlu0 %1967
    %s1970 = sor.u32 256, 72
    %1971 = vbcast.lane.b32.xlu0 %v1933, %s1970
    %v1972 = vpop.permute.xlu0 %1971
    %s1974 = sor.u32 256, 80
    %1975 = vbcast.lane.b32.xlu0 %v1933, %s1974
    %v1976 = vpop.permute.xlu0 %1975
    %s1978 = sor.u32 256, 88
    %1979 = vbcast.lane.b32.xlu0 %v1933, %s1978
    %v1980 = vpop.permute.xlu0 %1979
    %s1982 = sor.u32 256, 96
    %1983 = vbcast.lane.b32.xlu0 %v1933, %s1982
    %v1984 = vpop.permute.xlu0 %1983
    %s1986 = sor.u32 256, 104
    %1987 = vbcast.lane.b32.xlu0 %v1933, %s1986
    %v1988 = vpop.permute.xlu0 %1987
    %s1990 = sor.u32 256, 112
    %1991 = vbcast.lane.b32.xlu0 %v1933, %s1990
    %v1992 = vpop.permute.xlu0 %1991
    %s1994 = sor.u32 256, 120
    %1995 = vbcast.lane.b32.xlu0 %v1933, %s1994
    %v1996 = vpop.permute.xlu0 %1995
    %v1997 = vsel %vm1333, %v1467, 0.0
    %v1998 = vsel %vm1334, %v1471, 0.0
    %v1999 = vsel %vm1335, %v1475, 0.0
    %v2000 = vsel %vm1336, %v1479, 0.0
    %v2001 = vsel %vm1337, %v1483, 0.0
    %v2002 = vsel %vm1338, %v1487, 0.0
    %v2003 = vsel %vm1339, %v1491, 0.0
    %v2004 = vsel %vm1340, %v1495, 0.0
    %v2005 = vsel %vm1341, %v1499, 0.0
    %v2006 = vsel %vm1342, %v1503, 0.0
    %v2007 = vsel %vm1343, %v1507, 0.0
    %v2008 = vsel %vm1344, %v1511, 0.0
    %v2009 = vsel %vm1345, %v1515, 0.0
    %v2010 = vsel %vm1346, %v1519, 0.0
    %v2011 = vsel %vm1347, %v1523, 0.0
    %v2012 = vsel %vm1348, %v1527, 0.0
    %v2013 = vsel %vm1349, %v1534, 0.0
    %v2014 = vsel %vm1350, %v1538, 0.0
    %v2015 = vsel %vm1351, %v1542, 0.0
    %v2016 = vsel %vm1352, %v1546, 0.0
    %v2017 = vsel %vm1353, %v1550, 0.0
    %v2018 = vsel %vm1354, %v1554, 0.0
    %v2019 = vsel %vm1355, %v1558, 0.0
    %v2020 = vsel %vm1356, %v1562, 0.0
    %v2021 = vsel %vm1357, %v1566, 0.0
    %v2022 = vsel %vm1358, %v1570, 0.0
    %v2023 = vsel %vm1359, %v1574, 0.0
    %v2024 = vsel %vm1360, %v1578, 0.0
    %v2025 = vsel %vm1361, %v1582, 0.0
    %v2026 = vsel %vm1362, %v1586, 0.0
    %v2027 = vsel %vm1363, %v1590, 0.0
    %v2028 = vsel %vm1364, %v1594, 0.0
    %v2029 = vsel %vm1365, %v1601, 0.0
    %v2030 = vsel %vm1366, %v1605, 0.0
    %v2031 = vsel %vm1367, %v1609, 0.0
    %v2032 = vsel %vm1368, %v1613, 0.0
    %v2033 = vsel %vm1369, %v1617, 0.0
    %v2034 = vsel %vm1370, %v1621, 0.0
    %v2035 = vsel %vm1371, %v1625, 0.0
    %v2036 = vsel %vm1372, %v1629, 0.0
    %v2037 = vsel %vm1373, %v1633, 0.0
    %v2038 = vsel %vm1374, %v1637, 0.0
    %v2039 = vsel %vm1375, %v1641, 0.0
    %v2040 = vsel %vm1376, %v1645, 0.0
    %v2041 = vsel %vm1377, %v1649, 0.0
    %v2042 = vsel %vm1378, %v1653, 0.0
    %v2043 = vsel %vm1379, %v1657, 0.0
    %v2044 = vsel %vm1380, %v1661, 0.0
    %v2045 = vsel %vm1381, %v1668, 0.0
    %v2046 = vsel %vm1382, %v1672, 0.0
    %v2047 = vsel %vm1383, %v1676, 0.0
    %v2048 = vsel %vm1384, %v1680, 0.0
    %v2049 = vsel %vm1385, %v1684, 0.0
    %v2050 = vsel %vm1386, %v1688, 0.0
    %v2051 = vsel %vm1387, %v1692, 0.0
    %v2052 = vsel %vm1388, %v1696, 0.0
    %v2053 = vsel %vm1389, %v1700, 0.0
    %v2054 = vsel %vm1390, %v1704, 0.0
    %v2055 = vsel %vm1391, %v1708, 0.0
    %v2056 = vsel %vm1392, %v1712, 0.0
    %v2057 = vsel %vm1393, %v1716, 0.0
    %v2058 = vsel %vm1394, %v1720, 0.0
    %v2059 = vsel %vm1395, %v1724, 0.0
    %v2060 = vsel %vm1396, %v1728, 0.0
    %v2061 = vsel %vm1397, %v1735, 0.0
    %v2062 = vsel %vm1398, %v1739, 0.0
    %v2063 = vsel %vm1399, %v1743, 0.0
    %v2064 = vsel %vm1400, %v1747, 0.0
    %v2065 = vsel %vm1401, %v1751, 0.0
    %v2066 = vsel %vm1402, %v1755, 0.0
    %v2067 = vsel %vm1403, %v1759, 0.0
    %v2068 = vsel %vm1404, %v1763, 0.0
    %v2069 = vsel %vm1405, %v1767, 0.0
    %v2070 = vsel %vm1406, %v1771, 0.0
    %v2071 = vsel %vm1407, %v1775, 0.0
    %v2072 = vsel %vm1408, %v1779, 0.0
    %v2073 = vsel %vm1409, %v1783, 0.0
    %v2074 = vsel %vm1410, %v1787, 0.0
    %v2075 = vsel %vm1411, %v1791, 0.0
    %v2076 = vsel %vm1412, %v1795, 0.0
    %v2077 = vsel %vm1413, %v1802, 0.0
    %v2078 = vsel %vm1414, %v1806, 0.0
    %v2079 = vsel %vm1415, %v1810, 0.0
    %v2080 = vsel %vm1416, %v1814, 0.0
    %v2081 = vsel %vm1417, %v1818, 0.0
    %v2082 = vsel %vm1418, %v1822, 0.0
    %v2083 = vsel %vm1419, %v1826, 0.0
    %v2084 = vsel %vm1420, %v1830, 0.0
    %v2085 = vsel %vm1421, %v1834, 0.0
    %v2086 = vsel %vm1422, %v1838, 0.0
    %v2087 = vsel %vm1423, %v1842, 0.0
    %v2088 = vsel %vm1424, %v1846, 0.0
    %v2089 = vsel %vm1425, %v1850, 0.0
    %v2090 = vsel %vm1426, %v1854, 0.0
    %v2091 = vsel %vm1427, %v1858, 0.0
    %v2092 = vsel %vm1428, %v1862, 0.0
    %v2093 = vsel %vm1429, %v1869, 0.0
    %v2094 = vsel %vm1430, %v1873, 0.0
    %v2095 = vsel %vm1431, %v1877, 0.0
    %v2096 = vsel %vm1432, %v1881, 0.0
    %v2097 = vsel %vm1433, %v1885, 0.0
    %v2098 = vsel %vm1434, %v1889, 0.0
    %v2099 = vsel %vm1435, %v1893, 0.0
    %v2100 = vsel %vm1436, %v1897, 0.0
    %v2101 = vsel %vm1437, %v1901, 0.0
    %v2102 = vsel %vm1438, %v1905, 0.0
    %v2103 = vsel %vm1439, %v1909, 0.0
    %v2104 = vsel %vm1440, %v1913, 0.0
    %v2105 = vsel %vm1441, %v1917, 0.0
    %v2106 = vsel %vm1442, %v1921, 0.0
    %v2107 = vsel %vm1443, %v1925, 0.0
    %v2108 = vsel %vm1444, %v1929, 0.0
    %v2109 = vsel %vm1445, %v1936, 0.0
    %v2110 = vsel %vm1446, %v1940, 0.0
    %v2111 = vsel %vm1447, %v1944, 0.0
    %v2112 = vsel %vm1448, %v1948, 0.0
    %v2113 = vsel %vm1449, %v1952, 0.0
    %v2114 = vsel %vm1450, %v1956, 0.0
    %v2115 = vsel %vm1451, %v1960, 0.0
    %v2116 = vsel %vm1452, %v1964, 0.0
    %v2117 = vsel %vm1453, %v1968, 0.0
    %v2118 = vsel %vm1454, %v1972, 0.0
    %v2119 = vsel %vm1455, %v1976, 0.0
    %v2120 = vsel %vm1456, %v1980, 0.0
    %v2121 = vsel %vm1457, %v1984, 0.0
    %v2122 = vsel %vm1458, %v1988, 0.0
    %v2123 = vsel %vm1459, %v1992, 0.0
    %v2124 = vsel %vm1460, %v1996, 0.0
    %v2125 = vld [vmem:[%s5] sm:$0xff]
    %v2126 = vld [vmem:[%s5 + $0x8] sm:$0xff]
    %v2127 = vld [vmem:[%s5 + $0x10] sm:$0xff]
    %v2128 = vld [vmem:[%s5 + $0x18] sm:$0xff]
    %v2129 = vld [vmem:[%s5 + $0x20] sm:$0xff]
    %v2130 = vld [vmem:[%s5 + $0x28] sm:$0xff]
    %v2131 = vld [vmem:[%s5 + $0x30] sm:$0xff]
    %v2132 = vld [vmem:[%s5 + $0x38] sm:$0xff]
    %v2133 = vld [vmem:[%s5 + $0x40] sm:$0xff]
    %v2134 = vld [vmem:[%s5 + $0x48] sm:$0xff]
    %v2135 = vld [vmem:[%s5 + $0x50] sm:$0xff]
    %v2136 = vld [vmem:[%s5 + $0x58] sm:$0xff]
    %v2137 = vld [vmem:[%s5 + $0x60] sm:$0xff]
    %v2138 = vld [vmem:[%s5 + $0x68] sm:$0xff]
    %v2139 = vld [vmem:[%s5 + $0x70] sm:$0xff]
    %v2140 = vld [vmem:[%s5 + $0x78] sm:$0xff]
    %v2141 = vld [vmem:[%s5 + $0x80] sm:$0xff]
    %v2142 = vld [vmem:[%s5 + $0x88] sm:$0xff]
    %v2143 = vld [vmem:[%s5 + $0x90] sm:$0xff]
    %v2144 = vld [vmem:[%s5 + $0x98] sm:$0xff]
    %v2145 = vld [vmem:[%s5 + $0xa0] sm:$0xff]
    %v2146 = vld [vmem:[%s5 + $0xa8] sm:$0xff]
    %v2147 = vld [vmem:[%s5 + $0xb0] sm:$0xff]
    %v2148 = vld [vmem:[%s5 + $0xb8] sm:$0xff]
    %v2149 = vld [vmem:[%s5 + $0xc0] sm:$0xff]
    %v2150 = vld [vmem:[%s5 + $0xc8] sm:$0xff]
    %v2151 = vld [vmem:[%s5 + $0xd0] sm:$0xff]
    %v2152 = vld [vmem:[%s5 + $0xd8] sm:$0xff]
    %v2153 = vld [vmem:[%s5 + $0xe0] sm:$0xff]
    %v2154 = vld [vmem:[%s5 + $0xe8] sm:$0xff]
    %v2155 = vld [vmem:[%s5 + $0xf0] sm:$0xff]
    %v2156 = vld [vmem:[%s5 + $0xf8] sm:$0xff]
    %2157 = vmatprep.subr.mxu0 0.0
    %2158 = vmatpush1.msra.mxu0 %v1997
    %2159 = vmatprep.subr.mxu0 0.0
    %2160 = vmatpush1.msra.mxu0 %v1998
    %2161 = vmatprep.subr.mxu0 0.0
    %2162 = vmatpush1.msra.mxu0 %v1999
    %2163 = vmatprep.subr.mxu0 0.0
    %2164 = vmatpush1.msra.mxu0 %v2000
    %2165 = vmatprep.subr.mxu0 0.0
    %2166 = vmatpush1.msra.mxu0 %v2001
    %2167 = vmatprep.subr.mxu0 0.0
    %2168 = vmatpush1.msra.mxu0 %v2002
    %2169 = vmatprep.subr.mxu0 0.0
    %2170 = vmatpush1.msra.mxu0 %v2003
    %2171 = vmatprep.subr.mxu0 0.0
    %2172 = vmatpush1.msra.mxu0 %v2004
    %2173 = vmatprep.subr.mxu0 0.0
    %2174 = vmatpush1.msra.mxu0 %v2005
    %2175 = vmatprep.subr.mxu0 0.0
    %2176 = vmatpush1.msra.mxu0 %v2006
    %2177 = vmatprep.subr.mxu0 0.0
    %2178 = vmatpush1.msra.mxu0 %v2007
    %2179 = vmatprep.subr.mxu0 0.0
    %2180 = vmatpush1.msra.mxu0 %v2008
    %2181 = vmatprep.subr.mxu0 0.0
    %2182 = vmatpush1.msra.mxu0 %v2009
    %2183 = vmatprep.subr.mxu0 0.0
    %2184 = vmatpush1.msra.mxu0 %v2010
    %2185 = vmatprep.subr.mxu0 0.0
    %2186 = vmatpush1.msra.mxu0 %v2011
    %2187 = vmatprep.subr.mxu0 0.0
    %2188 = vmatpush1.msra.mxu0 %v2012
    %2189 = vmatprep.subr.mxu0 0.0
    %2190 = vmatpush1.msra.mxu0 %v2013
    %2191 = vmatprep.subr.mxu0 0.0
    %2192 = vmatpush1.msra.mxu0 %v2014
    %2193 = vmatprep.subr.mxu0 0.0
    %2194 = vmatpush1.msra.mxu0 %v2015
    %2195 = vmatprep.subr.mxu0 0.0
    %2196 = vmatpush1.msra.mxu0 %v2016
    %2197 = vmatprep.subr.mxu0 0.0
    %2198 = vmatpush1.msra.mxu0 %v2017
    %2199 = vmatprep.subr.mxu0 0.0
    %2200 = vmatpush1.msra.mxu0 %v2018
    %2201 = vmatprep.subr.mxu0 0.0
    %2202 = vmatpush1.msra.mxu0 %v2019
    %2203 = vmatprep.subr.mxu0 0.0
    %2204 = vmatpush1.msra.mxu0 %v2020
    %2205 = vmatprep.subr.mxu0 0.0
    %2206 = vmatpush1.msra.mxu0 %v2021
    %2207 = vmatprep.subr.mxu0 0.0
    %2208 = vmatpush1.msra.mxu0 %v2022
    %2209 = vmatprep.subr.mxu0 0.0
    %2210 = vmatpush1.msra.mxu0 %v2023
    %2211 = vmatprep.subr.mxu0 0.0
    %2212 = vmatpush1.msra.mxu0 %v2024
    %2213 = vmatprep.subr.mxu0 0.0
    %2214 = vmatpush1.msra.mxu0 %v2025
    %2215 = vmatprep.subr.mxu0 0.0
    %2216 = vmatpush1.msra.mxu0 %v2026
    %2217 = vmatprep.subr.mxu0 0.0
    %2218 = vmatpush1.msra.mxu0 %v2027
    %2219 = vmatprep.subr.mxu0 0.0
    %2220 = vmatpush1.msra.mxu0 %v2028
    %2221 = vmatprep.mubr.f32.mxu0 %v2126
    %2222 = vmatmul.mubr.f32.gmra.mrb[0].mxu0 %v2125
    %v2223 = vpop.f32.mrb[0].mxu0
    %v2224 = vadd.f32 0.0, %v2223
    %v2225 = vpop.f32.mrb[0].mxu0
    %2226 = vmatprep.mubr.f32.mxu0 %v2134
    %2227 = vmatmul.mubr.f32.gmra.mrb[0].mxu0 %v2133
    %v2228 = vpop.f32.mrb[0].mxu0
    %v2229 = vadd.f32 0.0, %v2228
    %v2230 = vpop.f32.mrb[0].mxu0
    %2231 = vmatprep.mubr.f32.mxu0 %v2142
    %2232 = vmatmul.mubr.f32.gmra.mrb[0].mxu0 %v2141
    %v2233 = vpop.f32.mrb[0].mxu0
    %v2234 = vadd.f32 0.0, %v2233
    %v2235 = vpop.f32.mrb[0].mxu0
    %2236 = vmatprep.mubr.f32.mxu0 %v2150
    %2237 = vmatmul.mubr.f32.gmra.mrb[0].mxu0 %v2149
    %v2238 = vpop.f32.mrb[0].mxu0
    %v2239 = vadd.f32 0.0, %v2238
    %v2240 = vpop.f32.mrb[0].mxu0
    %2241 = vdwg.mxu0
    %2242 = vmatprep.subr.mxu0 0.0
    %2243 = vmatpush1.msra.mxu0 %v2029
    %2244 = vmatprep.subr.mxu0 0.0
    %2245 = vmatpush1.msra.mxu0 %v2030
    %2246 = vmatprep.subr.mxu0 0.0
    %2247 = vmatpush1.msra.mxu0 %v2031
    %2248 = vmatprep.subr.mxu0 0.0
    %2249 = vmatpush1.msra.mxu0 %v2032
    %2250 = vmatprep.subr.mxu0 0.0
    %2251 = vmatpush1.msra.mxu0 %v2033
    %2252 = vmatprep.subr.mxu0 0.0
    %2253 = vmatpush1.msra.mxu0 %v2034
    %2254 = vmatprep.subr.mxu0 0.0
    %2255 = vmatpush1.msra.mxu0 %v2035
    %2256 = vmatprep.subr.mxu0 0.0
    %2257 = vmatpush1.msra.mxu0 %v2036
    %2258 = vmatprep.subr.mxu0 0.0
    %2259 = vmatpush1.msra.mxu0 %v2037
    %2260 = vmatprep.subr.mxu0 0.0
    %2261 = vmatpush1.msra.mxu0 %v2038
    %2262 = vmatprep.subr.mxu0 0.0
    %2263 = vmatpush1.msra.mxu0 %v2039
    %2264 = vmatprep.subr.mxu0 0.0
    %2265 = vmatpush1.msra.mxu0 %v2040
    %2266 = vmatprep.subr.mxu0 0.0
    %2267 = vmatpush1.msra.mxu0 %v2041
    %2268 = vmatprep.subr.mxu0 0.0
    %2269 = vmatpush1.msra.mxu0 %v2042
    %2270 = vmatprep.subr.mxu0 0.0
    %2271 = vmatpush1.msra.mxu0 %v2043
    %2272 = vmatprep.subr.mxu0 0.0
    %2273 = vmatpush1.msra.mxu0 %v2044
    %2274 = vmatprep.subr.mxu0 0.0
    %2275 = vmatpush1.msra.mxu0 %v2045
    %2276 = vmatprep.subr.mxu0 0.0
    %2277 = vmatpush1.msra.mxu0 %v2046
    %2278 = vmatprep.subr.mxu0 0.0
    %2279 = vmatpush1.msra.mxu0 %v2047
    %2280 = vmatprep.subr.mxu0 0.0
    %2281 = vmatpush1.msra.mxu0 %v2048
    %2282 = vmatprep.subr.mxu0 0.0
    %2283 = vmatpush1.msra.mxu0 %v2049
    %2284 = vmatprep.subr.mxu0 0.0
    %2285 = vmatpush1.msra.mxu0 %v2050
    %2286 = vmatprep.subr.mxu0 0.0
    %2287 = vmatpush1.msra.mxu0 %v2051
    %2288 = vmatprep.subr.mxu0 0.0
    %2289 = vmatpush1.msra.mxu0 %v2052
    %2290 = vmatprep.subr.mxu0 0.0
    %2291 = vmatpush1.msra.mxu0 %v2053
    %2292 = vmatprep.subr.mxu0 0.0
    %2293 = vmatpush1.msra.mxu0 %v2054
    %2294 = vmatprep.subr.mxu0 0.0
    %2295 = vmatpush1.msra.mxu0 %v2055
    %2296 = vmatprep.subr.mxu0 0.0
    %2297 = vmatpush1.msra.mxu0 %v2056
    %2298 = vmatprep.subr.mxu0 0.0
    %2299 = vmatpush1.msra.mxu0 %v2057
    %2300 = vmatprep.subr.mxu0 0.0
    %2301 = vmatpush1.msra.mxu0 %v2058
    %2302 = vmatprep.subr.mxu0 0.0
    %2303 = vmatpush1.msra.mxu0 %v2059
    %2304 = vmatprep.subr.mxu0 0.0
    %2305 = vmatpush1.msra.mxu0 %v2060
    %2306 = vmatprep.mubr.f32.mxu0 %v2128
    %2307 = vmatmul.mubr.f32.gmra.mrb[0].mxu0 %v2127
    %v2308 = vpop.f32.mrb[0].mxu0
    %v2309 = vadd.f32 %v2224, %v2308
    %v2310 = vpop.f32.mrb[0].mxu0
    %2311 = vmatprep.mubr.f32.mxu0 %v2136
    %2312 = vmatmul.mubr.f32.gmra.mrb[0].mxu0 %v2135
    %v2313 = vpop.f32.mrb[0].mxu0
    %v2314 = vadd.f32 %v2229, %v2313
    %v2315 = vpop.f32.mrb[0].mxu0
    %2316 = vmatprep.mubr.f32.mxu0 %v2144
    %2317 = vmatmul.mubr.f32.gmra.mrb[0].mxu0 %v2143
    %v2318 = vpop.f32.mrb[0].mxu0
    %v2319 = vadd.f32 %v2234, %v2318
    %v2320 = vpop.f32.mrb[0].mxu0
    %2321 = vmatprep.mubr.f32.mxu0 %v2152
    %2322 = vmatmul.mubr.f32.gmra.mrb[0].mxu0 %v2151
    %v2323 = vpop.f32.mrb[0].mxu0
    %v2324 = vadd.f32 %v2239, %v2323
    %v2325 = vpop.f32.mrb[0].mxu0
    %2326 = vdwg.mxu0
    %2327 = vmatprep.subr.mxu0 0.0
    %2328 = vmatpush1.msra.mxu0 %v2061
    %2329 = vmatprep.subr.mxu0 0.0
    %2330 = vmatpush1.msra.mxu0 %v2062
    %2331 = vmatprep.subr.mxu0 0.0
    %2332 = vmatpush1.msra.mxu0 %v2063
    %2333 = vmatprep.subr.mxu0 0.0
    %2334 = vmatpush1.msra.mxu0 %v2064
    %2335 = vmatprep.subr.mxu0 0.0
    %2336 = vmatpush1.msra.mxu0 %v2065
    %2337 = vmatprep.subr.mxu0 0.0
    %2338 = vmatpush1.msra.mxu0 %v2066
    %2339 = vmatprep.subr.mxu0 0.0
    %2340 = vmatpush1.msra.mxu0 %v2067
    %2341 = vmatprep.subr.mxu0 0.0
    %2342 = vmatpush1.msra.mxu0 %v2068
    %2343 = vmatprep.subr.mxu0 0.0
    %2344 = vmatpush1.msra.mxu0 %v2069
    %2345 = vmatprep.subr.mxu0 0.0
    %2346 = vmatpush1.msra.mxu0 %v2070
    %2347 = vmatprep.subr.mxu0 0.0
    %2348 = vmatpush1.msra.mxu0 %v2071
    %2349 = vmatprep.subr.mxu0 0.0
    %2350 = vmatpush1.msra.mxu0 %v2072
    %2351 = vmatprep.subr.mxu0 0.0
    %2352 = vmatpush1.msra.mxu0 %v2073
    %2353 = vmatprep.subr.mxu0 0.0
    %2354 = vmatpush1.msra.mxu0 %v2074
    %2355 = vmatprep.subr.mxu0 0.0
    %2356 = vmatpush1.msra.mxu0 %v2075
    %2357 = vmatprep.subr.mxu0 0.0
    %2358 = vmatpush1.msra.mxu0 %v2076
    %2359 = vmatprep.subr.mxu0 0.0
    %2360 = vmatpush1.msra.mxu0 %v2077
    %2361 = vmatprep.subr.mxu0 0.0
    %2362 = vmatpush1.msra.mxu0 %v2078
    %2363 = vmatprep.subr.mxu0 0.0
    %2364 = vmatpush1.msra.mxu0 %v2079
    %2365 = vmatprep.subr.mxu0 0.0
    %2366 = vmatpush1.msra.mxu0 %v2080
    %2367 = vmatprep.subr.mxu0 0.0
    %2368 = vmatpush1.msra.mxu0 %v2081
    %2369 = vmatprep.subr.mxu0 0.0
    %2370 = vmatpush1.msra.mxu0 %v2082
    %2371 = vmatprep.subr.mxu0 0.0
    %2372 = vmatpush1.msra.mxu0 %v2083
    %2373 = vmatprep.subr.mxu0 0.0
    %2374 = vmatpush1.msra.mxu0 %v2084
    %2375 = vmatprep.subr.mxu0 0.0
    %2376 = vmatpush1.msra.mxu0 %v2085
    %2377 = vmatprep.subr.mxu0 0.0
    %2378 = vmatpush1.msra.mxu0 %v2086
    %2379 = vmatprep.subr.mxu0 0.0
    %2380 = vmatpush1.msra.mxu0 %v2087
    %2381 = vmatprep.subr.mxu0 0.0
    %2382 = vmatpush1.msra.mxu0 %v2088
    %2383 = vmatprep.subr.mxu0 0.0
    %2384 = vmatpush1.msra.mxu0 %v2089
    %2385 = vmatprep.subr.mxu0 0.0
    %2386 = vmatpush1.msra.mxu0 %v2090
    %2387 = vmatprep.subr.mxu0 0.0
    %2388 = vmatpush1.msra.mxu0 %v2091
    %2389 = vmatprep.subr.mxu0 0.0
    %2390 = vmatpush1.msra.mxu0 %v2092
    %2391 = vmatprep.mubr.f32.mxu0 %v2130
    %2392 = vmatmul.mubr.f32.gmra.mrb[0].mxu0 %v2129
    %v2393 = vpop.f32.mrb[0].mxu0
    %v2394 = vadd.f32 %v2309, %v2393
    %v2395 = vpop.f32.mrb[0].mxu0
    %2396 = vmatprep.mubr.f32.mxu0 %v2138
    %2397 = vmatmul.mubr.f32.gmra.mrb[0].mxu0 %v2137
    %v2398 = vpop.f32.mrb[0].mxu0
    %v2399 = vadd.f32 %v2314, %v2398
    %v2400 = vpop.f32.mrb[0].mxu0
    %2401 = vmatprep.mubr.f32.mxu0 %v2146
    %2402 = vmatmul.mubr.f32.gmra.mrb[0].mxu0 %v2145
    %v2403 = vpop.f32.mrb[0].mxu0
    %v2404 = vadd.f32 %v2319, %v2403
    %v2405 = vpop.f32.mrb[0].mxu0
    %2406 = vmatprep.mubr.f32.mxu0 %v2154
    %2407 = vmatmul.mubr.f32.gmra.mrb[0].mxu0 %v2153
    %v2408 = vpop.f32.mrb[0].mxu0
    %v2409 = vadd.f32 %v2324, %v2408
    %v2410 = vpop.f32.mrb[0].mxu0
    %2411 = vdwg.mxu0
    %2412 = vmatprep.subr.mxu0 0.0
    %2413 = vmatpush1.msra.mxu0 %v2093
    %2414 = vmatprep.subr.mxu0 0.0
    %2415 = vmatpush1.msra.mxu0 %v2094
    %2416 = vmatprep.subr.mxu0 0.0
    %2417 = vmatpush1.msra.mxu0 %v2095
    %2418 = vmatprep.subr.mxu0 0.0
    %2419 = vmatpush1.msra.mxu0 %v2096
    %2420 = vmatprep.subr.mxu0 0.0
    %2421 = vmatpush1.msra.mxu0 %v2097
    %2422 = vmatprep.subr.mxu0 0.0
    %2423 = vmatpush1.msra.mxu0 %v2098
    %2424 = vmatprep.subr.mxu0 0.0
    %2425 = vmatpush1.msra.mxu0 %v2099
    %2426 = vmatprep.subr.mxu0 0.0
    %2427 = vmatpush1.msra.mxu0 %v2100
    %2428 = vmatprep.subr.mxu0 0.0
    %2429 = vmatpush1.msra.mxu0 %v2101
    %2430 = vmatprep.subr.mxu0 0.0
    %2431 = vmatpush1.msra.mxu0 %v2102
    %2432 = vmatprep.subr.mxu0 0.0
    %2433 = vmatpush1.msra.mxu0 %v2103
    %2434 = vmatprep.subr.mxu0 0.0
    %2435 = vmatpush1.msra.mxu0 %v2104
    %2436 = vmatprep.subr.mxu0 0.0
    %2437 = vmatpush1.msra.mxu0 %v2105
    %2438 = vmatprep.subr.mxu0 0.0
    %2439 = vmatpush1.msra.mxu0 %v2106
    %2440 = vmatprep.subr.mxu0 0.0
    %2441 = vmatpush1.msra.mxu0 %v2107
    %2442 = vmatprep.subr.mxu0 0.0
    %2443 = vmatpush1.msra.mxu0 %v2108
    %2444 = vmatprep.subr.mxu0 0.0
    %2445 = vmatpush1.msra.mxu0 %v2109
    %2446 = vmatprep.subr.mxu0 0.0
    %2447 = vmatpush1.msra.mxu0 %v2110
    %2448 = vmatprep.subr.mxu0 0.0
    %2449 = vmatpush1.msra.mxu0 %v2111
    %2450 = vmatprep.subr.mxu0 0.0
    %2451 = vmatpush1.msra.mxu0 %v2112
    %2452 = vmatprep.subr.mxu0 0.0
    %2453 = vmatpush1.msra.mxu0 %v2113
    %2454 = vmatprep.subr.mxu0 0.0
    %2455 = vmatpush1.msra.mxu0 %v2114
    %2456 = vmatprep.subr.mxu0 0.0
    %2457 = vmatpush1.msra.mxu0 %v2115
    %2458 = vmatprep.subr.mxu0 0.0
    %2459 = vmatpush1.msra.mxu0 %v2116
    %2460 = vmatprep.subr.mxu0 0.0
    %2461 = vmatpush1.msra.mxu0 %v2117
    %2462 = vmatprep.subr.mxu0 0.0
    %2463 = vmatpush1.msra.mxu0 %v2118
    %2464 = vmatprep.subr.mxu0 0.0
    %2465 = vmatpush1.msra.mxu0 %v2119
    %2466 = vmatprep.subr.mxu0 0.0
    %2467 = vmatpush1.msra.mxu0 %v2120
    %2468 = vmatprep.subr.mxu0 0.0
    %2469 = vmatpush1.msra.mxu0 %v2121
    %2470 = vmatprep.subr.mxu0 0.0
    %2471 = vmatpush1.msra.mxu0 %v2122
    %2472 = vmatprep.subr.mxu0 0.0
    %2473 = vmatpush1.msra.mxu0 %v2123
    %2474 = vmatprep.subr.mxu0 0.0
    %2475 = vmatpush1.msra.mxu0 %v2124
    %2476 = vmatprep.mubr.f32.mxu0 %v2132
    %2477 = vmatmul.mubr.f32.gmra.mrb[0].mxu0 %v2131
    %v2478 = vpop.f32.mrb[0].mxu0
    %v2479 = vadd.f32 %v2394, %v2478
    %v2480 = vpop.f32.mrb[0].mxu0
    %2481 = vmatprep.mubr.f32.mxu0 %v2140
    %2482 = vmatmul.mubr.f32.gmra.mrb[0].mxu0 %v2139
    %v2483 = vpop.f32.mrb[0].mxu0
    %v2484 = vadd.f32 %v2399, %v2483
    %v2485 = vpop.f32.mrb[0].mxu0
    %2486 = vmatprep.mubr.f32.mxu0 %v2148
    %2487 = vmatmul.mubr.f32.gmra.mrb[0].mxu0 %v2147
    %v2488 = vpop.f32.mrb[0].mxu0
    %v2489 = vadd.f32 %v2404, %v2488
    %v2490 = vpop.f32.mrb[0].mxu0
    %2491 = vmatprep.mubr.f32.mxu0 %v2156
    %2492 = vmatmul.mubr.f32.gmra.mrb[0].mxu0 %v2155
    %v2493 = vpop.f32.mrb[0].mxu0
    %v2494 = vadd.f32 %v2409, %v2493
    %v2495 = vpop.f32.mrb[0].mxu0
    %2496 = vdwg.mxu0
    %2497 = vmatprep.subr.mxu0 0.0
    %2498 = vmatpush1.msra.mxu0 %v719
    %2499 = vmatprep.subr.mxu0 0.0
    %2500 = vmatpush1.msra.mxu0 %v724
    %2501 = vmatprep.subr.mxu0 0.0
    %2502 = vmatpush1.msra.mxu0 %v729
    %2503 = vmatprep.subr.mxu0 0.0
    %2504 = vmatpush1.msra.mxu0 %v734
    %2505 = vmatprep.subr.mxu0 0.0
    %2506 = vmatpush1.msra.mxu0 %v739
    %2507 = vmatprep.subr.mxu0 0.0
    %2508 = vmatpush1.msra.mxu0 %v744
    %2509 = vmatprep.subr.mxu0 0.0
    %2510 = vmatpush1.msra.mxu0 %v749
    %2511 = vmatprep.subr.mxu0 0.0
    %2512 = vmatpush1.msra.mxu0 %v754
    %2513 = vmatprep.subr.mxu0 0.0
    %2514 = vmatpush1.msra.mxu0 %v759
    %2515 = vmatprep.subr.mxu0 0.0
    %2516 = vmatpush1.msra.mxu0 %v764
    %2517 = vmatprep.subr.mxu0 0.0
    %2518 = vmatpush1.msra.mxu0 %v769
    %2519 = vmatprep.subr.mxu0 0.0
    %2520 = vmatpush1.msra.mxu0 %v774
    %2521 = vmatprep.subr.mxu0 0.0
    %2522 = vmatpush1.msra.mxu0 %v779
    %2523 = vmatprep.subr.mxu0 0.0
    %2524 = vmatpush1.msra.mxu0 %v784
    %2525 = vmatprep.subr.mxu0 0.0
    %2526 = vmatpush1.msra.mxu0 %v789
    %2527 = vmatprep.subr.mxu0 0.0
    %2528 = vmatpush1.msra.mxu0 %v794
    %2529 = vmatprep.subr.mxu0 0.0
    %2530 = vmatpush1.msra.mxu0 0.0
    %2531 = vmatprep.subr.mxu0 0.0
    %2532 = vmatpush1.msra.mxu0 0.0
    %2533 = vmatprep.subr.mxu0 0.0
    %2534 = vmatpush1.msra.mxu0 0.0
    %2535 = vmatprep.subr.mxu0 0.0
    %2536 = vmatpush1.msra.mxu0 0.0
    %2537 = vmatprep.subr.mxu0 0.0
    %2538 = vmatpush1.msra.mxu0 0.0
    %2539 = vmatprep.subr.mxu0 0.0
    %2540 = vmatpush1.msra.mxu0 0.0
    %2541 = vmatprep.subr.mxu0 0.0
    %2542 = vmatpush1.msra.mxu0 0.0
    %2543 = vmatprep.subr.mxu0 0.0
    %2544 = vmatpush1.msra.mxu0 0.0
    %2545 = vmatprep.subr.mxu0 0.0
    %2546 = vmatpush1.msra.mxu0 0.0
    %2547 = vmatprep.subr.mxu0 0.0
    %2548 = vmatpush1.msra.mxu0 0.0
    %2549 = vmatprep.subr.mxu0 0.0
    %2550 = vmatpush1.msra.mxu0 0.0
    %2551 = vmatprep.subr.mxu0 0.0
    %2552 = vmatpush1.msra.mxu0 0.0
    %2553 = vmatprep.subr.mxu0 0.0
    %2554 = vmatpush1.msra.mxu0 0.0
    %2555 = vmatprep.subr.mxu0 0.0
    %2556 = vmatpush1.msra.mxu0 0.0
    %2557 = vmatprep.subr.mxu0 0.0
    %2558 = vmatpush1.msra.mxu0 0.0
    %2559 = vmatprep.subr.mxu0 0.0
    %2560 = vmatpush1.msra.mxu0 0.0
    %2561 = vmatprep.mubr.f32.mxu0 0.0
    %2562 = vmatmul.mubr.f32.gmra.mrb[0].mxu0 %v2479
    %v2563 = vpop.f32.mrb[0].mxu0
    %v2564 = vadd.f32 0.0, %v2563
    %v2565 = vpop.f32.mrb[0].mxu0
    %2566 = vmatprep.mubr.f32.mxu0 0.0
    %2567 = vmatmul.mubr.f32.gmra.mrb[0].mxu0 %v2484
    %v2568 = vpop.f32.mrb[0].mxu0
    %v2569 = vadd.f32 0.0, %v2568
    %v2570 = vpop.f32.mrb[0].mxu0
    %2571 = vmatprep.mubr.f32.mxu0 0.0
    %2572 = vmatmul.mubr.f32.gmra.mrb[0].mxu0 %v2489
    %v2573 = vpop.f32.mrb[0].mxu0
    %v2574 = vadd.f32 0.0, %v2573
    %v2575 = vpop.f32.mrb[0].mxu0
    %2576 = vmatprep.mubr.f32.mxu0 0.0
    %2577 = vmatmul.mubr.f32.gmra.mrb[0].mxu0 %v2494
    %v2578 = vpop.f32.mrb[0].mxu0
    %v2579 = vadd.f32 0.0, %v2578
    %v2580 = vpop.f32.mrb[0].mxu0
    %2581 = vdwg.mxu0
    %v2582 = vld [vmem:[%s6] sm:$0xff]
    %v2583 = vld [vmem:[%s6 + $0x8] sm:$0xff]
    %v2584 = vld [vmem:[%s6 + $0x10] sm:$0xff]
    %v2585 = vld [vmem:[%s6 + $0x18] sm:$0xff]
    %v2586 = vmul.f32 %v2564, %v2582
    %v2587 = vmul.f32 %v2569, %v2583
    %v2588 = vmul.f32 %v2574, %v2584
    %v2589 = vmul.f32 %v2579, %v2585
    %v2590 = vsel %vm124, %v2586, 0.0
    %v2591 = vsel %vm124, %v2587, 0.0
    %v2592 = vadd.f32 %v2590, %v2591
    %v2593 = vsel %vm124, %v2588, 0.0
    %v2594 = vadd.f32 %v2592, %v2593
    %v2595 = vsel %vm124, %v2589, 0.0
    %v2596 = vadd.f32 %v2594, %v2595
    %s2597 = scalar_lea.vmem %s1, 128
    %v2598 = vld [vmem:[%s2597] sm:$0xff]
    %v2599 = vld [vmem:[%s2597 + $0x8] sm:$0xff]
    %v2600 = vld [vmem:[%s2597 + $0x10] sm:$0xff]
    %v2601 = vld [vmem:[%s2597 + $0x18] sm:$0xff]
    %v2602 = vld [vmem:[%s2597 + $0x20] sm:$0xff]
    %v2603 = vld [vmem:[%s2597 + $0x28] sm:$0xff]
    %v2604 = vld [vmem:[%s2597 + $0x30] sm:$0xff]
    %v2605 = vld [vmem:[%s2597 + $0x38] sm:$0xff]
    %v2606 = vld [vmem:[%s2597 + $0x40] sm:$0xff]
    %v2607 = vld [vmem:[%s2597 + $0x48] sm:$0xff]
    %v2608 = vld [vmem:[%s2597 + $0x50] sm:$0xff]
    %v2609 = vld [vmem:[%s2597 + $0x58] sm:$0xff]
    %v2610 = vld [vmem:[%s2597 + $0x60] sm:$0xff]
    %v2611 = vld [vmem:[%s2597 + $0x68] sm:$0xff]
    %v2612 = vld [vmem:[%s2597 + $0x70] sm:$0xff]
    %v2613 = vld [vmem:[%s2597 + $0x78] sm:$0xff]
    %v2615 = vsel %vm124, %v2598, 0
    %v2618 = vsel %vm124, %v2599, 0
    %v2621 = vsel %vm124, %v2600, 0
    %v2624 = vsel %vm124, %v2601, 0
    %v2627 = vsel %vm124, %v2602, 0
    %v2630 = vsel %vm124, %v2603, 0
    %v2633 = vsel %vm124, %v2604, 0
    %v2636 = vsel %vm124, %v2605, 0
    %v2639 = vsel %vm124, %v2606, 0
    %v2642 = vsel %vm124, %v2607, 0
    %v2645 = vsel %vm124, %v2608, 0
    %v2648 = vsel %vm124, %v2609, 0
    %v2651 = vsel %vm124, %v2610, 0
    %v2654 = vsel %vm124, %v2611, 0
    %v2657 = vsel %vm124, %v2612, 0
    %v2660 = vsel %vm124, %v2613, 0
    %2662 = vmatprep.subr.mxu0 0.0
    %2663 = vmatpush1.msra.mxu0 %v593
    %2664 = vmatprep.subr.mxu0 0.0
    %2665 = vmatpush1.msra.mxu0 %v594
    %2666 = vmatprep.subr.mxu0 0.0
    %2667 = vmatpush1.msra.mxu0 %v595
    %2668 = vmatprep.subr.mxu0 0.0
    %2669 = vmatpush1.msra.mxu0 %v596
    %2670 = vmatprep.subr.mxu0 0.0
    %2671 = vmatpush1.msra.mxu0 0.0
    %2672 = vmatprep.subr.mxu0 0.0
    %2673 = vmatpush1.msra.mxu0 0.0
    %2674 = vmatprep.subr.mxu0 0.0
    %2675 = vmatpush1.msra.mxu0 0.0
    %2676 = vmatprep.subr.mxu0 0.0
    %2677 = vmatpush1.msra.mxu0 0.0
    %2678 = vmatprep.subr.mxu0 0.0
    %2679 = vmatpush1.msra.mxu0 0.0
    %2680 = vmatprep.subr.mxu0 0.0
    %2681 = vmatpush1.msra.mxu0 0.0
    %2682 = vmatprep.subr.mxu0 0.0
    %2683 = vmatpush1.msra.mxu0 0.0
    %2684 = vmatprep.subr.mxu0 0.0
    %2685 = vmatpush1.msra.mxu0 0.0
    %2686 = vmatprep.subr.mxu0 0.0
    %2687 = vmatpush1.msra.mxu0 0.0
    %2688 = vmatprep.subr.mxu0 0.0
    %2689 = vmatpush1.msra.mxu0 0.0
    %2690 = vmatprep.subr.mxu0 0.0
    %2691 = vmatpush1.msra.mxu0 0.0
    %2692 = vmatprep.subr.mxu0 0.0
    %2693 = vmatpush1.msra.mxu0 0.0
    %2694 = vmatprep.subr.mxu0 0.0
    %2695 = vmatpush1.msra.mxu0 0.0
    %2696 = vmatprep.subr.mxu0 0.0
    %2697 = vmatpush1.msra.mxu0 0.0
    %2698 = vmatprep.subr.mxu0 0.0
    %2699 = vmatpush1.msra.mxu0 0.0
    %2700 = vmatprep.subr.mxu0 0.0
    %2701 = vmatpush1.msra.mxu0 0.0
    %2702 = vmatprep.subr.mxu0 0.0
    %2703 = vmatpush1.msra.mxu0 0.0
    %2704 = vmatprep.subr.mxu0 0.0
    %2705 = vmatpush1.msra.mxu0 0.0
    %2706 = vmatprep.subr.mxu0 0.0
    %2707 = vmatpush1.msra.mxu0 0.0
    %2708 = vmatprep.subr.mxu0 0.0
    %2709 = vmatpush1.msra.mxu0 0.0
    %2710 = vmatprep.subr.mxu0 0.0
    %2711 = vmatpush1.msra.mxu0 0.0
    %2712 = vmatprep.subr.mxu0 0.0
    %2713 = vmatpush1.msra.mxu0 0.0
    %2714 = vmatprep.subr.mxu0 0.0
    %2715 = vmatpush1.msra.mxu0 0.0
    %2716 = vmatprep.subr.mxu0 0.0
    %2717 = vmatpush1.msra.mxu0 0.0
    %2718 = vmatprep.subr.mxu0 0.0
    %2719 = vmatpush1.msra.mxu0 0.0
    %2720 = vmatprep.subr.mxu0 0.0
    %2721 = vmatpush1.msra.mxu0 0.0
    %2722 = vmatprep.subr.mxu0 0.0
    %2723 = vmatpush1.msra.mxu0 0.0
    %2724 = vmatprep.subr.mxu0 0.0
    %2725 = vmatpush1.msra.mxu0 0.0
    %2726 = vmatprep.mubr.f32.mxu0 0.0
    %2727 = vmatmul.mubr.f32.gmra.mrb[0].mxu0 %v2615
    %v2728 = vpop.f32.mrb[0].mxu0
    %v2729 = vadd.f32 %v602, %v2728
    %v2730 = vpop.f32.mrb[0].mxu0
    %2731 = vmatprep.mubr.f32.mxu0 0.0
    %2732 = vmatmul.mubr.f32.gmra.mrb[0].mxu0 %v2618
    %v2733 = vpop.f32.mrb[0].mxu0
    %v2734 = vadd.f32 %v602, %v2733
    %v2735 = vpop.f32.mrb[0].mxu0
    %2736 = vmatprep.mubr.f32.mxu0 0.0
    %2737 = vmatmul.mubr.f32.gmra.mrb[0].mxu0 %v2621
    %v2738 = vpop.f32.mrb[0].mxu0
    %v2739 = vadd.f32 %v602, %v2738
    %v2740 = vpop.f32.mrb[0].mxu0
    %2741 = vmatprep.mubr.f32.mxu0 0.0
    %2742 = vmatmul.mubr.f32.gmra.mrb[0].mxu0 %v2624
    %v2743 = vpop.f32.mrb[0].mxu0
    %v2744 = vadd.f32 %v602, %v2743
    %v2745 = vpop.f32.mrb[0].mxu0
    %2746 = vmatprep.mubr.f32.mxu0 0.0
    %2747 = vmatmul.mubr.f32.gmra.mrb[0].mxu0 %v2627
    %v2748 = vpop.f32.mrb[0].mxu0
    %v2749 = vadd.f32 %v602, %v2748
    %v2750 = vpop.f32.mrb[0].mxu0
    %2751 = vmatprep.mubr.f32.mxu0 0.0
    %2752 = vmatmul.mubr.f32.gmra.mrb[0].mxu0 %v2630
    %v2753 = vpop.f32.mrb[0].mxu0
    %v2754 = vadd.f32 %v602, %v2753
    %v2755 = vpop.f32.mrb[0].mxu0
    %2756 = vmatprep.mubr.f32.mxu0 0.0
    %2757 = vmatmul.mubr.f32.gmra.mrb[0].mxu0 %v2633
    %v2758 = vpop.f32.mrb[0].mxu0
    %v2759 = vadd.f32 %v602, %v2758
    %v2760 = vpop.f32.mrb[0].mxu0
    %2761 = vmatprep.mubr.f32.mxu0 0.0
    %2762 = vmatmul.mubr.f32.gmra.mrb[0].mxu0 %v2636
    %v2763 = vpop.f32.mrb[0].mxu0
    %v2764 = vadd.f32 %v602, %v2763
    %v2765 = vpop.f32.mrb[0].mxu0
    %2766 = vmatprep.mubr.f32.mxu0 0.0
    %2767 = vmatmul.mubr.f32.gmra.mrb[0].mxu0 %v2639
    %v2768 = vpop.f32.mrb[0].mxu0
    %v2769 = vadd.f32 %v602, %v2768
    %v2770 = vpop.f32.mrb[0].mxu0
    %2771 = vmatprep.mubr.f32.mxu0 0.0
    %2772 = vmatmul.mubr.f32.gmra.mrb[0].mxu0 %v2642
    %v2773 = vpop.f32.mrb[0].mxu0
    %v2774 = vadd.f32 %v602, %v2773
    %v2775 = vpop.f32.mrb[0].mxu0
    %2776 = vmatprep.mubr.f32.mxu0 0.0
    %2777 = vmatmul.mubr.f32.gmra.mrb[0].mxu0 %v2645
    %v2778 = vpop.f32.mrb[0].mxu0
    %v2779 = vadd.f32 %v602, %v2778
    %v2780 = vpop.f32.mrb[0].mxu0
    %2781 = vmatprep.mubr.f32.mxu0 0.0
    %2782 = vmatmul.mubr.f32.gmra.mrb[0].mxu0 %v2648
    %v2783 = vpop.f32.mrb[0].mxu0
    %v2784 = vadd.f32 %v602, %v2783
    %v2785 = vpop.f32.mrb[0].mxu0
    %2786 = vmatprep.mubr.f32.mxu0 0.0
    %2787 = vmatmul.mubr.f32.gmra.mrb[0].mxu0 %v2651
    %v2788 = vpop.f32.mrb[0].mxu0
    %v2789 = vadd.f32 %v602, %v2788
    %v2790 = vpop.f32.mrb[0].mxu0
    %2791 = vmatprep.mubr.f32.mxu0 0.0
    %2792 = vmatmul.mubr.f32.gmra.mrb[0].mxu0 %v2654
    %v2793 = vpop.f32.mrb[0].mxu0
    %v2794 = vadd.f32 %v602, %v2793
    %v2795 = vpop.f32.mrb[0].mxu0
    %2796 = vmatprep.mubr.f32.mxu0 0.0
    %2797 = vmatmul.mubr.f32.gmra.mrb[0].mxu0 %v2657
    %v2798 = vpop.f32.mrb[0].mxu0
    %v2799 = vadd.f32 %v602, %v2798
    %v2800 = vpop.f32.mrb[0].mxu0
    %2801 = vmatprep.mubr.f32.mxu0 0.0
    %2802 = vmatmul.mubr.f32.gmra.mrb[0].mxu0 %v2660
    %v2803 = vpop.f32.mrb[0].mxu0
    %v2804 = vadd.f32 %v602, %v2803
    %v2805 = vpop.f32.mrb[0].mxu0
    %2806 = vdwg.mxu0
    %v2807 = vlaneseq
    %v2808 = vshrl.u32 %v2807, 7
    %v2809 = vsub.s32 0, %v2808
    %v2810 = vrot.slane %v544, %v2809
    %2812 = vbcast.lane.b32.xlu0 %v2810, 256
    %v2813 = vpop.permute.xlu0 %2812
    %s2815 = sor.u32 256, 8
    %2816 = vbcast.lane.b32.xlu0 %v2810, %s2815
    %v2817 = vpop.permute.xlu0 %2816
    %s2819 = sor.u32 256, 16
    %2820 = vbcast.lane.b32.xlu0 %v2810, %s2819
    %v2821 = vpop.permute.xlu0 %2820
    %s2823 = sor.u32 256, 24
    %2824 = vbcast.lane.b32.xlu0 %v2810, %s2823
    %v2825 = vpop.permute.xlu0 %2824
    %s2827 = sor.u32 256, 32
    %2828 = vbcast.lane.b32.xlu0 %v2810, %s2827
    %v2829 = vpop.permute.xlu0 %2828
    %s2831 = sor.u32 256, 40
    %2832 = vbcast.lane.b32.xlu0 %v2810, %s2831
    %v2833 = vpop.permute.xlu0 %2832
    %s2835 = sor.u32 256, 48
    %2836 = vbcast.lane.b32.xlu0 %v2810, %s2835
    %v2837 = vpop.permute.xlu0 %2836
    %s2839 = sor.u32 256, 56
    %2840 = vbcast.lane.b32.xlu0 %v2810, %s2839
    %v2841 = vpop.permute.xlu0 %2840
    %s2843 = sor.u32 256, 64
    %2844 = vbcast.lane.b32.xlu0 %v2810, %s2843
    %v2845 = vpop.permute.xlu0 %2844
    %s2847 = sor.u32 256, 72
    %2848 = vbcast.lane.b32.xlu0 %v2810, %s2847
    %v2849 = vpop.permute.xlu0 %2848
    %s2851 = sor.u32 256, 80
    %2852 = vbcast.lane.b32.xlu0 %v2810, %s2851
    %v2853 = vpop.permute.xlu0 %2852
    %s2855 = sor.u32 256, 88
    %2856 = vbcast.lane.b32.xlu0 %v2810, %s2855
    %v2857 = vpop.permute.xlu0 %2856
    %s2859 = sor.u32 256, 96
    %2860 = vbcast.lane.b32.xlu0 %v2810, %s2859
    %v2861 = vpop.permute.xlu0 %2860
    %s2863 = sor.u32 256, 104
    %2864 = vbcast.lane.b32.xlu0 %v2810, %s2863
    %v2865 = vpop.permute.xlu0 %2864
    %s2867 = sor.u32 256, 112
    %2868 = vbcast.lane.b32.xlu0 %v2810, %s2867
    %v2869 = vpop.permute.xlu0 %2868
    %s2871 = sor.u32 256, 120
    %2872 = vbcast.lane.b32.xlu0 %v2810, %s2871
    %v2873 = vpop.permute.xlu0 %2872
    %v2874 = vlaneseq
    %v2875 = vshrl.u32 %v2874, 7
    %v2876 = vsub.s32 1, %v2875
    %v2877 = vrot.slane %v544, %v2876
    %2879 = vbcast.lane.b32.xlu0 %v2877, 256
    %v2880 = vpop.permute.xlu0 %2879
    %s2882 = sor.u32 256, 8
    %2883 = vbcast.lane.b32.xlu0 %v2877, %s2882
    %v2884 = vpop.permute.xlu0 %2883
    %s2886 = sor.u32 256, 16
    %2887 = vbcast.lane.b32.xlu0 %v2877, %s2886
    %v2888 = vpop.permute.xlu0 %2887
    %s2890 = sor.u32 256, 24
    %2891 = vbcast.lane.b32.xlu0 %v2877, %s2890
    %v2892 = vpop.permute.xlu0 %2891
    %s2894 = sor.u32 256, 32
    %2895 = vbcast.lane.b32.xlu0 %v2877, %s2894
    %v2896 = vpop.permute.xlu0 %2895
    %s2898 = sor.u32 256, 40
    %2899 = vbcast.lane.b32.xlu0 %v2877, %s2898
    %v2900 = vpop.permute.xlu0 %2899
    %s2902 = sor.u32 256, 48
    %2903 = vbcast.lane.b32.xlu0 %v2877, %s2902
    %v2904 = vpop.permute.xlu0 %2903
    %s2906 = sor.u32 256, 56
    %2907 = vbcast.lane.b32.xlu0 %v2877, %s2906
    %v2908 = vpop.permute.xlu0 %2907
    %s2910 = sor.u32 256, 64
    %2911 = vbcast.lane.b32.xlu0 %v2877, %s2910
    %v2912 = vpop.permute.xlu0 %2911
    %s2914 = sor.u32 256, 72
    %2915 = vbcast.lane.b32.xlu0 %v2877, %s2914
    %v2916 = vpop.permute.xlu0 %2915
    %s2918 = sor.u32 256, 80
    %2919 = vbcast.lane.b32.xlu0 %v2877, %s2918
    %v2920 = vpop.permute.xlu0 %2919
    %s2922 = sor.u32 256, 88
    %2923 = vbcast.lane.b32.xlu0 %v2877, %s2922
    %v2924 = vpop.permute.xlu0 %2923
    %s2926 = sor.u32 256, 96
    %2927 = vbcast.lane.b32.xlu0 %v2877, %s2926
    %v2928 = vpop.permute.xlu0 %2927
    %s2930 = sor.u32 256, 104
    %2931 = vbcast.lane.b32.xlu0 %v2877, %s2930
    %v2932 = vpop.permute.xlu0 %2931
    %s2934 = sor.u32 256, 112
    %2935 = vbcast.lane.b32.xlu0 %v2877, %s2934
    %v2936 = vpop.permute.xlu0 %2935
    %s2938 = sor.u32 256, 120
    %2939 = vbcast.lane.b32.xlu0 %v2877, %s2938
    %v2940 = vpop.permute.xlu0 %2939
    %v2941 = vlaneseq
    %v2942 = vshrl.u32 %v2941, 7
    %v2943 = vsub.s32 2, %v2942
    %v2944 = vrot.slane %v544, %v2943
    %2946 = vbcast.lane.b32.xlu0 %v2944, 256
    %v2947 = vpop.permute.xlu0 %2946
    %s2949 = sor.u32 256, 8
    %2950 = vbcast.lane.b32.xlu0 %v2944, %s2949
    %v2951 = vpop.permute.xlu0 %2950
    %s2953 = sor.u32 256, 16
    %2954 = vbcast.lane.b32.xlu0 %v2944, %s2953
    %v2955 = vpop.permute.xlu0 %2954
    %s2957 = sor.u32 256, 24
    %2958 = vbcast.lane.b32.xlu0 %v2944, %s2957
    %v2959 = vpop.permute.xlu0 %2958
    %s2961 = sor.u32 256, 32
    %2962 = vbcast.lane.b32.xlu0 %v2944, %s2961
    %v2963 = vpop.permute.xlu0 %2962
    %s2965 = sor.u32 256, 40
    %2966 = vbcast.lane.b32.xlu0 %v2944, %s2965
    %v2967 = vpop.permute.xlu0 %2966
    %s2969 = sor.u32 256, 48
    %2970 = vbcast.lane.b32.xlu0 %v2944, %s2969
    %v2971 = vpop.permute.xlu0 %2970
    %s2973 = sor.u32 256, 56
    %2974 = vbcast.lane.b32.xlu0 %v2944, %s2973
    %v2975 = vpop.permute.xlu0 %2974
    %s2977 = sor.u32 256, 64
    %2978 = vbcast.lane.b32.xlu0 %v2944, %s2977
    %v2979 = vpop.permute.xlu0 %2978
    %s2981 = sor.u32 256, 72
    %2982 = vbcast.lane.b32.xlu0 %v2944, %s2981
    %v2983 = vpop.permute.xlu0 %2982
    %s2985 = sor.u32 256, 80
    %2986 = vbcast.lane.b32.xlu0 %v2944, %s2985
    %v2987 = vpop.permute.xlu0 %2986
    %s2989 = sor.u32 256, 88
    %2990 = vbcast.lane.b32.xlu0 %v2944, %s2989
    %v2991 = vpop.permute.xlu0 %2990
    %s2993 = sor.u32 256, 96
    %2994 = vbcast.lane.b32.xlu0 %v2944, %s2993
    %v2995 = vpop.permute.xlu0 %2994
    %s2997 = sor.u32 256, 104
    %2998 = vbcast.lane.b32.xlu0 %v2944, %s2997
    %v2999 = vpop.permute.xlu0 %2998
    %s3001 = sor.u32 256, 112
    %3002 = vbcast.lane.b32.xlu0 %v2944, %s3001
    %v3003 = vpop.permute.xlu0 %3002
    %s3005 = sor.u32 256, 120
    %3006 = vbcast.lane.b32.xlu0 %v2944, %s3005
    %v3007 = vpop.permute.xlu0 %3006
    %v3008 = vlaneseq
    %v3009 = vshrl.u32 %v3008, 7
    %v3010 = vsub.s32 3, %v3009
    %v3011 = vrot.slane %v544, %v3010
    %3013 = vbcast.lane.b32.xlu0 %v3011, 256
    %v3014 = vpop.permute.xlu0 %3013
    %s3016 = sor.u32 256, 8
    %3017 = vbcast.lane.b32.xlu0 %v3011, %s3016
    %v3018 = vpop.permute.xlu0 %3017
    %s3020 = sor.u32 256, 16
    %3021 = vbcast.lane.b32.xlu0 %v3011, %s3020
    %v3022 = vpop.permute.xlu0 %3021
    %s3024 = sor.u32 256, 24
    %3025 = vbcast.lane.b32.xlu0 %v3011, %s3024
    %v3026 = vpop.permute.xlu0 %3025
    %s3028 = sor.u32 256, 32
    %3029 = vbcast.lane.b32.xlu0 %v3011, %s3028
    %v3030 = vpop.permute.xlu0 %3029
    %s3032 = sor.u32 256, 40
    %3033 = vbcast.lane.b32.xlu0 %v3011, %s3032
    %v3034 = vpop.permute.xlu0 %3033
    %s3036 = sor.u32 256, 48
    %3037 = vbcast.lane.b32.xlu0 %v3011, %s3036
    %v3038 = vpop.permute.xlu0 %3037
    %s3040 = sor.u32 256, 56
    %3041 = vbcast.lane.b32.xlu0 %v3011, %s3040
    %v3042 = vpop.permute.xlu0 %3041
    %s3044 = sor.u32 256, 64
    %3045 = vbcast.lane.b32.xlu0 %v3011, %s3044
    %v3046 = vpop.permute.xlu0 %3045
    %s3048 = sor.u32 256, 72
    %3049 = vbcast.lane.b32.xlu0 %v3011, %s3048
    %v3050 = vpop.permute.xlu0 %3049
    %s3052 = sor.u32 256, 80
    %3053 = vbcast.lane.b32.xlu0 %v3011, %s3052
    %v3054 = vpop.permute.xlu0 %3053
    %s3056 = sor.u32 256, 88
    %3057 = vbcast.lane.b32.xlu0 %v3011, %s3056
    %v3058 = vpop.permute.xlu0 %3057
    %s3060 = sor.u32 256, 96
    %3061 = vbcast.lane.b32.xlu0 %v3011, %s3060
    %v3062 = vpop.permute.xlu0 %3061
    %s3064 = sor.u32 256, 104
    %3065 = vbcast.lane.b32.xlu0 %v3011, %s3064
    %v3066 = vpop.permute.xlu0 %3065
    %s3068 = sor.u32 256, 112
    %3069 = vbcast.lane.b32.xlu0 %v3011, %s3068
    %v3070 = vpop.permute.xlu0 %3069
    %s3072 = sor.u32 256, 120
    %3073 = vbcast.lane.b32.xlu0 %v3011, %s3072
    %v3074 = vpop.permute.xlu0 %3073
    %v3075 = vlaneseq
    %v3076 = vshrl.u32 %v3075, 7
    %v3077 = vsub.s32 4, %v3076
    %v3078 = vrot.slane %v544, %v3077
    %3080 = vbcast.lane.b32.xlu0 %v3078, 256
    %v3081 = vpop.permute.xlu0 %3080
    %s3083 = sor.u32 256, 8
    %3084 = vbcast.lane.b32.xlu0 %v3078, %s3083
    %v3085 = vpop.permute.xlu0 %3084
    %s3087 = sor.u32 256, 16
    %3088 = vbcast.lane.b32.xlu0 %v3078, %s3087
    %v3089 = vpop.permute.xlu0 %3088
    %s3091 = sor.u32 256, 24
    %3092 = vbcast.lane.b32.xlu0 %v3078, %s3091
    %v3093 = vpop.permute.xlu0 %3092
    %s3095 = sor.u32 256, 32
    %3096 = vbcast.lane.b32.xlu0 %v3078, %s3095
    %v3097 = vpop.permute.xlu0 %3096
    %s3099 = sor.u32 256, 40
    %3100 = vbcast.lane.b32.xlu0 %v3078, %s3099
    %v3101 = vpop.permute.xlu0 %3100
    %s3103 = sor.u32 256, 48
    %3104 = vbcast.lane.b32.xlu0 %v3078, %s3103
    %v3105 = vpop.permute.xlu0 %3104
    %s3107 = sor.u32 256, 56
    %3108 = vbcast.lane.b32.xlu0 %v3078, %s3107
    %v3109 = vpop.permute.xlu0 %3108
    %s3111 = sor.u32 256, 64
    %3112 = vbcast.lane.b32.xlu0 %v3078, %s3111
    %v3113 = vpop.permute.xlu0 %3112
    %s3115 = sor.u32 256, 72
    %3116 = vbcast.lane.b32.xlu0 %v3078, %s3115
    %v3117 = vpop.permute.xlu0 %3116
    %s3119 = sor.u32 256, 80
    %3120 = vbcast.lane.b32.xlu0 %v3078, %s3119
    %v3121 = vpop.permute.xlu0 %3120
    %s3123 = sor.u32 256, 88
    %3124 = vbcast.lane.b32.xlu0 %v3078, %s3123
    %v3125 = vpop.permute.xlu0 %3124
    %s3127 = sor.u32 256, 96
    %3128 = vbcast.lane.b32.xlu0 %v3078, %s3127
    %v3129 = vpop.permute.xlu0 %3128
    %s3131 = sor.u32 256, 104
    %3132 = vbcast.lane.b32.xlu0 %v3078, %s3131
    %v3133 = vpop.permute.xlu0 %3132
    %s3135 = sor.u32 256, 112
    %3136 = vbcast.lane.b32.xlu0 %v3078, %s3135
    %v3137 = vpop.permute.xlu0 %3136
    %s3139 = sor.u32 256, 120
    %3140 = vbcast.lane.b32.xlu0 %v3078, %s3139
    %v3141 = vpop.permute.xlu0 %3140
    %v3142 = vlaneseq
    %v3143 = vshrl.u32 %v3142, 7
    %v3144 = vsub.s32 5, %v3143
    %v3145 = vrot.slane %v544, %v3144
    %3147 = vbcast.lane.b32.xlu0 %v3145, 256
    %v3148 = vpop.permute.xlu0 %3147
    %s3150 = sor.u32 256, 8
    %3151 = vbcast.lane.b32.xlu0 %v3145, %s3150
    %v3152 = vpop.permute.xlu0 %3151
    %s3154 = sor.u32 256, 16
    %3155 = vbcast.lane.b32.xlu0 %v3145, %s3154
    %v3156 = vpop.permute.xlu0 %3155
    %s3158 = sor.u32 256, 24
    %3159 = vbcast.lane.b32.xlu0 %v3145, %s3158
    %v3160 = vpop.permute.xlu0 %3159
    %s3162 = sor.u32 256, 32
    %3163 = vbcast.lane.b32.xlu0 %v3145, %s3162
    %v3164 = vpop.permute.xlu0 %3163
    %s3166 = sor.u32 256, 40
    %3167 = vbcast.lane.b32.xlu0 %v3145, %s3166
    %v3168 = vpop.permute.xlu0 %3167
    %s3170 = sor.u32 256, 48
    %3171 = vbcast.lane.b32.xlu0 %v3145, %s3170
    %v3172 = vpop.permute.xlu0 %3171
    %s3174 = sor.u32 256, 56
    %3175 = vbcast.lane.b32.xlu0 %v3145, %s3174
    %v3176 = vpop.permute.xlu0 %3175
    %s3178 = sor.u32 256, 64
    %3179 = vbcast.lane.b32.xlu0 %v3145, %s3178
    %v3180 = vpop.permute.xlu0 %3179
    %s3182 = sor.u32 256, 72
    %3183 = vbcast.lane.b32.xlu0 %v3145, %s3182
    %v3184 = vpop.permute.xlu0 %3183
    %s3186 = sor.u32 256, 80
    %3187 = vbcast.lane.b32.xlu0 %v3145, %s3186
    %v3188 = vpop.permute.xlu0 %3187
    %s3190 = sor.u32 256, 88
    %3191 = vbcast.lane.b32.xlu0 %v3145, %s3190
    %v3192 = vpop.permute.xlu0 %3191
    %s3194 = sor.u32 256, 96
    %3195 = vbcast.lane.b32.xlu0 %v3145, %s3194
    %v3196 = vpop.permute.xlu0 %3195
    %s3198 = sor.u32 256, 104
    %3199 = vbcast.lane.b32.xlu0 %v3145, %s3198
    %v3200 = vpop.permute.xlu0 %3199
    %s3202 = sor.u32 256, 112
    %3203 = vbcast.lane.b32.xlu0 %v3145, %s3202
    %v3204 = vpop.permute.xlu0 %3203
    %s3206 = sor.u32 256, 120
    %3207 = vbcast.lane.b32.xlu0 %v3145, %s3206
    %v3208 = vpop.permute.xlu0 %3207
    %v3209 = vlaneseq
    %v3210 = vshrl.u32 %v3209, 7
    %v3211 = vsub.s32 6, %v3210
    %v3212 = vrot.slane %v544, %v3211
    %3214 = vbcast.lane.b32.xlu0 %v3212, 256
    %v3215 = vpop.permute.xlu0 %3214
    %s3217 = sor.u32 256, 8
    %3218 = vbcast.lane.b32.xlu0 %v3212, %s3217
    %v3219 = vpop.permute.xlu0 %3218
    %s3221 = sor.u32 256, 16
    %3222 = vbcast.lane.b32.xlu0 %v3212, %s3221
    %v3223 = vpop.permute.xlu0 %3222
    %s3225 = sor.u32 256, 24
    %3226 = vbcast.lane.b32.xlu0 %v3212, %s3225
    %v3227 = vpop.permute.xlu0 %3226
    %s3229 = sor.u32 256, 32
    %3230 = vbcast.lane.b32.xlu0 %v3212, %s3229
    %v3231 = vpop.permute.xlu0 %3230
    %s3233 = sor.u32 256, 40
    %3234 = vbcast.lane.b32.xlu0 %v3212, %s3233
    %v3235 = vpop.permute.xlu0 %3234
    %s3237 = sor.u32 256, 48
    %3238 = vbcast.lane.b32.xlu0 %v3212, %s3237
    %v3239 = vpop.permute.xlu0 %3238
    %s3241 = sor.u32 256, 56
    %3242 = vbcast.lane.b32.xlu0 %v3212, %s3241
    %v3243 = vpop.permute.xlu0 %3242
    %s3245 = sor.u32 256, 64
    %3246 = vbcast.lane.b32.xlu0 %v3212, %s3245
    %v3247 = vpop.permute.xlu0 %3246
    %s3249 = sor.u32 256, 72
    %3250 = vbcast.lane.b32.xlu0 %v3212, %s3249
    %v3251 = vpop.permute.xlu0 %3250
    %s3253 = sor.u32 256, 80
    %3254 = vbcast.lane.b32.xlu0 %v3212, %s3253
    %v3255 = vpop.permute.xlu0 %3254
    %s3257 = sor.u32 256, 88
    %3258 = vbcast.lane.b32.xlu0 %v3212, %s3257
    %v3259 = vpop.permute.xlu0 %3258
    %s3261 = sor.u32 256, 96
    %3262 = vbcast.lane.b32.xlu0 %v3212, %s3261
    %v3263 = vpop.permute.xlu0 %3262
    %s3265 = sor.u32 256, 104
    %3266 = vbcast.lane.b32.xlu0 %v3212, %s3265
    %v3267 = vpop.permute.xlu0 %3266
    %s3269 = sor.u32 256, 112
    %3270 = vbcast.lane.b32.xlu0 %v3212, %s3269
    %v3271 = vpop.permute.xlu0 %3270
    %s3273 = sor.u32 256, 120
    %3274 = vbcast.lane.b32.xlu0 %v3212, %s3273
    %v3275 = vpop.permute.xlu0 %3274
    %v3276 = vlaneseq
    %v3277 = vshrl.u32 %v3276, 7
    %v3278 = vsub.s32 7, %v3277
    %v3279 = vrot.slane %v544, %v3278
    %3281 = vbcast.lane.b32.xlu0 %v3279, 256
    %v3282 = vpop.permute.xlu0 %3281
    %s3284 = sor.u32 256, 8
    %3285 = vbcast.lane.b32.xlu0 %v3279, %s3284
    %v3286 = vpop.permute.xlu0 %3285
    %s3288 = sor.u32 256, 16
    %3289 = vbcast.lane.b32.xlu0 %v3279, %s3288
    %v3290 = vpop.permute.xlu0 %3289
    %s3292 = sor.u32 256, 24
    %3293 = vbcast.lane.b32.xlu0 %v3279, %s3292
    %v3294 = vpop.permute.xlu0 %3293
    %s3296 = sor.u32 256, 32
    %3297 = vbcast.lane.b32.xlu0 %v3279, %s3296
    %v3298 = vpop.permute.xlu0 %3297
    %s3300 = sor.u32 256, 40
    %3301 = vbcast.lane.b32.xlu0 %v3279, %s3300
    %v3302 = vpop.permute.xlu0 %3301
    %s3304 = sor.u32 256, 48
    %3305 = vbcast.lane.b32.xlu0 %v3279, %s3304
    %v3306 = vpop.permute.xlu0 %3305
    %s3308 = sor.u32 256, 56
    %3309 = vbcast.lane.b32.xlu0 %v3279, %s3308
    %v3310 = vpop.permute.xlu0 %3309
    %s3312 = sor.u32 256, 64
    %3313 = vbcast.lane.b32.xlu0 %v3279, %s3312
    %v3314 = vpop.permute.xlu0 %3313
    %s3316 = sor.u32 256, 72
    %3317 = vbcast.lane.b32.xlu0 %v3279, %s3316
    %v3318 = vpop.permute.xlu0 %3317
    %s3320 = sor.u32 256, 80
    %3321 = vbcast.lane.b32.xlu0 %v3279, %s3320
    %v3322 = vpop.permute.xlu0 %3321
    %s3324 = sor.u32 256, 88
    %3325 = vbcast.lane.b32.xlu0 %v3279, %s3324
    %v3326 = vpop.permute.xlu0 %3325
    %s3328 = sor.u32 256, 96
    %3329 = vbcast.lane.b32.xlu0 %v3279, %s3328
    %v3330 = vpop.permute.xlu0 %3329
    %s3332 = sor.u32 256, 104
    %3333 = vbcast.lane.b32.xlu0 %v3279, %s3332
    %v3334 = vpop.permute.xlu0 %3333
    %s3336 = sor.u32 256, 112
    %3337 = vbcast.lane.b32.xlu0 %v3279, %s3336
    %v3338 = vpop.permute.xlu0 %3337
    %s3340 = sor.u32 256, 120
    %3341 = vbcast.lane.b32.xlu0 %v3279, %s3340
    %v3342 = vpop.permute.xlu0 %3341
    %vm3343 = vcmp.eq.s32.totalorder %v576, %v2813
    %vm3344 = vcmp.eq.s32.totalorder %v576, %v2817
    %vm3345 = vcmp.eq.s32.totalorder %v576, %v2821
    %vm3346 = vcmp.eq.s32.totalorder %v576, %v2825
    %vm3347 = vcmp.eq.s32.totalorder %v576, %v2829
    %vm3348 = vcmp.eq.s32.totalorder %v576, %v2833
    %vm3349 = vcmp.eq.s32.totalorder %v576, %v2837
    %vm3350 = vcmp.eq.s32.totalorder %v576, %v2841
    %vm3351 = vcmp.eq.s32.totalorder %v576, %v2845
    %vm3352 = vcmp.eq.s32.totalorder %v576, %v2849
    %vm3353 = vcmp.eq.s32.totalorder %v576, %v2853
    %vm3354 = vcmp.eq.s32.totalorder %v576, %v2857
    %vm3355 = vcmp.eq.s32.totalorder %v576, %v2861
    %vm3356 = vcmp.eq.s32.totalorder %v576, %v2865
    %vm3357 = vcmp.eq.s32.totalorder %v576, %v2869
    %vm3358 = vcmp.eq.s32.totalorder %v576, %v2873
    %vm3359 = vcmp.eq.s32.totalorder %v576, %v2880
    %vm3360 = vcmp.eq.s32.totalorder %v576, %v2884
    %vm3361 = vcmp.eq.s32.totalorder %v576, %v2888
    %vm3362 = vcmp.eq.s32.totalorder %v576, %v2892
    %vm3363 = vcmp.eq.s32.totalorder %v576, %v2896
    %vm3364 = vcmp.eq.s32.totalorder %v576, %v2900
    %vm3365 = vcmp.eq.s32.totalorder %v576, %v2904
    %vm3366 = vcmp.eq.s32.totalorder %v576, %v2908
    %vm3367 = vcmp.eq.s32.totalorder %v576, %v2912
    %vm3368 = vcmp.eq.s32.totalorder %v576, %v2916
    %vm3369 = vcmp.eq.s32.totalorder %v576, %v2920
    %vm3370 = vcmp.eq.s32.totalorder %v576, %v2924
    %vm3371 = vcmp.eq.s32.totalorder %v576, %v2928
    %vm3372 = vcmp.eq.s32.totalorder %v576, %v2932
    %vm3373 = vcmp.eq.s32.totalorder %v576, %v2936
    %vm3374 = vcmp.eq.s32.totalorder %v576, %v2940
    %vm3375 = vcmp.eq.s32.totalorder %v576, %v2947
    %vm3376 = vcmp.eq.s32.totalorder %v576, %v2951
    %vm3377 = vcmp.eq.s32.totalorder %v576, %v2955
    %vm3378 = vcmp.eq.s32.totalorder %v576, %v2959
    %vm3379 = vcmp.eq.s32.totalorder %v576, %v2963
    %vm3380 = vcmp.eq.s32.totalorder %v576, %v2967
    %vm3381 = vcmp.eq.s32.totalorder %v576, %v2971
    %vm3382 = vcmp.eq.s32.totalorder %v576, %v2975
    %vm3383 = vcmp.eq.s32.totalorder %v576, %v2979
    %vm3384 = vcmp.eq.s32.totalorder %v576, %v2983
    %vm3385 = vcmp.eq.s32.totalorder %v576, %v2987
    %vm3386 = vcmp.eq.s32.totalorder %v576, %v2991
    %vm3387 = vcmp.eq.s32.totalorder %v576, %v2995
    %vm3388 = vcmp.eq.s32.totalorder %v576, %v2999
    %vm3389 = vcmp.eq.s32.totalorder %v576, %v3003
    %vm3390 = vcmp.eq.s32.totalorder %v576, %v3007
    %vm3391 = vcmp.eq.s32.totalorder %v576, %v3014
    %vm3392 = vcmp.eq.s32.totalorder %v576, %v3018
    %vm3393 = vcmp.eq.s32.totalorder %v576, %v3022
    %vm3394 = vcmp.eq.s32.totalorder %v576, %v3026
    %vm3395 = vcmp.eq.s32.totalorder %v576, %v3030
    %vm3396 = vcmp.eq.s32.totalorder %v576, %v3034
    %vm3397 = vcmp.eq.s32.totalorder %v576, %v3038
    %vm3398 = vcmp.eq.s32.totalorder %v576, %v3042
    %vm3399 = vcmp.eq.s32.totalorder %v576, %v3046
    %vm3400 = vcmp.eq.s32.totalorder %v576, %v3050
    %vm3401 = vcmp.eq.s32.totalorder %v576, %v3054
    %vm3402 = vcmp.eq.s32.totalorder %v576, %v3058
    %vm3403 = vcmp.eq.s32.totalorder %v576, %v3062
    %vm3404 = vcmp.eq.s32.totalorder %v576, %v3066
    %vm3405 = vcmp.eq.s32.totalorder %v576, %v3070
    %vm3406 = vcmp.eq.s32.totalorder %v576, %v3074
    %vm3407 = vcmp.eq.s32.totalorder %v576, %v3081
    %vm3408 = vcmp.eq.s32.totalorder %v576, %v3085
    %vm3409 = vcmp.eq.s32.totalorder %v576, %v3089
    %vm3410 = vcmp.eq.s32.totalorder %v576, %v3093
    %vm3411 = vcmp.eq.s32.totalorder %v576, %v3097
    %vm3412 = vcmp.eq.s32.totalorder %v576, %v3101
    %vm3413 = vcmp.eq.s32.totalorder %v576, %v3105
    %vm3414 = vcmp.eq.s32.totalorder %v576, %v3109
    %vm3415 = vcmp.eq.s32.totalorder %v576, %v3113
    %vm3416 = vcmp.eq.s32.totalorder %v576, %v3117
    %vm3417 = vcmp.eq.s32.totalorder %v576, %v3121
    %vm3418 = vcmp.eq.s32.totalorder %v576, %v3125
    %vm3419 = vcmp.eq.s32.totalorder %v576, %v3129
    %vm3420 = vcmp.eq.s32.totalorder %v576, %v3133
    %vm3421 = vcmp.eq.s32.totalorder %v576, %v3137
    %vm3422 = vcmp.eq.s32.totalorder %v576, %v3141
    %vm3423 = vcmp.eq.s32.totalorder %v576, %v3148
    %vm3424 = vcmp.eq.s32.totalorder %v576, %v3152
    %vm3425 = vcmp.eq.s32.totalorder %v576, %v3156
    %vm3426 = vcmp.eq.s32.totalorder %v576, %v3160
    %vm3427 = vcmp.eq.s32.totalorder %v576, %v3164
    %vm3428 = vcmp.eq.s32.totalorder %v576, %v3168
    %vm3429 = vcmp.eq.s32.totalorder %v576, %v3172
    %vm3430 = vcmp.eq.s32.totalorder %v576, %v3176
    %vm3431 = vcmp.eq.s32.totalorder %v576, %v3180
    %vm3432 = vcmp.eq.s32.totalorder %v576, %v3184
    %vm3433 = vcmp.eq.s32.totalorder %v576, %v3188
    %vm3434 = vcmp.eq.s32.totalorder %v576, %v3192
    %vm3435 = vcmp.eq.s32.totalorder %v576, %v3196
    %vm3436 = vcmp.eq.s32.totalorder %v576, %v3200
    %vm3437 = vcmp.eq.s32.totalorder %v576, %v3204
    %vm3438 = vcmp.eq.s32.totalorder %v576, %v3208
    %vm3439 = vcmp.eq.s32.totalorder %v576, %v3215
    %vm3440 = vcmp.eq.s32.totalorder %v576, %v3219
    %vm3441 = vcmp.eq.s32.totalorder %v576, %v3223
    %vm3442 = vcmp.eq.s32.totalorder %v576, %v3227
    %vm3443 = vcmp.eq.s32.totalorder %v576, %v3231
    %vm3444 = vcmp.eq.s32.totalorder %v576, %v3235
    %vm3445 = vcmp.eq.s32.totalorder %v576, %v3239
    %vm3446 = vcmp.eq.s32.totalorder %v576, %v3243
    %vm3447 = vcmp.eq.s32.totalorder %v576, %v3247
    %vm3448 = vcmp.eq.s32.totalorder %v576, %v3251
    %vm3449 = vcmp.eq.s32.totalorder %v576, %v3255
    %vm3450 = vcmp.eq.s32.totalorder %v576, %v3259
    %vm3451 = vcmp.eq.s32.totalorder %v576, %v3263
    %vm3452 = vcmp.eq.s32.totalorder %v576, %v3267
    %vm3453 = vcmp.eq.s32.totalorder %v576, %v3271
    %vm3454 = vcmp.eq.s32.totalorder %v576, %v3275
    %vm3455 = vcmp.eq.s32.totalorder %v576, %v3282
    %vm3456 = vcmp.eq.s32.totalorder %v576, %v3286
    %vm3457 = vcmp.eq.s32.totalorder %v576, %v3290
    %vm3458 = vcmp.eq.s32.totalorder %v576, %v3294
    %vm3459 = vcmp.eq.s32.totalorder %v576, %v3298
    %vm3460 = vcmp.eq.s32.totalorder %v576, %v3302
    %vm3461 = vcmp.eq.s32.totalorder %v576, %v3306
    %vm3462 = vcmp.eq.s32.totalorder %v576, %v3310
    %vm3463 = vcmp.eq.s32.totalorder %v576, %v3314
    %vm3464 = vcmp.eq.s32.totalorder %v576, %v3318
    %vm3465 = vcmp.eq.s32.totalorder %v576, %v3322
    %vm3466 = vcmp.eq.s32.totalorder %v576, %v3326
    %vm3467 = vcmp.eq.s32.totalorder %v576, %v3330
    %vm3468 = vcmp.eq.s32.totalorder %v576, %v3334
    %vm3469 = vcmp.eq.s32.totalorder %v576, %v3338
    %vm3470 = vcmp.eq.s32.totalorder %v576, %v3342
    %v3471 = vlaneseq
    %v3472 = vshrl.u32 %v3471, 7
    %v3473 = vsub.s32 0, %v3472
    %v3474 = vrot.slane %v574, %v3473
    %3476 = vbcast.lane.b32.xlu0 %v3474, 256
    %v3477 = vpop.permute.xlu0 %3476
    %s3479 = sor.u32 256, 8
    %3480 = vbcast.lane.b32.xlu0 %v3474, %s3479
    %v3481 = vpop.permute.xlu0 %3480
    %s3483 = sor.u32 256, 16
    %3484 = vbcast.lane.b32.xlu0 %v3474, %s3483
    %v3485 = vpop.permute.xlu0 %3484
    %s3487 = sor.u32 256, 24
    %3488 = vbcast.lane.b32.xlu0 %v3474, %s3487
    %v3489 = vpop.permute.xlu0 %3488
    %s3491 = sor.u32 256, 32
    %3492 = vbcast.lane.b32.xlu0 %v3474, %s3491
    %v3493 = vpop.permute.xlu0 %3492
    %s3495 = sor.u32 256, 40
    %3496 = vbcast.lane.b32.xlu0 %v3474, %s3495
    %v3497 = vpop.permute.xlu0 %3496
    %s3499 = sor.u32 256, 48
    %3500 = vbcast.lane.b32.xlu0 %v3474, %s3499
    %v3501 = vpop.permute.xlu0 %3500
    %s3503 = sor.u32 256, 56
    %3504 = vbcast.lane.b32.xlu0 %v3474, %s3503
    %v3505 = vpop.permute.xlu0 %3504
    %s3507 = sor.u32 256, 64
    %3508 = vbcast.lane.b32.xlu0 %v3474, %s3507
    %v3509 = vpop.permute.xlu0 %3508
    %s3511 = sor.u32 256, 72
    %3512 = vbcast.lane.b32.xlu0 %v3474, %s3511
    %v3513 = vpop.permute.xlu0 %3512
    %s3515 = sor.u32 256, 80
    %3516 = vbcast.lane.b32.xlu0 %v3474, %s3515
    %v3517 = vpop.permute.xlu0 %3516
    %s3519 = sor.u32 256, 88
    %3520 = vbcast.lane.b32.xlu0 %v3474, %s3519
    %v3521 = vpop.permute.xlu0 %3520
    %s3523 = sor.u32 256, 96
    %3524 = vbcast.lane.b32.xlu0 %v3474, %s3523
    %v3525 = vpop.permute.xlu0 %3524
    %s3527 = sor.u32 256, 104
    %3528 = vbcast.lane.b32.xlu0 %v3474, %s3527
    %v3529 = vpop.permute.xlu0 %3528
    %s3531 = sor.u32 256, 112
    %3532 = vbcast.lane.b32.xlu0 %v3474, %s3531
    %v3533 = vpop.permute.xlu0 %3532
    %s3535 = sor.u32 256, 120
    %3536 = vbcast.lane.b32.xlu0 %v3474, %s3535
    %v3537 = vpop.permute.xlu0 %3536
    %v3538 = vlaneseq
    %v3539 = vshrl.u32 %v3538, 7
    %v3540 = vsub.s32 1, %v3539
    %v3541 = vrot.slane %v574, %v3540
    %3543 = vbcast.lane.b32.xlu0 %v3541, 256
    %v3544 = vpop.permute.xlu0 %3543
    %s3546 = sor.u32 256, 8
    %3547 = vbcast.lane.b32.xlu0 %v3541, %s3546
    %v3548 = vpop.permute.xlu0 %3547
    %s3550 = sor.u32 256, 16
    %3551 = vbcast.lane.b32.xlu0 %v3541, %s3550
    %v3552 = vpop.permute.xlu0 %3551
    %s3554 = sor.u32 256, 24
    %3555 = vbcast.lane.b32.xlu0 %v3541, %s3554
    %v3556 = vpop.permute.xlu0 %3555
    %s3558 = sor.u32 256, 32
    %3559 = vbcast.lane.b32.xlu0 %v3541, %s3558
    %v3560 = vpop.permute.xlu0 %3559
    %s3562 = sor.u32 256, 40
    %3563 = vbcast.lane.b32.xlu0 %v3541, %s3562
    %v3564 = vpop.permute.xlu0 %3563
    %s3566 = sor.u32 256, 48
    %3567 = vbcast.lane.b32.xlu0 %v3541, %s3566
    %v3568 = vpop.permute.xlu0 %3567
    %s3570 = sor.u32 256, 56
    %3571 = vbcast.lane.b32.xlu0 %v3541, %s3570
    %v3572 = vpop.permute.xlu0 %3571
    %s3574 = sor.u32 256, 64
    %3575 = vbcast.lane.b32.xlu0 %v3541, %s3574
    %v3576 = vpop.permute.xlu0 %3575
    %s3578 = sor.u32 256, 72
    %3579 = vbcast.lane.b32.xlu0 %v3541, %s3578
    %v3580 = vpop.permute.xlu0 %3579
    %s3582 = sor.u32 256, 80
    %3583 = vbcast.lane.b32.xlu0 %v3541, %s3582
    %v3584 = vpop.permute.xlu0 %3583
    %s3586 = sor.u32 256, 88
    %3587 = vbcast.lane.b32.xlu0 %v3541, %s3586
    %v3588 = vpop.permute.xlu0 %3587
    %s3590 = sor.u32 256, 96
    %3591 = vbcast.lane.b32.xlu0 %v3541, %s3590
    %v3592 = vpop.permute.xlu0 %3591
    %s3594 = sor.u32 256, 104
    %3595 = vbcast.lane.b32.xlu0 %v3541, %s3594
    %v3596 = vpop.permute.xlu0 %3595
    %s3598 = sor.u32 256, 112
    %3599 = vbcast.lane.b32.xlu0 %v3541, %s3598
    %v3600 = vpop.permute.xlu0 %3599
    %s3602 = sor.u32 256, 120
    %3603 = vbcast.lane.b32.xlu0 %v3541, %s3602
    %v3604 = vpop.permute.xlu0 %3603
    %v3605 = vlaneseq
    %v3606 = vshrl.u32 %v3605, 7
    %v3607 = vsub.s32 2, %v3606
    %v3608 = vrot.slane %v574, %v3607
    %3610 = vbcast.lane.b32.xlu0 %v3608, 256
    %v3611 = vpop.permute.xlu0 %3610
    %s3613 = sor.u32 256, 8
    %3614 = vbcast.lane.b32.xlu0 %v3608, %s3613
    %v3615 = vpop.permute.xlu0 %3614
    %s3617 = sor.u32 256, 16
    %3618 = vbcast.lane.b32.xlu0 %v3608, %s3617
    %v3619 = vpop.permute.xlu0 %3618
    %s3621 = sor.u32 256, 24
    %3622 = vbcast.lane.b32.xlu0 %v3608, %s3621
    %v3623 = vpop.permute.xlu0 %3622
    %s3625 = sor.u32 256, 32
    %3626 = vbcast.lane.b32.xlu0 %v3608, %s3625
    %v3627 = vpop.permute.xlu0 %3626
    %s3629 = sor.u32 256, 40
    %3630 = vbcast.lane.b32.xlu0 %v3608, %s3629
    %v3631 = vpop.permute.xlu0 %3630
    %s3633 = sor.u32 256, 48
    %3634 = vbcast.lane.b32.xlu0 %v3608, %s3633
    %v3635 = vpop.permute.xlu0 %3634
    %s3637 = sor.u32 256, 56
    %3638 = vbcast.lane.b32.xlu0 %v3608, %s3637
    %v3639 = vpop.permute.xlu0 %3638
    %s3641 = sor.u32 256, 64
    %3642 = vbcast.lane.b32.xlu0 %v3608, %s3641
    %v3643 = vpop.permute.xlu0 %3642
    %s3645 = sor.u32 256, 72
    %3646 = vbcast.lane.b32.xlu0 %v3608, %s3645
    %v3647 = vpop.permute.xlu0 %3646
    %s3649 = sor.u32 256, 80
    %3650 = vbcast.lane.b32.xlu0 %v3608, %s3649
    %v3651 = vpop.permute.xlu0 %3650
    %s3653 = sor.u32 256, 88
    %3654 = vbcast.lane.b32.xlu0 %v3608, %s3653
    %v3655 = vpop.permute.xlu0 %3654
    %s3657 = sor.u32 256, 96
    %3658 = vbcast.lane.b32.xlu0 %v3608, %s3657
    %v3659 = vpop.permute.xlu0 %3658
    %s3661 = sor.u32 256, 104
    %3662 = vbcast.lane.b32.xlu0 %v3608, %s3661
    %v3663 = vpop.permute.xlu0 %3662
    %s3665 = sor.u32 256, 112
    %3666 = vbcast.lane.b32.xlu0 %v3608, %s3665
    %v3667 = vpop.permute.xlu0 %3666
    %s3669 = sor.u32 256, 120
    %3670 = vbcast.lane.b32.xlu0 %v3608, %s3669
    %v3671 = vpop.permute.xlu0 %3670
    %v3672 = vlaneseq
    %v3673 = vshrl.u32 %v3672, 7
    %v3674 = vsub.s32 3, %v3673
    %v3675 = vrot.slane %v574, %v3674
    %3677 = vbcast.lane.b32.xlu0 %v3675, 256
    %v3678 = vpop.permute.xlu0 %3677
    %s3680 = sor.u32 256, 8
    %3681 = vbcast.lane.b32.xlu0 %v3675, %s3680
    %v3682 = vpop.permute.xlu0 %3681
    %s3684 = sor.u32 256, 16
    %3685 = vbcast.lane.b32.xlu0 %v3675, %s3684
    %v3686 = vpop.permute.xlu0 %3685
    %s3688 = sor.u32 256, 24
    %3689 = vbcast.lane.b32.xlu0 %v3675, %s3688
    %v3690 = vpop.permute.xlu0 %3689
    %s3692 = sor.u32 256, 32
    %3693 = vbcast.lane.b32.xlu0 %v3675, %s3692
    %v3694 = vpop.permute.xlu0 %3693
    %s3696 = sor.u32 256, 40
    %3697 = vbcast.lane.b32.xlu0 %v3675, %s3696
    %v3698 = vpop.permute.xlu0 %3697
    %s3700 = sor.u32 256, 48
    %3701 = vbcast.lane.b32.xlu0 %v3675, %s3700
    %v3702 = vpop.permute.xlu0 %3701
    %s3704 = sor.u32 256, 56
    %3705 = vbcast.lane.b32.xlu0 %v3675, %s3704
    %v3706 = vpop.permute.xlu0 %3705
    %s3708 = sor.u32 256, 64
    %3709 = vbcast.lane.b32.xlu0 %v3675, %s3708
    %v3710 = vpop.permute.xlu0 %3709
    %s3712 = sor.u32 256, 72
    %3713 = vbcast.lane.b32.xlu0 %v3675, %s3712
    %v3714 = vpop.permute.xlu0 %3713
    %s3716 = sor.u32 256, 80
    %3717 = vbcast.lane.b32.xlu0 %v3675, %s3716
    %v3718 = vpop.permute.xlu0 %3717
    %s3720 = sor.u32 256, 88
    %3721 = vbcast.lane.b32.xlu0 %v3675, %s3720
    %v3722 = vpop.permute.xlu0 %3721
    %s3724 = sor.u32 256, 96
    %3725 = vbcast.lane.b32.xlu0 %v3675, %s3724
    %v3726 = vpop.permute.xlu0 %3725
    %s3728 = sor.u32 256, 104
    %3729 = vbcast.lane.b32.xlu0 %v3675, %s3728
    %v3730 = vpop.permute.xlu0 %3729
    %s3732 = sor.u32 256, 112
    %3733 = vbcast.lane.b32.xlu0 %v3675, %s3732
    %v3734 = vpop.permute.xlu0 %3733
    %s3736 = sor.u32 256, 120
    %3737 = vbcast.lane.b32.xlu0 %v3675, %s3736
    %v3738 = vpop.permute.xlu0 %3737
    %v3739 = vlaneseq
    %v3740 = vshrl.u32 %v3739, 7
    %v3741 = vsub.s32 4, %v3740
    %v3742 = vrot.slane %v574, %v3741
    %3744 = vbcast.lane.b32.xlu0 %v3742, 256
    %v3745 = vpop.permute.xlu0 %3744
    %s3747 = sor.u32 256, 8
    %3748 = vbcast.lane.b32.xlu0 %v3742, %s3747
    %v3749 = vpop.permute.xlu0 %3748
    %s3751 = sor.u32 256, 16
    %3752 = vbcast.lane.b32.xlu0 %v3742, %s3751
    %v3753 = vpop.permute.xlu0 %3752
    %s3755 = sor.u32 256, 24
    %3756 = vbcast.lane.b32.xlu0 %v3742, %s3755
    %v3757 = vpop.permute.xlu0 %3756
    %s3759 = sor.u32 256, 32
    %3760 = vbcast.lane.b32.xlu0 %v3742, %s3759
    %v3761 = vpop.permute.xlu0 %3760
    %s3763 = sor.u32 256, 40
    %3764 = vbcast.lane.b32.xlu0 %v3742, %s3763
    %v3765 = vpop.permute.xlu0 %3764
    %s3767 = sor.u32 256, 48
    %3768 = vbcast.lane.b32.xlu0 %v3742, %s3767
    %v3769 = vpop.permute.xlu0 %3768
    %s3771 = sor.u32 256, 56
    %3772 = vbcast.lane.b32.xlu0 %v3742, %s3771
    %v3773 = vpop.permute.xlu0 %3772
    %s3775 = sor.u32 256, 64
    %3776 = vbcast.lane.b32.xlu0 %v3742, %s3775
    %v3777 = vpop.permute.xlu0 %3776
    %s3779 = sor.u32 256, 72
    %3780 = vbcast.lane.b32.xlu0 %v3742, %s3779
    %v3781 = vpop.permute.xlu0 %3780
    %s3783 = sor.u32 256, 80
    %3784 = vbcast.lane.b32.xlu0 %v3742, %s3783
    %v3785 = vpop.permute.xlu0 %3784
    %s3787 = sor.u32 256, 88
    %3788 = vbcast.lane.b32.xlu0 %v3742, %s3787
    %v3789 = vpop.permute.xlu0 %3788
    %s3791 = sor.u32 256, 96
    %3792 = vbcast.lane.b32.xlu0 %v3742, %s3791
    %v3793 = vpop.permute.xlu0 %3792
    %s3795 = sor.u32 256, 104
    %3796 = vbcast.lane.b32.xlu0 %v3742, %s3795
    %v3797 = vpop.permute.xlu0 %3796
    %s3799 = sor.u32 256, 112
    %3800 = vbcast.lane.b32.xlu0 %v3742, %s3799
    %v3801 = vpop.permute.xlu0 %3800
    %s3803 = sor.u32 256, 120
    %3804 = vbcast.lane.b32.xlu0 %v3742, %s3803
    %v3805 = vpop.permute.xlu0 %3804
    %v3806 = vlaneseq
    %v3807 = vshrl.u32 %v3806, 7
    %v3808 = vsub.s32 5, %v3807
    %v3809 = vrot.slane %v574, %v3808
    %3811 = vbcast.lane.b32.xlu0 %v3809, 256
    %v3812 = vpop.permute.xlu0 %3811
    %s3814 = sor.u32 256, 8
    %3815 = vbcast.lane.b32.xlu0 %v3809, %s3814
    %v3816 = vpop.permute.xlu0 %3815
    %s3818 = sor.u32 256, 16
    %3819 = vbcast.lane.b32.xlu0 %v3809, %s3818
    %v3820 = vpop.permute.xlu0 %3819
    %s3822 = sor.u32 256, 24
    %3823 = vbcast.lane.b32.xlu0 %v3809, %s3822
    %v3824 = vpop.permute.xlu0 %3823
    %s3826 = sor.u32 256, 32
    %3827 = vbcast.lane.b32.xlu0 %v3809, %s3826
    %v3828 = vpop.permute.xlu0 %3827
    %s3830 = sor.u32 256, 40
    %3831 = vbcast.lane.b32.xlu0 %v3809, %s3830
    %v3832 = vpop.permute.xlu0 %3831
    %s3834 = sor.u32 256, 48
    %3835 = vbcast.lane.b32.xlu0 %v3809, %s3834
    %v3836 = vpop.permute.xlu0 %3835
    %s3838 = sor.u32 256, 56
    %3839 = vbcast.lane.b32.xlu0 %v3809, %s3838
    %v3840 = vpop.permute.xlu0 %3839
    %s3842 = sor.u32 256, 64
    %3843 = vbcast.lane.b32.xlu0 %v3809, %s3842
    %v3844 = vpop.permute.xlu0 %3843
    %s3846 = sor.u32 256, 72
    %3847 = vbcast.lane.b32.xlu0 %v3809, %s3846
    %v3848 = vpop.permute.xlu0 %3847
    %s3850 = sor.u32 256, 80
    %3851 = vbcast.lane.b32.xlu0 %v3809, %s3850
    %v3852 = vpop.permute.xlu0 %3851
    %s3854 = sor.u32 256, 88
    %3855 = vbcast.lane.b32.xlu0 %v3809, %s3854
    %v3856 = vpop.permute.xlu0 %3855
    %s3858 = sor.u32 256, 96
    %3859 = vbcast.lane.b32.xlu0 %v3809, %s3858
    %v3860 = vpop.permute.xlu0 %3859
    %s3862 = sor.u32 256, 104
    %3863 = vbcast.lane.b32.xlu0 %v3809, %s3862
    %v3864 = vpop.permute.xlu0 %3863
    %s3866 = sor.u32 256, 112
    %3867 = vbcast.lane.b32.xlu0 %v3809, %s3866
    %v3868 = vpop.permute.xlu0 %3867
    %s3870 = sor.u32 256, 120
    %3871 = vbcast.lane.b32.xlu0 %v3809, %s3870
    %v3872 = vpop.permute.xlu0 %3871
    %v3873 = vlaneseq
    %v3874 = vshrl.u32 %v3873, 7
    %v3875 = vsub.s32 6, %v3874
    %v3876 = vrot.slane %v574, %v3875
    %3878 = vbcast.lane.b32.xlu0 %v3876, 256
    %v3879 = vpop.permute.xlu0 %3878
    %s3881 = sor.u32 256, 8
    %3882 = vbcast.lane.b32.xlu0 %v3876, %s3881
    %v3883 = vpop.permute.xlu0 %3882
    %s3885 = sor.u32 256, 16
    %3886 = vbcast.lane.b32.xlu0 %v3876, %s3885
    %v3887 = vpop.permute.xlu0 %3886
    %s3889 = sor.u32 256, 24
    %3890 = vbcast.lane.b32.xlu0 %v3876, %s3889
    %v3891 = vpop.permute.xlu0 %3890
    %s3893 = sor.u32 256, 32
    %3894 = vbcast.lane.b32.xlu0 %v3876, %s3893
    %v3895 = vpop.permute.xlu0 %3894
    %s3897 = sor.u32 256, 40
    %3898 = vbcast.lane.b32.xlu0 %v3876, %s3897
    %v3899 = vpop.permute.xlu0 %3898
    %s3901 = sor.u32 256, 48
    %3902 = vbcast.lane.b32.xlu0 %v3876, %s3901
    %v3903 = vpop.permute.xlu0 %3902
    %s3905 = sor.u32 256, 56
    %3906 = vbcast.lane.b32.xlu0 %v3876, %s3905
    %v3907 = vpop.permute.xlu0 %3906
    %s3909 = sor.u32 256, 64
    %3910 = vbcast.lane.b32.xlu0 %v3876, %s3909
    %v3911 = vpop.permute.xlu0 %3910
    %s3913 = sor.u32 256, 72
    %3914 = vbcast.lane.b32.xlu0 %v3876, %s3913
    %v3915 = vpop.permute.xlu0 %3914
    %s3917 = sor.u32 256, 80
    %3918 = vbcast.lane.b32.xlu0 %v3876, %s3917
    %v3919 = vpop.permute.xlu0 %3918
    %s3921 = sor.u32 256, 88
    %3922 = vbcast.lane.b32.xlu0 %v3876, %s3921
    %v3923 = vpop.permute.xlu0 %3922
    %s3925 = sor.u32 256, 96
    %3926 = vbcast.lane.b32.xlu0 %v3876, %s3925
    %v3927 = vpop.permute.xlu0 %3926
    %s3929 = sor.u32 256, 104
    %3930 = vbcast.lane.b32.xlu0 %v3876, %s3929
    %v3931 = vpop.permute.xlu0 %3930
    %s3933 = sor.u32 256, 112
    %3934 = vbcast.lane.b32.xlu0 %v3876, %s3933
    %v3935 = vpop.permute.xlu0 %3934
    %s3937 = sor.u32 256, 120
    %3938 = vbcast.lane.b32.xlu0 %v3876, %s3937
    %v3939 = vpop.permute.xlu0 %3938
    %v3940 = vlaneseq
    %v3941 = vshrl.u32 %v3940, 7
    %v3942 = vsub.s32 7, %v3941
    %v3943 = vrot.slane %v574, %v3942
    %3945 = vbcast.lane.b32.xlu0 %v3943, 256
    %v3946 = vpop.permute.xlu0 %3945
    %s3948 = sor.u32 256, 8
    %3949 = vbcast.lane.b32.xlu0 %v3943, %s3948
    %v3950 = vpop.permute.xlu0 %3949
    %s3952 = sor.u32 256, 16
    %3953 = vbcast.lane.b32.xlu0 %v3943, %s3952
    %v3954 = vpop.permute.xlu0 %3953
    %s3956 = sor.u32 256, 24
    %3957 = vbcast.lane.b32.xlu0 %v3943, %s3956
    %v3958 = vpop.permute.xlu0 %3957
    %s3960 = sor.u32 256, 32
    %3961 = vbcast.lane.b32.xlu0 %v3943, %s3960
    %v3962 = vpop.permute.xlu0 %3961
    %s3964 = sor.u32 256, 40
    %3965 = vbcast.lane.b32.xlu0 %v3943, %s3964
    %v3966 = vpop.permute.xlu0 %3965
    %s3968 = sor.u32 256, 48
    %3969 = vbcast.lane.b32.xlu0 %v3943, %s3968
    %v3970 = vpop.permute.xlu0 %3969
    %s3972 = sor.u32 256, 56
    %3973 = vbcast.lane.b32.xlu0 %v3943, %s3972
    %v3974 = vpop.permute.xlu0 %3973
    %s3976 = sor.u32 256, 64
    %3977 = vbcast.lane.b32.xlu0 %v3943, %s3976
    %v3978 = vpop.permute.xlu0 %3977
    %s3980 = sor.u32 256, 72
    %3981 = vbcast.lane.b32.xlu0 %v3943, %s3980
    %v3982 = vpop.permute.xlu0 %3981
    %s3984 = sor.u32 256, 80
    %3985 = vbcast.lane.b32.xlu0 %v3943, %s3984
    %v3986 = vpop.permute.xlu0 %3985
    %s3988 = sor.u32 256, 88
    %3989 = vbcast.lane.b32.xlu0 %v3943, %s3988
    %v3990 = vpop.permute.xlu0 %3989
    %s3992 = sor.u32 256, 96
    %3993 = vbcast.lane.b32.xlu0 %v3943, %s3992
    %v3994 = vpop.permute.xlu0 %3993
    %s3996 = sor.u32 256, 104
    %3997 = vbcast.lane.b32.xlu0 %v3943, %s3996
    %v3998 = vpop.permute.xlu0 %3997
    %s4000 = sor.u32 256, 112
    %4001 = vbcast.lane.b32.xlu0 %v3943, %s4000
    %v4002 = vpop.permute.xlu0 %4001
    %s4004 = sor.u32 256, 120
    %4005 = vbcast.lane.b32.xlu0 %v3943, %s4004
    %v4006 = vpop.permute.xlu0 %4005
    %v4007 = vsel %vm3343, %v3477, 0.0
    %v4008 = vsel %vm3344, %v3481, 0.0
    %v4009 = vsel %vm3345, %v3485, 0.0
    %v4010 = vsel %vm3346, %v3489, 0.0
    %v4011 = vsel %vm3347, %v3493, 0.0
    %v4012 = vsel %vm3348, %v3497, 0.0
    %v4013 = vsel %vm3349, %v3501, 0.0
    %v4014 = vsel %vm3350, %v3505, 0.0
    %v4015 = vsel %vm3351, %v3509, 0.0
    %v4016 = vsel %vm3352, %v3513, 0.0
    %v4017 = vsel %vm3353, %v3517, 0.0
    %v4018 = vsel %vm3354, %v3521, 0.0
    %v4019 = vsel %vm3355, %v3525, 0.0
    %v4020 = vsel %vm3356, %v3529, 0.0
    %v4021 = vsel %vm3357, %v3533, 0.0
    %v4022 = vsel %vm3358, %v3537, 0.0
    %v4023 = vsel %vm3359, %v3544, 0.0
    %v4024 = vsel %vm3360, %v3548, 0.0
    %v4025 = vsel %vm3361, %v3552, 0.0
    %v4026 = vsel %vm3362, %v3556, 0.0
    %v4027 = vsel %vm3363, %v3560, 0.0
    %v4028 = vsel %vm3364, %v3564, 0.0
    %v4029 = vsel %vm3365, %v3568, 0.0
    %v4030 = vsel %vm3366, %v3572, 0.0
    %v4031 = vsel %vm3367, %v3576, 0.0
    %v4032 = vsel %vm3368, %v3580, 0.0
    %v4033 = vsel %vm3369, %v3584, 0.0
    %v4034 = vsel %vm3370, %v3588, 0.0
    %v4035 = vsel %vm3371, %v3592, 0.0
    %v4036 = vsel %vm3372, %v3596, 0.0
    %v4037 = vsel %vm3373, %v3600, 0.0
    %v4038 = vsel %vm3374, %v3604, 0.0
    %v4039 = vsel %vm3375, %v3611, 0.0
    %v4040 = vsel %vm3376, %v3615, 0.0
    %v4041 = vsel %vm3377, %v3619, 0.0
    %v4042 = vsel %vm3378, %v3623, 0.0
    %v4043 = vsel %vm3379, %v3627, 0.0
    %v4044 = vsel %vm3380, %v3631, 0.0
    %v4045 = vsel %vm3381, %v3635, 0.0
    %v4046 = vsel %vm3382, %v3639, 0.0
    %v4047 = vsel %vm3383, %v3643, 0.0
    %v4048 = vsel %vm3384, %v3647, 0.0
    %v4049 = vsel %vm3385, %v3651, 0.0
    %v4050 = vsel %vm3386, %v3655, 0.0
    %v4051 = vsel %vm3387, %v3659, 0.0
    %v4052 = vsel %vm3388, %v3663, 0.0
    %v4053 = vsel %vm3389, %v3667, 0.0
    %v4054 = vsel %vm3390, %v3671, 0.0
    %v4055 = vsel %vm3391, %v3678, 0.0
    %v4056 = vsel %vm3392, %v3682, 0.0
    %v4057 = vsel %vm3393, %v3686, 0.0
    %v4058 = vsel %vm3394, %v3690, 0.0
    %v4059 = vsel %vm3395, %v3694, 0.0
    %v4060 = vsel %vm3396, %v3698, 0.0
    %v4061 = vsel %vm3397, %v3702, 0.0
    %v4062 = vsel %vm3398, %v3706, 0.0
    %v4063 = vsel %vm3399, %v3710, 0.0
    %v4064 = vsel %vm3400, %v3714, 0.0
    %v4065 = vsel %vm3401, %v3718, 0.0
    %v4066 = vsel %vm3402, %v3722, 0.0
    %v4067 = vsel %vm3403, %v3726, 0.0
    %v4068 = vsel %vm3404, %v3730, 0.0
    %v4069 = vsel %vm3405, %v3734, 0.0
    %v4070 = vsel %vm3406, %v3738, 0.0
    %v4071 = vsel %vm3407, %v3745, 0.0
    %v4072 = vsel %vm3408, %v3749, 0.0
    %v4073 = vsel %vm3409, %v3753, 0.0
    %v4074 = vsel %vm3410, %v3757, 0.0
    %v4075 = vsel %vm3411, %v3761, 0.0
    %v4076 = vsel %vm3412, %v3765, 0.0
    %v4077 = vsel %vm3413, %v3769, 0.0
    %v4078 = vsel %vm3414, %v3773, 0.0
    %v4079 = vsel %vm3415, %v3777, 0.0
    %v4080 = vsel %vm3416, %v3781, 0.0
    %v4081 = vsel %vm3417, %v3785, 0.0
    %v4082 = vsel %vm3418, %v3789, 0.0
    %v4083 = vsel %vm3419, %v3793, 0.0
    %v4084 = vsel %vm3420, %v3797, 0.0
    %v4085 = vsel %vm3421, %v3801, 0.0
    %v4086 = vsel %vm3422, %v3805, 0.0
    %v4087 = vsel %vm3423, %v3812, 0.0
    %v4088 = vsel %vm3424, %v3816, 0.0
    %v4089 = vsel %vm3425, %v3820, 0.0
    %v4090 = vsel %vm3426, %v3824, 0.0
    %v4091 = vsel %vm3427, %v3828, 0.0
    %v4092 = vsel %vm3428, %v3832, 0.0
    %v4093 = vsel %vm3429, %v3836, 0.0
    %v4094 = vsel %vm3430, %v3840, 0.0
    %v4095 = vsel %vm3431, %v3844, 0.0
    %v4096 = vsel %vm3432, %v3848, 0.0
    %v4097 = vsel %vm3433, %v3852, 0.0
    %v4098 = vsel %vm3434, %v3856, 0.0
    %v4099 = vsel %vm3435, %v3860, 0.0
    %v4100 = vsel %vm3436, %v3864, 0.0
    %v4101 = vsel %vm3437, %v3868, 0.0
    %v4102 = vsel %vm3438, %v3872, 0.0
    %v4103 = vsel %vm3439, %v3879, 0.0
    %v4104 = vsel %vm3440, %v3883, 0.0
    %v4105 = vsel %vm3441, %v3887, 0.0
    %v4106 = vsel %vm3442, %v3891, 0.0
    %v4107 = vsel %vm3443, %v3895, 0.0
    %v4108 = vsel %vm3444, %v3899, 0.0
    %v4109 = vsel %vm3445, %v3903, 0.0
    %v4110 = vsel %vm3446, %v3907, 0.0
    %v4111 = vsel %vm3447, %v3911, 0.0
    %v4112 = vsel %vm3448, %v3915, 0.0
    %v4113 = vsel %vm3449, %v3919, 0.0
    %v4114 = vsel %vm3450, %v3923, 0.0
    %v4115 = vsel %vm3451, %v3927, 0.0
    %v4116 = vsel %vm3452, %v3931, 0.0
    %v4117 = vsel %vm3453, %v3935, 0.0
    %v4118 = vsel %vm3454, %v3939, 0.0
    %v4119 = vsel %vm3455, %v3946, 0.0
    %v4120 = vsel %vm3456, %v3950, 0.0
    %v4121 = vsel %vm3457, %v3954, 0.0
    %v4122 = vsel %vm3458, %v3958, 0.0
    %v4123 = vsel %vm3459, %v3962, 0.0
    %v4124 = vsel %vm3460, %v3966, 0.0
    %v4125 = vsel %vm3461, %v3970, 0.0
    %v4126 = vsel %vm3462, %v3974, 0.0
    %v4127 = vsel %vm3463, %v3978, 0.0
    %v4128 = vsel %vm3464, %v3982, 0.0
    %v4129 = vsel %vm3465, %v3986, 0.0
    %v4130 = vsel %vm3466, %v3990, 0.0
    %v4131 = vsel %vm3467, %v3994, 0.0
    %v4132 = vsel %vm3468, %v3998, 0.0
    %v4133 = vsel %vm3469, %v4002, 0.0
    %v4134 = vsel %vm3470, %v4006, 0.0
    %4135 = vmatprep.subr.mxu0 0.0
    %4136 = vmatpush1.msra.mxu0 %v4007
    %4137 = vmatprep.subr.mxu0 0.0
    %4138 = vmatpush1.msra.mxu0 %v4008
    %4139 = vmatprep.subr.mxu0 0.0
    %4140 = vmatpush1.msra.mxu0 %v4009
    %4141 = vmatprep.subr.mxu0 0.0
    %4142 = vmatpush1.msra.mxu0 %v4010
    %4143 = vmatprep.subr.mxu0 0.0
    %4144 = vmatpush1.msra.mxu0 %v4011
    %4145 = vmatprep.subr.mxu0 0.0
    %4146 = vmatpush1.msra.mxu0 %v4012
    %4147 = vmatprep.subr.mxu0 0.0
    %4148 = vmatpush1.msra.mxu0 %v4013
    %4149 = vmatprep.subr.mxu0 0.0
    %4150 = vmatpush1.msra.mxu0 %v4014
    %4151 = vmatprep.subr.mxu0 0.0
    %4152 = vmatpush1.msra.mxu0 %v4015
    %4153 = vmatprep.subr.mxu0 0.0
    %4154 = vmatpush1.msra.mxu0 %v4016
    %4155 = vmatprep.subr.mxu0 0.0
    %4156 = vmatpush1.msra.mxu0 %v4017
    %4157 = vmatprep.subr.mxu0 0.0
    %4158 = vmatpush1.msra.mxu0 %v4018
    %4159 = vmatprep.subr.mxu0 0.0
    %4160 = vmatpush1.msra.mxu0 %v4019
    %4161 = vmatprep.subr.mxu0 0.0
    %4162 = vmatpush1.msra.mxu0 %v4020
    %4163 = vmatprep.subr.mxu0 0.0
    %4164 = vmatpush1.msra.mxu0 %v4021
    %4165 = vmatprep.subr.mxu0 0.0
    %4166 = vmatpush1.msra.mxu0 %v4022
    %4167 = vmatprep.subr.mxu0 0.0
    %4168 = vmatpush1.msra.mxu0 %v4023
    %4169 = vmatprep.subr.mxu0 0.0
    %4170 = vmatpush1.msra.mxu0 %v4024
    %4171 = vmatprep.subr.mxu0 0.0
    %4172 = vmatpush1.msra.mxu0 %v4025
    %4173 = vmatprep.subr.mxu0 0.0
    %4174 = vmatpush1.msra.mxu0 %v4026
    %4175 = vmatprep.subr.mxu0 0.0
    %4176 = vmatpush1.msra.mxu0 %v4027
    %4177 = vmatprep.subr.mxu0 0.0
    %4178 = vmatpush1.msra.mxu0 %v4028
    %4179 = vmatprep.subr.mxu0 0.0
    %4180 = vmatpush1.msra.mxu0 %v4029
    %4181 = vmatprep.subr.mxu0 0.0
    %4182 = vmatpush1.msra.mxu0 %v4030
    %4183 = vmatprep.subr.mxu0 0.0
    %4184 = vmatpush1.msra.mxu0 %v4031
    %4185 = vmatprep.subr.mxu0 0.0
    %4186 = vmatpush1.msra.mxu0 %v4032
    %4187 = vmatprep.subr.mxu0 0.0
    %4188 = vmatpush1.msra.mxu0 %v4033
    %4189 = vmatprep.subr.mxu0 0.0
    %4190 = vmatpush1.msra.mxu0 %v4034
    %4191 = vmatprep.subr.mxu0 0.0
    %4192 = vmatpush1.msra.mxu0 %v4035
    %4193 = vmatprep.subr.mxu0 0.0
    %4194 = vmatpush1.msra.mxu0 %v4036
    %4195 = vmatprep.subr.mxu0 0.0
    %4196 = vmatpush1.msra.mxu0 %v4037
    %4197 = vmatprep.subr.mxu0 0.0
    %4198 = vmatpush1.msra.mxu0 %v4038
    %4199 = vmatprep.mubr.f32.mxu0 %v2126
    %4200 = vmatmul.mubr.f32.gmra.mrb[0].mxu0 %v2125
    %v4201 = vpop.f32.mrb[0].mxu0
    %v4202 = vadd.f32 0.0, %v4201
    %v4203 = vpop.f32.mrb[0].mxu0
    %4204 = vmatprep.mubr.f32.mxu0 %v2134
    %4205 = vmatmul.mubr.f32.gmra.mrb[0].mxu0 %v2133
    %v4206 = vpop.f32.mrb[0].mxu0
    %v4207 = vadd.f32 0.0, %v4206
    %v4208 = vpop.f32.mrb[0].mxu0
    %4209 = vmatprep.mubr.f32.mxu0 %v2142
    %4210 = vmatmul.mubr.f32.gmra.mrb[0].mxu0 %v2141
    %v4211 = vpop.f32.mrb[0].mxu0
    %v4212 = vadd.f32 0.0, %v4211
    %v4213 = vpop.f32.mrb[0].mxu0
    %4214 = vmatprep.mubr.f32.mxu0 %v2150
    %4215 = vmatmul.mubr.f32.gmra.mrb[0].mxu0 %v2149
    %v4216 = vpop.f32.mrb[0].mxu0
    %v4217 = vadd.f32 0.0, %v4216
    %v4218 = vpop.f32.mrb[0].mxu0
    %4219 = vdwg.mxu0
    %4220 = vmatprep.subr.mxu0 0.0
    %4221 = vmatpush1.msra.mxu0 %v4039
    %4222 = vmatprep.subr.mxu0 0.0
    %4223 = vmatpush1.msra.mxu0 %v4040
    %4224 = vmatprep.subr.mxu0 0.0
    %4225 = vmatpush1.msra.mxu0 %v4041
    %4226 = vmatprep.subr.mxu0 0.0
    %4227 = vmatpush1.msra.mxu0 %v4042
    %4228 = vmatprep.subr.mxu0 0.0
    %4229 = vmatpush1.msra.mxu0 %v4043
    %4230 = vmatprep.subr.mxu0 0.0
    %4231 = vmatpush1.msra.mxu0 %v4044
    %4232 = vmatprep.subr.mxu0 0.0
    %4233 = vmatpush1.msra.mxu0 %v4045
    %4234 = vmatprep.subr.mxu0 0.0
    %4235 = vmatpush1.msra.mxu0 %v4046
    %4236 = vmatprep.subr.mxu0 0.0
    %4237 = vmatpush1.msra.mxu0 %v4047
    %4238 = vmatprep.subr.mxu0 0.0
    %4239 = vmatpush1.msra.mxu0 %v4048
    %4240 = vmatprep.subr.mxu0 0.0
    %4241 = vmatpush1.msra.mxu0 %v4049
    %4242 = vmatprep.subr.mxu0 0.0
    %4243 = vmatpush1.msra.mxu0 %v4050
    %4244 = vmatprep.subr.mxu0 0.0
    %4245 = vmatpush1.msra.mxu0 %v4051
    %4246 = vmatprep.subr.mxu0 0.0
    %4247 = vmatpush1.msra.mxu0 %v4052
    %4248 = vmatprep.subr.mxu0 0.0
    %4249 = vmatpush1.msra.mxu0 %v4053
    %4250 = vmatprep.subr.mxu0 0.0
    %4251 = vmatpush1.msra.mxu0 %v4054
    %4252 = vmatprep.subr.mxu0 0.0
    %4253 = vmatpush1.msra.mxu0 %v4055
    %4254 = vmatprep.subr.mxu0 0.0
    %4255 = vmatpush1.msra.mxu0 %v4056
    %4256 = vmatprep.subr.mxu0 0.0
    %4257 = vmatpush1.msra.mxu0 %v4057
    %4258 = vmatprep.subr.mxu0 0.0
    %4259 = vmatpush1.msra.mxu0 %v4058
    %4260 = vmatprep.subr.mxu0 0.0
    %4261 = vmatpush1.msra.mxu0 %v4059
    %4262 = vmatprep.subr.mxu0 0.0
    %4263 = vmatpush1.msra.mxu0 %v4060
    %4264 = vmatprep.subr.mxu0 0.0
    %4265 = vmatpush1.msra.mxu0 %v4061
    %4266 = vmatprep.subr.mxu0 0.0
    %4267 = vmatpush1.msra.mxu0 %v4062
    %4268 = vmatprep.subr.mxu0 0.0
    %4269 = vmatpush1.msra.mxu0 %v4063
    %4270 = vmatprep.subr.mxu0 0.0
    %4271 = vmatpush1.msra.mxu0 %v4064
    %4272 = vmatprep.subr.mxu0 0.0
    %4273 = vmatpush1.msra.mxu0 %v4065
    %4274 = vmatprep.subr.mxu0 0.0
    %4275 = vmatpush1.msra.mxu0 %v4066
    %4276 = vmatprep.subr.mxu0 0.0
    %4277 = vmatpush1.msra.mxu0 %v4067
    %4278 = vmatprep.subr.mxu0 0.0
    %4279 = vmatpush1.msra.mxu0 %v4068
    %4280 = vmatprep.subr.mxu0 0.0
    %4281 = vmatpush1.msra.mxu0 %v4069
    %4282 = vmatprep.subr.mxu0 0.0
    %4283 = vmatpush1.msra.mxu0 %v4070
    %4284 = vmatprep.mubr.f32.mxu0 %v2128
    %4285 = vmatmul.mubr.f32.gmra.mrb[0].mxu0 %v2127
    %v4286 = vpop.f32.mrb[0].mxu0
    %v4287 = vadd.f32 %v4202, %v4286
    %v4288 = vpop.f32.mrb[0].mxu0
    %4289 = vmatprep.mubr.f32.mxu0 %v2136
    %4290 = vmatmul.mubr.f32.gmra.mrb[0].mxu0 %v2135
    %v4291 = vpop.f32.mrb[0].mxu0
    %v4292 = vadd.f32 %v4207, %v4291
    %v4293 = vpop.f32.mrb[0].mxu0
    %4294 = vmatprep.mubr.f32.mxu0 %v2144
    %4295 = vmatmul.mubr.f32.gmra.mrb[0].mxu0 %v2143
    %v4296 = vpop.f32.mrb[0].mxu0
    %v4297 = vadd.f32 %v4212, %v4296
    %v4298 = vpop.f32.mrb[0].mxu0
    %4299 = vmatprep.mubr.f32.mxu0 %v2152
    %4300 = vmatmul.mubr.f32.gmra.mrb[0].mxu0 %v2151
    %v4301 = vpop.f32.mrb[0].mxu0
    %v4302 = vadd.f32 %v4217, %v4301
    %v4303 = vpop.f32.mrb[0].mxu0
    %4304 = vdwg.mxu0
    %4305 = vmatprep.subr.mxu0 0.0
    %4306 = vmatpush1.msra.mxu0 %v4071
    %4307 = vmatprep.subr.mxu0 0.0
    %4308 = vmatpush1.msra.mxu0 %v4072
    %4309 = vmatprep.subr.mxu0 0.0
    %4310 = vmatpush1.msra.mxu0 %v4073
    %4311 = vmatprep.subr.mxu0 0.0
    %4312 = vmatpush1.msra.mxu0 %v4074
    %4313 = vmatprep.subr.mxu0 0.0
    %4314 = vmatpush1.msra.mxu0 %v4075
    %4315 = vmatprep.subr.mxu0 0.0
    %4316 = vmatpush1.msra.mxu0 %v4076
    %4317 = vmatprep.subr.mxu0 0.0
    %4318 = vmatpush1.msra.mxu0 %v4077
    %4319 = vmatprep.subr.mxu0 0.0
    %4320 = vmatpush1.msra.mxu0 %v4078
    %4321 = vmatprep.subr.mxu0 0.0
    %4322 = vmatpush1.msra.mxu0 %v4079
    %4323 = vmatprep.subr.mxu0 0.0
    %4324 = vmatpush1.msra.mxu0 %v4080
    %4325 = vmatprep.subr.mxu0 0.0
    %4326 = vmatpush1.msra.mxu0 %v4081
    %4327 = vmatprep.subr.mxu0 0.0
    %4328 = vmatpush1.msra.mxu0 %v4082
    %4329 = vmatprep.subr.mxu0 0.0
    %4330 = vmatpush1.msra.mxu0 %v4083
    %4331 = vmatprep.subr.mxu0 0.0
    %4332 = vmatpush1.msra.mxu0 %v4084
    %4333 = vmatprep.subr.mxu0 0.0
    %4334 = vmatpush1.msra.mxu0 %v4085
    %4335 = vmatprep.subr.mxu0 0.0
    %4336 = vmatpush1.msra.mxu0 %v4086
    %4337 = vmatprep.subr.mxu0 0.0
    %4338 = vmatpush1.msra.mxu0 %v4087
    %4339 = vmatprep.subr.mxu0 0.0
    %4340 = vmatpush1.msra.mxu0 %v4088
    %4341 = vmatprep.subr.mxu0 0.0
    %4342 = vmatpush1.msra.mxu0 %v4089
    %4343 = vmatprep.subr.mxu0 0.0
    %4344 = vmatpush1.msra.mxu0 %v4090
    %4345 = vmatprep.subr.mxu0 0.0
    %4346 = vmatpush1.msra.mxu0 %v4091
    %4347 = vmatprep.subr.mxu0 0.0
    %4348 = vmatpush1.msra.mxu0 %v4092
    %4349 = vmatprep.subr.mxu0 0.0
    %4350 = vmatpush1.msra.mxu0 %v4093
    %4351 = vmatprep.subr.mxu0 0.0
    %4352 = vmatpush1.msra.mxu0 %v4094
    %4353 = vmatprep.subr.mxu0 0.0
    %4354 = vmatpush1.msra.mxu0 %v4095
    %4355 = vmatprep.subr.mxu0 0.0
    %4356 = vmatpush1.msra.mxu0 %v4096
    %4357 = vmatprep.subr.mxu0 0.0
    %4358 = vmatpush1.msra.mxu0 %v4097
    %4359 = vmatprep.subr.mxu0 0.0
    %4360 = vmatpush1.msra.mxu0 %v4098
    %4361 = vmatprep.subr.mxu0 0.0
    %4362 = vmatpush1.msra.mxu0 %v4099
    %4363 = vmatprep.subr.mxu0 0.0
    %4364 = vmatpush1.msra.mxu0 %v4100
    %4365 = vmatprep.subr.mxu0 0.0
    %4366 = vmatpush1.msra.mxu0 %v4101
    %4367 = vmatprep.subr.mxu0 0.0
    %4368 = vmatpush1.msra.mxu0 %v4102
    %4369 = vmatprep.mubr.f32.mxu0 %v2130
    %4370 = vmatmul.mubr.f32.gmra.mrb[0].mxu0 %v2129
    %v4371 = vpop.f32.mrb[0].mxu0
    %v4372 = vadd.f32 %v4287, %v4371
    %v4373 = vpop.f32.mrb[0].mxu0
    %4374 = vmatprep.mubr.f32.mxu0 %v2138
    %4375 = vmatmul.mubr.f32.gmra.mrb[0].mxu0 %v2137
    %v4376 = vpop.f32.mrb[0].mxu0
    %v4377 = vadd.f32 %v4292, %v4376
    %v4378 = vpop.f32.mrb[0].mxu0
    %4379 = vmatprep.mubr.f32.mxu0 %v2146
    %4380 = vmatmul.mubr.f32.gmra.mrb[0].mxu0 %v2145
    %v4381 = vpop.f32.mrb[0].mxu0
    %v4382 = vadd.f32 %v4297, %v4381
    %v4383 = vpop.f32.mrb[0].mxu0
    %4384 = vmatprep.mubr.f32.mxu0 %v2154
    %4385 = vmatmul.mubr.f32.gmra.mrb[0].mxu0 %v2153
    %v4386 = vpop.f32.mrb[0].mxu0
    %v4387 = vadd.f32 %v4302, %v4386
    %v4388 = vpop.f32.mrb[0].mxu0
    %4389 = vdwg.mxu0
    %4390 = vmatprep.subr.mxu0 0.0
    %4391 = vmatpush1.msra.mxu0 %v4103
    %4392 = vmatprep.subr.mxu0 0.0
    %4393 = vmatpush1.msra.mxu0 %v4104
    %4394 = vmatprep.subr.mxu0 0.0
    %4395 = vmatpush1.msra.mxu0 %v4105
    %4396 = vmatprep.subr.mxu0 0.0
    %4397 = vmatpush1.msra.mxu0 %v4106
    %4398 = vmatprep.subr.mxu0 0.0
    %4399 = vmatpush1.msra.mxu0 %v4107
    %4400 = vmatprep.subr.mxu0 0.0
    %4401 = vmatpush1.msra.mxu0 %v4108
    %4402 = vmatprep.subr.mxu0 0.0
    %4403 = vmatpush1.msra.mxu0 %v4109
    %4404 = vmatprep.subr.mxu0 0.0
    %4405 = vmatpush1.msra.mxu0 %v4110
    %4406 = vmatprep.subr.mxu0 0.0
    %4407 = vmatpush1.msra.mxu0 %v4111
    %4408 = vmatprep.subr.mxu0 0.0
    %4409 = vmatpush1.msra.mxu0 %v4112
    %4410 = vmatprep.subr.mxu0 0.0
    %4411 = vmatpush1.msra.mxu0 %v4113
    %4412 = vmatprep.subr.mxu0 0.0
    %4413 = vmatpush1.msra.mxu0 %v4114
    %4414 = vmatprep.subr.mxu0 0.0
    %4415 = vmatpush1.msra.mxu0 %v4115
    %4416 = vmatprep.subr.mxu0 0.0
    %4417 = vmatpush1.msra.mxu0 %v4116
    %4418 = vmatprep.subr.mxu0 0.0
    %4419 = vmatpush1.msra.mxu0 %v4117
    %4420 = vmatprep.subr.mxu0 0.0
    %4421 = vmatpush1.msra.mxu0 %v4118
    %4422 = vmatprep.subr.mxu0 0.0
    %4423 = vmatpush1.msra.mxu0 %v4119
    %4424 = vmatprep.subr.mxu0 0.0
    %4425 = vmatpush1.msra.mxu0 %v4120
    %4426 = vmatprep.subr.mxu0 0.0
    %4427 = vmatpush1.msra.mxu0 %v4121
    %4428 = vmatprep.subr.mxu0 0.0
    %4429 = vmatpush1.msra.mxu0 %v4122
    %4430 = vmatprep.subr.mxu0 0.0
    %4431 = vmatpush1.msra.mxu0 %v4123
    %4432 = vmatprep.subr.mxu0 0.0
    %4433 = vmatpush1.msra.mxu0 %v4124
    %4434 = vmatprep.subr.mxu0 0.0
    %4435 = vmatpush1.msra.mxu0 %v4125
    %4436 = vmatprep.subr.mxu0 0.0
    %4437 = vmatpush1.msra.mxu0 %v4126
    %4438 = vmatprep.subr.mxu0 0.0
    %4439 = vmatpush1.msra.mxu0 %v4127
    %4440 = vmatprep.subr.mxu0 0.0
    %4441 = vmatpush1.msra.mxu0 %v4128
    %4442 = vmatprep.subr.mxu0 0.0
    %4443 = vmatpush1.msra.mxu0 %v4129
    %4444 = vmatprep.subr.mxu0 0.0
    %4445 = vmatpush1.msra.mxu0 %v4130
    %4446 = vmatprep.subr.mxu0 0.0
    %4447 = vmatpush1.msra.mxu0 %v4131
    %4448 = vmatprep.subr.mxu0 0.0
    %4449 = vmatpush1.msra.mxu0 %v4132
    %4450 = vmatprep.subr.mxu0 0.0
    %4451 = vmatpush1.msra.mxu0 %v4133
    %4452 = vmatprep.subr.mxu0 0.0
    %4453 = vmatpush1.msra.mxu0 %v4134
    %4454 = vmatprep.mubr.f32.mxu0 %v2132
    %4455 = vmatmul.mubr.f32.gmra.mrb[0].mxu0 %v2131
    %v4456 = vpop.f32.mrb[0].mxu0
    %v4457 = vadd.f32 %v4372, %v4456
    %v4458 = vpop.f32.mrb[0].mxu0
    %4459 = vmatprep.mubr.f32.mxu0 %v2140
    %4460 = vmatmul.mubr.f32.gmra.mrb[0].mxu0 %v2139
    %v4461 = vpop.f32.mrb[0].mxu0
    %v4462 = vadd.f32 %v4377, %v4461
    %v4463 = vpop.f32.mrb[0].mxu0
    %4464 = vmatprep.mubr.f32.mxu0 %v2148
    %4465 = vmatmul.mubr.f32.gmra.mrb[0].mxu0 %v2147
    %v4466 = vpop.f32.mrb[0].mxu0
    %v4467 = vadd.f32 %v4382, %v4466
    %v4468 = vpop.f32.mrb[0].mxu0
    %4469 = vmatprep.mubr.f32.mxu0 %v2156
    %4470 = vmatmul.mubr.f32.gmra.mrb[0].mxu0 %v2155
    %v4471 = vpop.f32.mrb[0].mxu0
    %v4472 = vadd.f32 %v4387, %v4471
    %v4473 = vpop.f32.mrb[0].mxu0
    %4474 = vdwg.mxu0
    %4475 = vmatprep.subr.mxu0 0.0
    %4476 = vmatpush1.msra.mxu0 %v2729
    %4477 = vmatprep.subr.mxu0 0.0
    %4478 = vmatpush1.msra.mxu0 %v2734
    %4479 = vmatprep.subr.mxu0 0.0
    %4480 = vmatpush1.msra.mxu0 %v2739
    %4481 = vmatprep.subr.mxu0 0.0
    %4482 = vmatpush1.msra.mxu0 %v2744
    %4483 = vmatprep.subr.mxu0 0.0
    %4484 = vmatpush1.msra.mxu0 %v2749
    %4485 = vmatprep.subr.mxu0 0.0
    %4486 = vmatpush1.msra.mxu0 %v2754
    %4487 = vmatprep.subr.mxu0 0.0
    %4488 = vmatpush1.msra.mxu0 %v2759
    %4489 = vmatprep.subr.mxu0 0.0
    %4490 = vmatpush1.msra.mxu0 %v2764
    %4491 = vmatprep.subr.mxu0 0.0
    %4492 = vmatpush1.msra.mxu0 %v2769
    %4493 = vmatprep.subr.mxu0 0.0
    %4494 = vmatpush1.msra.mxu0 %v2774
    %4495 = vmatprep.subr.mxu0 0.0
    %4496 = vmatpush1.msra.mxu0 %v2779
    %4497 = vmatprep.subr.mxu0 0.0
    %4498 = vmatpush1.msra.mxu0 %v2784
    %4499 = vmatprep.subr.mxu0 0.0
    %4500 = vmatpush1.msra.mxu0 %v2789
    %4501 = vmatprep.subr.mxu0 0.0
    %4502 = vmatpush1.msra.mxu0 %v2794
    %4503 = vmatprep.subr.mxu0 0.0
    %4504 = vmatpush1.msra.mxu0 %v2799
    %4505 = vmatprep.subr.mxu0 0.0
    %4506 = vmatpush1.msra.mxu0 %v2804
    %4507 = vmatprep.subr.mxu0 0.0
    %4508 = vmatpush1.msra.mxu0 0.0
    %4509 = vmatprep.subr.mxu0 0.0
    %4510 = vmatpush1.msra.mxu0 0.0
    %4511 = vmatprep.subr.mxu0 0.0
    %4512 = vmatpush1.msra.mxu0 0.0
    %4513 = vmatprep.subr.mxu0 0.0
    %4514 = vmatpush1.msra.mxu0 0.0
    %4515 = vmatprep.subr.mxu0 0.0
    %4516 = vmatpush1.msra.mxu0 0.0
    %4517 = vmatprep.subr.mxu0 0.0
    %4518 = vmatpush1.msra.mxu0 0.0
    %4519 = vmatprep.subr.mxu0 0.0
    %4520 = vmatpush1.msra.mxu0 0.0
    %4521 = vmatprep.subr.mxu0 0.0
    %4522 = vmatpush1.msra.mxu0 0.0
    %4523 = vmatprep.subr.mxu0 0.0
    %4524 = vmatpush1.msra.mxu0 0.0
    %4525 = vmatprep.subr.mxu0 0.0
    %4526 = vmatpush1.msra.mxu0 0.0
    %4527 = vmatprep.subr.mxu0 0.0
    %4528 = vmatpush1.msra.mxu0 0.0
    %4529 = vmatprep.subr.mxu0 0.0
    %4530 = vmatpush1.msra.mxu0 0.0
    %4531 = vmatprep.subr.mxu0 0.0
    %4532 = vmatpush1.msra.mxu0 0.0
    %4533 = vmatprep.subr.mxu0 0.0
    %4534 = vmatpush1.msra.mxu0 0.0
    %4535 = vmatprep.subr.mxu0 0.0
    %4536 = vmatpush1.msra.mxu0 0.0
    %4537 = vmatprep.subr.mxu0 0.0
    %4538 = vmatpush1.msra.mxu0 0.0
    %4539 = vmatprep.mubr.f32.mxu0 0.0
    %4540 = vmatmul.mubr.f32.gmra.mrb[0].mxu0 %v4457
    %v4541 = vpop.f32.mrb[0].mxu0
    %v4542 = vadd.f32 0.0, %v4541
    %v4543 = vpop.f32.mrb[0].mxu0
    %4544 = vmatprep.mubr.f32.mxu0 0.0
    %4545 = vmatmul.mubr.f32.gmra.mrb[0].mxu0 %v4462
    %v4546 = vpop.f32.mrb[0].mxu0
    %v4547 = vadd.f32 0.0, %v4546
    %v4548 = vpop.f32.mrb[0].mxu0
    %4549 = vmatprep.mubr.f32.mxu0 0.0
    %4550 = vmatmul.mubr.f32.gmra.mrb[0].mxu0 %v4467
    %v4551 = vpop.f32.mrb[0].mxu0
    %v4552 = vadd.f32 0.0, %v4551
    %v4553 = vpop.f32.mrb[0].mxu0
    %4554 = vmatprep.mubr.f32.mxu0 0.0
    %4555 = vmatmul.mubr.f32.gmra.mrb[0].mxu0 %v4472
    %v4556 = vpop.f32.mrb[0].mxu0
    %v4557 = vadd.f32 0.0, %v4556
    %v4558 = vpop.f32.mrb[0].mxu0
    %4559 = vdwg.mxu0
    %v4560 = vmul.f32 %v4542, %v2582
    %v4561 = vmul.f32 %v4547, %v2583
    %v4562 = vmul.f32 %v4552, %v2584
    %v4563 = vmul.f32 %v4557, %v2585
    %v4564 = vsel %vm124, %v4560, 0.0
    %v4565 = vsel %vm124, %v4561, 0.0
    %v4566 = vadd.f32 %v4564, %v4565
    %v4567 = vsel %vm124, %v4562, 0.0
    %v4568 = vadd.f32 %v4566, %v4567
    %v4569 = vsel %vm124, %v4563, 0.0
    %v4570 = vadd.f32 %v4568, %v4569
    %v4571 = vld [vmem:[#allocation10] sm:$0xff]
    %v4572 = vld [vmem:[#allocation10 + $0x8] sm:$0xff]
    %v4573 = vld [vmem:[#allocation10 + $0x10] sm:$0xff]
    %v4574 = vld [vmem:[#allocation10 + $0x18] sm:$0xff]
    %v4575 = vld [vmem:[%s12] sm:$0x1]
    %v4577 = vlaneseq
    %v4578 = vshrl.u32 %v4577, 7
    %v4579 = vsub.s32 0, %v4578
    %v4580 = vrot.slane %v4575, %v4579
    %v4583 = vsel %vm124, %v2596, 0
    %v4586 = vsel %vm124, %v4570, 0
    %4588 = vmatprep.subr.mxu0 0.0
    %4589 = vmatpush1.msra.mxu0 %v4571
    %4590 = vmatprep.subr.mxu0 0.0
    %4591 = vmatpush1.msra.mxu0 %v4572
    %4592 = vmatprep.subr.mxu0 0.0
    %4593 = vmatpush1.msra.mxu0 %v4573
    %4594 = vmatprep.subr.mxu0 0.0
    %4595 = vmatpush1.msra.mxu0 %v4574
    %4596 = vmatprep.subr.mxu0 0.0
    %4597 = vmatpush1.msra.mxu0 0.0
    %4598 = vmatprep.subr.mxu0 0.0
    %4599 = vmatpush1.msra.mxu0 0.0
    %4600 = vmatprep.subr.mxu0 0.0
    %4601 = vmatpush1.msra.mxu0 0.0
    %4602 = vmatprep.subr.mxu0 0.0
    %4603 = vmatpush1.msra.mxu0 0.0
    %4604 = vmatprep.subr.mxu0 0.0
    %4605 = vmatpush1.msra.mxu0 0.0
    %4606 = vmatprep.subr.mxu0 0.0
    %4607 = vmatpush1.msra.mxu0 0.0
    %4608 = vmatprep.subr.mxu0 0.0
    %4609 = vmatpush1.msra.mxu0 0.0
    %4610 = vmatprep.subr.mxu0 0.0
    %4611 = vmatpush1.msra.mxu0 0.0
    %4612 = vmatprep.subr.mxu0 0.0
    %4613 = vmatpush1.msra.mxu0 0.0
    %4614 = vmatprep.subr.mxu0 0.0
    %4615 = vmatpush1.msra.mxu0 0.0
    %4616 = vmatprep.subr.mxu0 0.0
    %4617 = vmatpush1.msra.mxu0 0.0
    %4618 = vmatprep.subr.mxu0 0.0
    %4619 = vmatpush1.msra.mxu0 0.0
    %4620 = vmatprep.subr.mxu0 0.0
    %4621 = vmatpush1.msra.mxu0 0.0
    %4622 = vmatprep.subr.mxu0 0.0
    %4623 = vmatpush1.msra.mxu0 0.0
    %4624 = vmatprep.subr.mxu0 0.0
    %4625 = vmatpush1.msra.mxu0 0.0
    %4626 = vmatprep.subr.mxu0 0.0
    %4627 = vmatpush1.msra.mxu0 0.0
    %4628 = vmatprep.subr.mxu0 0.0
    %4629 = vmatpush1.msra.mxu0 0.0
    %4630 = vmatprep.subr.mxu0 0.0
    %4631 = vmatpush1.msra.mxu0 0.0
    %4632 = vmatprep.subr.mxu0 0.0
    %4633 = vmatpush1.msra.mxu0 0.0
    %4634 = vmatprep.subr.mxu0 0.0
    %4635 = vmatpush1.msra.mxu0 0.0
    %4636 = vmatprep.subr.mxu0 0.0
    %4637 = vmatpush1.msra.mxu0 0.0
    %4638 = vmatprep.subr.mxu0 0.0
    %4639 = vmatpush1.msra.mxu0 0.0
    %4640 = vmatprep.subr.mxu0 0.0
    %4641 = vmatpush1.msra.mxu0 0.0
    %4642 = vmatprep.subr.mxu0 0.0
    %4643 = vmatpush1.msra.mxu0 0.0
    %4644 = vmatprep.subr.mxu0 0.0
    %4645 = vmatpush1.msra.mxu0 0.0
    %4646 = vmatprep.subr.mxu0 0.0
    %4647 = vmatpush1.msra.mxu0 0.0
    %4648 = vmatprep.subr.mxu0 0.0
    %4649 = vmatpush1.msra.mxu0 0.0
    %4650 = vmatprep.subr.mxu0 0.0
    %4651 = vmatpush1.msra.mxu0 0.0
    %4652 = vmatprep.mubr.f32.mxu0 0.0
    %4653 = vmatmul.mubr.f32.gmra.mrb[0].mxu0 %v4583
    %v4654 = vpop.f32.mrb[0].mxu0
    %v4655 = vadd.f32 %v4580, %v4654
    %v4656 = vpop.f32.mrb[0].mxu0
    %4657 = vmatprep.mubr.f32.mxu0 0.0
    %4658 = vmatmul.mubr.f32.gmra.mrb[0].mxu0 %v4586
    %v4659 = vpop.f32.mrb[0].mxu0
    %v4660 = vadd.f32 %v4580, %v4659
    %v4661 = vpop.f32.mrb[0].mxu0
    %4662 = vdwg.mxu0
    %v4663 = vadd.f32 %v4655, %v111
    %v4664 = vadd.f32 %v4660, %v112
    %4665 = vst.msk [vmem:[#allocation11] sm:$0xff] %vm124, %v4663
    %4666 = vst.msk [vmem:[#allocation11 + $0x8] sm:$0xff] %vm124, %v4664
    // Predicated region
    $region74: #{tpu_custom_call.1} parent=1 // pred_check
      _
    $region75: #{tpu_custom_call.1} parent=1 // pred_check_branch
      %4668 = sbr.rel (0) target = $region77
    $region76: #{tpu_custom_call.1} parent=1 // pred_region
      %s4670 = ssub.s32 256, 256
      %4671 = vsyncadd [#allocation4], %s4670
      %s4672 = sshll.u32 [#allocation11], 4
      %s4673 = int_to_ptr.vmem [resolvable:$true] %s4672
      %4678 = dma.vmem_to_hbm [thread:$0]  %s4673, 256, %s13, [#allocation4], 128, 128, 8
    $region77: #{tpu_custom_call.1} parent=1 // pred_fallthru
      _
    // Predicated region
    $region78: #{tpu_custom_call.1} parent=1 // pred_check
      _
    $region79: #{tpu_custom_call.1} parent=1 // pred_check_branch
      %4680 = sbr.rel (0) target = $region81
    $region80: #{tpu_custom_call.1} parent=1 // pred_region
      %4681 = dma.done [#allocation4], 256
    $region81: #{tpu_custom_call.1} parent=1 // pred_fallthru
      _
    %4682 = vsyncpa [#allocation3], 1
    %4683 = vsyncpa [#allocation6], 1
    %4684 = vsyncpa [#allocation9], 1
    %4685 = vsyncpa [#allocation4], 1

</llo_original>
